<compile_context>
chip_gen: v7x
topology: tpu7x:2x2x1
jax: 0.10.0
libtpu: 0.0.40
codegen_flags: <defaults>
</compile_context>

<pallas_src>
from math import pi as PI

import numpy as np
import jax
import jax.numpy as jnp
from jax.experimental import pallas as pl
from jax.experimental.pallas import tpu as pltpu

# ----------------------------- config --------------------------------------
HIDDEN = 32            # hidden_channels
OUT_CHANNELS = 4       # out_channels
NUM_BLOCKS = 1         # num_blocks
NUM_BILINEAR = 16      # num_bilinear (interaction "int_emb_size")
BASIS_EMB = 8          # basis_emb_size
OUT_EMB = 32           # out_emb_channels
NUM_SPHERICAL = 3      # num_spherical
NUM_RADIAL = 6         # num_radial
CUTOFF = 5.0
MAX_NUM_NEIGHBORS = 32
ENVELOPE_EXPONENT = 5
NUM_BEFORE_SKIP = 1
NUM_AFTER_SKIP = 2
NUM_OUTPUT_LAYERS = 3

# Set to jnp.bfloat16 on v6e/v7x for native-MXU hidden matmuls (f32 accumulate
# via preferred_element_type); kept f32 so the numerical check vs the pure-JAX
# reference is tight.
COMPUTE_DTYPE = jnp.float32

_VMEM_LIMIT = 48 * 1024 * 1024     # headroom for v7x (64 MiB physical VMEM)
_CPARAMS = pltpu.CompilerParams(dimension_semantics=("arbitrary",),
                                vmem_limit_bytes=_VMEM_LIMIT)


# ========================= Pallas helpers ===================================
def _swish(y):
    return y * jax.nn.sigmoid(y)


def _mm(a, b):
    return jnp.dot(a.astype(COMPUTE_DTYPE), b.astype(COMPUTE_DTYPE),
                   preferred_element_type=jnp.float32)


def _full_spec(shape):
    nd = len(shape)
    return pl.BlockSpec(tuple(shape), lambda g, nd=nd: (0,) * nd)


# ========================= the fused kernel =================================
def _dimenet_fused_kernel(
        # data
        rbf_ref, sbf_ref, hi_ref, hj_ref, edge_i_ref, idx_kj_ref, idx_ji_ref,
        batch_ref,
        # embedding block
        e_w_rbf_ref, e_b_rbf_ref, e_w_i_ref, e_w_j_ref, e_w_r_ref, e_b_ref,
        # output blocks (stacked along leading NUM_BLOCKS+1 axis)
        o_w_rbf_ref, o_w_up_ref, o_w_lins_ref, o_b_lins_ref, o_w_out_ref,
        # interaction blocks (stacked along leading NUM_BLOCKS axis)
        i_w_jikj_ref, i_b_jikj_ref, i_w_rbf_ref, i_w_down_ref, i_w_sbf_ref,
        i_w_up_ref, i_w_bs_ref, i_b_bs_ref, i_w_lin_ref, i_b_lin_ref,
        i_w_as_ref, i_b_as_ref,
        # output
        out_ref):
    n_edges = rbf_ref.shape[0]
    n_trip = sbf_ref.shape[0]
    n_nodes = batch_ref.shape[1]
    n_graphs = out_ref.shape[0]
    h_dim = HIDDEN

    rbf = rbf_ref[...]
    sbf = sbf_ref[...]

    # ---- one-hot gather/scatter operators: built once, reused every block ---
    # TODO(synk): for large graphs, row-tile E/T over a grid axis so these
    # (N,E)/(T,E)/(E,T) one-hot operators stay bounded in VMEM.
    node_ids = jax.lax.broadcasted_iota(jnp.int32, (n_nodes, n_edges), 0)
    scat_edge2node = (node_ids == edge_i_ref[...]).astype(jnp.float32)   # (N, E)

    col_ids = jax.lax.broadcasted_iota(jnp.int32, (n_trip, n_edges), 1)
    gath_kj = (col_ids == idx_kj_ref[...]).astype(jnp.float32)           # (T, E)

    row_ids = jax.lax.broadcasted_iota(jnp.int32, (n_edges, n_trip), 0)
    scat_ji = (row_ids == idx_ji_ref[...]).astype(jnp.float32)           # (E, T)

    graph_ids = jax.lax.broadcasted_iota(jnp.int32, (n_graphs, n_nodes), 0)
    scat_node2graph = (graph_ids == batch_ref[...]).astype(jnp.float32)  # (G, N)

    # ---- embedding block: x = swish([h_i | h_j | swish(rbf@W+b)] @ W + b) ---
    rbf_h = _swish(_mm(rbf, e_w_rbf_ref[...]) + e_b_rbf_ref[...])
    x = _swish(_mm(hi_ref[...], e_w_i_ref[...])
               + _mm(hj_ref[...], e_w_j_ref[...])
               + _mm(rbf_h, e_w_r_ref[...]) + e_b_ref[...])              # (E, H)

    # ---- OutputBlock ---------------------------------------------------------
    def output_block(blk, x_edge):
        g = _mm(rbf, o_w_rbf_ref[blk])                                   # (E, H)
        t = jnp.dot(scat_edge2node, g * x_edge,
                    preferred_element_type=jnp.float32)                  # (N, H)
        t = _mm(t, o_w_up_ref[blk])                                      # (N, OUT_EMB)
        w_lins = o_w_lins_ref[blk]                                       # (L, OE, OE)
        b_lins = o_b_lins_ref[blk]                                       # (L, 1, OE)
        for l in range(NUM_OUTPUT_LAYERS):
            t = _swish(_mm(t, w_lins[l]) + b_lins[l])
        return _mm(t, o_w_out_ref[blk])                                  # (N, C)

    # ---- InteractionBlock ----------------------------------------------------
    def interaction_block(blk, x_edge):
        # lin_ji / lin_kj fused into a single (H, 2H) matmul.
        y = _swish(_mm(x_edge, i_w_jikj_ref[blk]) + i_b_jikj_ref[blk])   # (E, 2H)
        x_ji = y[:, :h_dim]
        x_kj = y[:, h_dim:]

        r = _mm(rbf, i_w_rbf_ref[blk])                                   # folded rbf1@rbf2
        x_kj = _swish(_mm(x_kj * r, i_w_down_ref[blk]))                  # (E, I)

        s = _mm(sbf, i_w_sbf_ref[blk])                                   # folded sbf1@sbf2
        xkt = jnp.dot(gath_kj, x_kj,
                      preferred_element_type=jnp.float32) * s            # (T, I)
        agg = jnp.dot(scat_ji, xkt,
                      preferred_element_type=jnp.float32)                # (E, I)

        h = x_ji + _swish(_mm(agg, i_w_up_ref[blk]))                     # (E, H)

        w_bs = i_w_bs_ref[blk]; b_bs = i_b_bs_ref[blk]
        for l in range(NUM_BEFORE_SKIP):
            t = _swish(_mm(h, w_bs[2 * l]) + b_bs[2 * l])
            t = _swish(_mm(t, w_bs[2 * l + 1]) + b_bs[2 * l + 1])
            h = h + t
        h = _swish(_mm(h, i_w_lin_ref[blk]) + i_b_lin_ref[blk]) + x_edge
        w_as = i_w_as_ref[blk]; b_as = i_b_as_ref[blk]
        for l in range(NUM_AFTER_SKIP):
            t = _swish(_mm(h, w_as[2 * l]) + b_as[2 * l])
            t = _swish(_mm(t, w_as[2 * l + 1]) + b_as[2 * l + 1])
            h = h + t
        return h

    P = output_block(0, x)
    for blk in range(NUM_BLOCKS):
        x = interaction_block(blk, x)
        P = P + output_block(blk + 1, x)

    # scatter(P, batch, dim=0) folded into the same kernel.
    out_ref[...] = jnp.dot(scat_node2graph, P, preferred_element_type=jnp.float32)


# ========================= Pallas wrapper ====================================
def pallas_dimenet(pp, rbf, sbf, h_i, h_j, edge_i, idx_kj, idx_ji, batch,
                   *, num_graphs):
    e = rbf.shape[0]
    t = sbf.shape[0]
    n = batch.shape[0]
    data_args = [
        rbf.astype(jnp.float32), sbf.astype(jnp.float32),
        h_i.astype(jnp.float32), h_j.astype(jnp.float32),
        jnp.reshape(edge_i.astype(jnp.int32), (1, e)),
        jnp.reshape(idx_kj.astype(jnp.int32), (t, 1)),
        jnp.reshape(idx_ji.astype(jnp.int32), (1, t)),
        jnp.reshape(batch.astype(jnp.int32), (1, n)),
    ]
    emb = pp['emb']
    emb_args = [emb['w_rbf'], emb['b_rbf'], emb['w_i'], emb['w_j'],
                emb['w_r'], emb['b_emb']]
    o = pp['out']
    out_args = [o['w_rbf'], o['w_up'], o['w_lins'], o['b_lins'], o['w_out']]
    it = pp['int']
    int_args = [it['w_jikj'], it['b_jikj'], it['w_rbf'], it['w_down'],
                it['w_sbf'], it['w_up'], it['w_bs'], it['b_bs'],
                it['w_lin'], it['b_lin'], it['w_as'], it['b_as']]
    args = data_args + emb_args + out_args + int_args

    out_shape = (num_graphs, OUT_CHANNELS)
    return pl.pallas_call(
        _dimenet_fused_kernel,
        out_shape=jax.ShapeDtypeStruct(out_shape, jnp.float32),
        grid=(1,),
        in_specs=[_full_spec(a.shape) for a in args],
        out_specs=_full_spec(out_shape),
        compiler_params=_CPARAMS,
    )(*args)


# ===================== basis functions (plain-JAX glue) =====================
def envelope(x, p):
    a = -(p + 1) * (p + 2) / 2.0
    b = float(p * (p + 2))
    c = -p * (p + 1) / 2.0
    xp0 = x ** (p - 1)
    xp1 = xp0 * x
    xp2 = xp1 * x
    return (1.0 / x + a * xp0 + b * xp1 + c * xp2) * (x < 1.0).astype(x.dtype)


def bessel_rbf(dist, freq):
    x = dist[:, None] / CUTOFF
    return envelope(x, ENVELOPE_EXPONENT + 1) * jnp.sin(freq[None, :] * x)


def _sph_jn_np(n, r):
    r = np.asarray(r, dtype=np.float64)
    j0 = np.sin(r) / r
    if n == 0:
        return j0
    j1 = np.sin(r) / r ** 2 - np.cos(r) / r
    if n == 1:
        return j1
    jm1, jc = j0, j1
    for l in range(1, n):
        jnext = (2 * l + 1) / r * jc - jm1
        jm1, jc = jc, jnext
    return jc


def _bisect(f, a, b, iters=200):
    fa = f(a)
    for _ in range(iters):
        m = 0.5 * (a + b)
        fm = f(m)
        if fa * fm <= 0:
            b = m
        else:
            a, fa = m, fm
    return 0.5 * (a + b)


def _jn_zeros(n, k):
    zerosj = np.zeros((n, k), dtype=np.float64)
    zerosj[0] = np.arange(1, k + 1) * np.pi
    points = np.arange(1, k + n) * np.pi
    racines = np.zeros(k + n - 1, dtype=np.float64)
    for i in range(1, n):
        for j in range(k + n - 1 - i):
            racines[j] = _bisect(lambda r: _sph_jn_np(i, r),
                                 points[j], points[j + 1])
        points = racines.copy()
        zerosj[i][:k] = racines[:k]
    return zerosj


def make_sbf_constants(num_spherical, num_radial):
    zeros = _jn_zeros(num_spherical, num_radial)
    norm = np.zeros((num_spherical, num_radial), dtype=np.float64)
    for l in range(num_spherical):
        for i in range(num_radial):
            norm[l, i] = 1.0 / np.sqrt(0.5 * _sph_jn_np(l + 1, zeros[l, i]) ** 2)
    return (jnp.asarray(zeros, jnp.float32), jnp.asarray(norm, jnp.float32))


def _sph_bessel_j(l, x):
    j0 = jnp.sin(x) / x
    if l == 0:
        return j0
    j1 = jnp.sin(x) / x ** 2 - jnp.cos(x) / x
    if l == 1:
        return j1
    jm1, jc = j0, j1
    for ll in range(1, l):
        jnext = (2 * ll + 1) / x * jc - jm1
        jm1, jc = jc, jnext
    return jc


def sbf_basis(dist, angle, idx_kj, sph_zeros, sph_norm):
    x = dist / CUTOFF
    env = envelope(x, ENVELOPE_EXPONENT + 1)
    parts = []
    for l in range(NUM_SPHERICAL):
        arg = x[:, None] * sph_zeros[l][None, :]
        parts.append(sph_norm[l][None, :] * _sph_bessel_j(l, arg))
    rbf = jnp.stack(parts, axis=1)
    rbf = env[:, None, None] * rbf
    cost = jnp.cos(angle)
    pls = [jnp.ones_like(cost), cost]
    for l in range(1, NUM_SPHERICAL - 1):
        pls.append(((2 * l + 1) * cost * pls[l] - l * pls[l - 1]) / (l + 1))
    cbf = jnp.stack(
        [np.sqrt((2 * l + 1) / (4.0 * np.pi)) * pls[l] for l in range(NUM_SPHERICAL)],
        axis=1)
    out = rbf[idx_kj] * cbf[:, :, None]
    return out.reshape(-1, NUM_SPHERICAL * NUM_RADIAL)


# ===================== graph construction (host NumPy) ======================
# TODO(synk): radius_graph + SparseTensor triplets produce dynamic shapes; they
# are computed host-side instead of inside a Pallas kernel.
def build_graph(pos, batch, cutoff, max_num_neighbors):
    pos = np.asarray(pos, dtype=np.float64)
    batch = np.asarray(batch)
    n = pos.shape[0]
    row, col = [], []                 # edge j -> i : row = j (source), col = i (target)
    for i_t in range(n):
        nbrs = []
        for j_s in range(n):
            if j_s == i_t or batch[j_s] != batch[i_t]:
                continue
            d = np.linalg.norm(pos[i_t] - pos[j_s])
            if d < cutoff:
                nbrs.append((d, j_s))
        nbrs.sort()
        for _, j_s in nbrs[:max_num_neighbors]:
            row.append(j_s)
            col.append(i_t)
    row = np.asarray(row, np.int32)
    col = np.asarray(col, np.int32)

    in_edges = [[] for _ in range(n)]
    for e in range(len(row)):
        in_edges[col[e]].append(e)
    idx_i, idx_j, idx_k, idx_kj, idx_ji = [], [], [], [], []
    for e in range(len(row)):
        j = row[e]
        i = col[e]
        for e2 in in_edges[j]:        # edge k -> j
            k = row[e2]
            if k == i:                # mask: idx_i != idx_k
                continue
            idx_i.append(i); idx_j.append(j); idx_k.append(k)
            idx_kj.append(e2); idx_ji.append(e)
    to32 = lambda a: np.asarray(a, np.int32)
    return dict(row=row, col=col,
                idx_i=to32(idx_i), idx_j=to32(idx_j), idx_k=to32(idx_k),
                idx_kj=to32(idx_kj), idx_ji=to32(idx_ji))


# ============================ parameters =====================================
def init_params(key):
    keys = iter(jax.random.split(key, 200))

    def w(fan_in, fan_out):
        return (jax.random.normal(next(keys), (fan_in, fan_out), jnp.float32)
                * (1.0 / np.sqrt(fan_in)))

    def b(n):
        return jnp.zeros((n,), jnp.float32)

    params = {}
    params['rbf_freq'] = jnp.arange(1, NUM_RADIAL + 1, dtype=jnp.float32) * PI
    params['emb_table'] = jax.random.uniform(
        next(keys), (95, HIDDEN), jnp.float32, -np.sqrt(3.0), np.sqrt(3.0))
    params['emb_lin_rbf'] = (w(NUM_RADIAL, HIDDEN), b(HIDDEN))
    params['emb_lin'] = (w(3 * HIDDEN, HIDDEN), b(HIDDEN))
    params['out'] = []
    for _ in range(NUM_BLOCKS + 1):
        params['out'].append(dict(
            lin_rbf=w(NUM_RADIAL, HIDDEN),
            lin_up=w(HIDDEN, OUT_EMB),
            lins=[(w(OUT_EMB, OUT_EMB), b(OUT_EMB)) for _ in range(NUM_OUTPUT_LAYERS)],
            lin=w(OUT_EMB, OUT_CHANNELS),
        ))
    params['int'] = []
    for _ in range(NUM_BLOCKS):
        params['int'].append(dict(
            lin_rbf1=w(NUM_RADIAL, BASIS_EMB),
            lin_rbf2=w(BASIS_EMB, HIDDEN),
            lin_sbf1=w(NUM_SPHERICAL * NUM_RADIAL, BASIS_EMB),
            lin_sbf2=w(BASIS_EMB, NUM_BILINEAR),
            lin_kj=(w(HIDDEN, HIDDEN), b(HIDDEN)),
            lin_ji=(w(HIDDEN, HIDDEN), b(HIDDEN)),
            lin_down=w(HIDDEN, NUM_BILINEAR),
            lin_up=w(NUM_BILINEAR, HIDDEN),
            before_skip=[(w(HIDDEN, HIDDEN), b(HIDDEN), w(HIDDEN, HIDDEN), b(HIDDEN))
                         for _ in range(NUM_BEFORE_SKIP)],
            lin=(w(HIDDEN, HIDDEN), b(HIDDEN)),
            after_skip=[(w(HIDDEN, HIDDEN), b(HIDDEN), w(HIDDEN, HIDDEN), b(HIDDEN))
                        for _ in range(NUM_AFTER_SKIP)],
        ))
    return params


def preprocess_params(params):
    """Host-side weight folding / stacking for the fused kernel (exact)."""
    pp = {'emb_table': params['emb_table'], 'rbf_freq': params['rbf_freq']}

    we, be = params['emb_lin_rbf']
    W, b = params['emb_lin']
    pp['emb'] = dict(
        w_rbf=we, b_rbf=be.reshape(1, -1),
        w_i=W[:HIDDEN], w_j=W[HIDDEN:2 * HIDDEN], w_r=W[2 * HIDDEN:],
        b_emb=b.reshape(1, -1))

    # output blocks stacked along leading (NUM_BLOCKS + 1) axis
    pp['out'] = dict(
        w_rbf=jnp.stack([p['lin_rbf'] for p in params['out']]),
        w_up=jnp.stack([p['lin_up'] for p in params['out']]),
        w_lins=jnp.stack([jnp.stack([wl for (wl, _) in p['lins']])
                          for p in params['out']]),
        b_lins=jnp.stack([jnp.stack([bl.reshape(1, -1) for (_, bl) in p['lins']])
                          for p in params['out']]),
        w_out=jnp.stack([p['lin'] for p in params['out']]))

    # interaction blocks stacked along leading NUM_BLOCKS axis
    w_jikj, b_jikj, w_rbf, w_sbf, w_down, w_up = [], [], [], [], [], []
    w_bs, b_bs, w_lin, b_lin, w_as, b_as = [], [], [], [], [], []
    for p in params['int']:
        wji, bji = p['lin_ji']
        wkj, bkj = p['lin_kj']
        w_jikj.append(jnp.concatenate([wji, wkj], axis=1))
        b_jikj.append(jnp.concatenate([bji, bkj]).reshape(1, -1))
        w_rbf.append(jnp.dot(p['lin_rbf1'], p['lin_rbf2']))   # folded (no bias/act)
        w_sbf.append(jnp.dot(p['lin_sbf1'], p['lin_sbf2']))   # folded
        w_down.append(p['lin_down'])
        w_up.append(p['lin_up'])
        bw, bb, aw, ab = [], [], [], []
        for (w1, b1, w2, b2) in p['before_skip']:
            bw += [w1, w2]; bb += [b1.reshape(1, -1), b2.reshape(1, -1)]
        for (w1, b1, w2, b2) in p['after_skip']:
            aw += [w1, w2]; ab += [b1.reshape(1, -1), b2.reshape(1, -1)]
        w_bs.append(jnp.stack(bw)); b_bs.append(jnp.stack(bb))
        w_as.append(jnp.stack(aw)); b_as.append(jnp.stack(ab))
        wl, bl = p['lin']
        w_lin.append(wl); b_lin.append(bl.reshape(1, -1))
    pp['int'] = dict(
        w_jikj=jnp.stack(w_jikj), b_jikj=jnp.stack(b_jikj),
        w_rbf=jnp.stack(w_rbf), w_sbf=jnp.stack(w_sbf),
        w_down=jnp.stack(w_down), w_up=jnp.stack(w_up),
        w_bs=jnp.stack(w_bs), b_bs=jnp.stack(b_bs),
        w_lin=jnp.stack(w_lin), b_lin=jnp.stack(b_lin),
        w_as=jnp.stack(w_as), b_as=jnp.stack(b_as))
    return pp


# ============================ forward passes =================================
def _geometry_and_basis(params_like, consts, pos, graph):
    sph_zeros, sph_norm = consts
    row, col = graph['row'], graph['col']
    i, j = col, row                                    # edge j -> i
    idx_i, idx_j, idx_k = graph['idx_i'], graph['idx_j'], graph['idx_k']
    idx_kj = graph['idx_kj']
    dist = jnp.sqrt(jnp.sum((pos[i] - pos[j]) ** 2, axis=-1))
    pos_ji = pos[idx_i] - pos[idx_j]
    pos_jk = pos[idx_k] - pos[idx_j]
    a = jnp.sum(pos_ji * pos_jk, axis=-1)
    b = jnp.linalg.norm(jnp.cross(pos_ji, pos_jk), axis=-1)
    angle = jnp.arctan2(b, a)
    rbf = bessel_rbf(dist, params_like['rbf_freq'])
    sbf = sbf_basis(dist, angle, idx_kj, sph_zeros, sph_norm)
    return i, j, rbf, sbf


def dimenet_forward_pallas(pp, consts, z, pos, batch, graph, *, num_graphs):
    i, j, rbf, sbf = _geometry_and_basis(pp, consts, pos, graph)
    # TODO(synk): the h_atom[i]/h_atom[j] row gathers stay in XLA; for big
    # graphs move them into the kernel via scalar-prefetch indexing.
    h_atom = jnp.take(pp['emb_table'], z, axis=0)               # (N, H)
    return pallas_dimenet(pp, rbf, sbf, h_atom[i], h_atom[j], i,
                          graph['idx_kj'], graph['idx_ji'], batch,
                          num_graphs=num_graphs)


# ------------------------- pure-JAX reference --------------------------------
def _ref_linear(x, w, b=None, act=False):
    y = jnp.dot(x, w)
    if b is not None:
        y = y + b[None, :]
    if act:
        y = y * jax.nn.sigmoid(y)
    return y


def dimenet_reference(params, consts, z, pos, batch, graph, *, num_graphs):
    i, j, rbf, sbf = _geometry_and_basis(params, consts, pos, graph)
    idx_kj, idx_ji = graph['idx_kj'], graph['idx_ji']
    num_nodes = pos.shape[0]
    num_edges = graph['row'].shape[0]

    h_atom = jnp.take(params['emb_table'], z, axis=0)
    we, be = params['emb_lin_rbf']
    rbf_h = _ref_linear(rbf, we, be, act=True)
    we, be = params['emb_lin']
    x = _ref_linear(jnp.concatenate([h_atom[i], h_atom[j], rbf_h], axis=-1),
                    we, be, act=True)

    def output_block(p, x_edge):
        g = _ref_linear(rbf, p['lin_rbf'])
        t = g * x_edge
        t = jax.ops.segment_sum(t, i.astype(jnp.int32), num_segments=num_nodes)
        t = _ref_linear(t, p['lin_up'])
        for (wl, bl) in p['lins']:
            t = _ref_linear(t, wl, bl, act=True)
        return _ref_linear(t, p['lin'])

    def interaction_block(p, x_edge):
        wji, bji = p['lin_ji']
        wkj, bkj = p['lin_kj']
        x_ji = _ref_linear(x_edge, wji, bji, act=True)
        x_kj = _ref_linear(x_edge, wkj, bkj, act=True)
        r = _ref_linear(_ref_linear(rbf, p['lin_rbf1']), p['lin_rbf2'])
        x_kj = x_kj * r
        x_kj = _ref_linear(x_kj, p['lin_down'], act=True)
        s = _ref_linear(_ref_linear(sbf, p['lin_sbf1']), p['lin_sbf2'])
        x_kj_t = jnp.take(x_kj, idx_kj, axis=0) * s
        x_kj = jax.ops.segment_sum(x_kj_t, idx_ji.astype(jnp.int32),
                                   num_segments=num_edges)
        x_kj = _ref_linear(x_kj, p['lin_up'], act=True)
        h = x_ji + x_kj
        for (w1, b1, w2, b2) in p['before_skip']:
            h = h + _ref_linear(_ref_linear(h, w1, b1, act=True), w2, b2, act=True)
        wl, bl = p['lin']
        h = _ref_linear(h, wl, bl, act=True) + x_edge
        for (w1, b1, w2, b2) in p['after_skip']:
            h = h + _ref_linear(_ref_linear(h, w1, b1, act=True), w2, b2, act=True)
        return h

    P = output_block(params['out'][0], x)
    for blk in range(NUM_BLOCKS):
        x = interaction_block(params['int'][blk], x)
        P = P + output_block(params['out'][blk + 1], x)
    return jax.ops.segment_sum(P, batch.astype(jnp.int32), num_segments=num_graphs)


# ================================ main =======================================
if __name__ == "__main__":
    key = jax.random.PRNGKey(0)
    k_pos, k_z, k_param = jax.random.split(key, 3)

    num_nodes = 8
    num_graphs = 2
    pos = jax.random.uniform(k_pos, (num_nodes, 3), jnp.float32) * 2.0
    z = jax.random.randint(k_z, (num_nodes,), 1, 10).astype(jnp.int32)
    batch = jnp.array([0, 0, 0, 0, 1, 1, 1, 1], dtype=jnp.int32)

    graph = build_graph(np.asarray(pos), np.asarray(batch), CUTOFF, MAX_NUM_NEIGHBORS)
    params = init_params(k_param)
    pparams = preprocess_params(params)
    consts = make_sbf_constants(NUM_SPHERICAL, NUM_RADIAL)

    fwd = jax.jit(dimenet_forward_pallas, static_argnames=("num_graphs",))
    out = jax.block_until_ready(
        fwd(pparams, consts, z, pos, batch, graph, num_graphs=num_graphs))

    ref_fwd = jax.jit(dimenet_reference, static_argnames=("num_graphs",))
    ref = jax.block_until_ready(
        ref_fwd(params, consts, z, pos, batch, graph, num_graphs=num_graphs))

    assert out.shape == (num_graphs, OUT_CHANNELS)
    np.testing.assert_allclose(np.asarray(out), np.asarray(ref), rtol=5e-2, atol=5e-2)
    print("KERNEL_OK")
</pallas_src>

<mosaic_0001>
module attributes {stable_mosaic.version = 11 : i64} {
  func.func @_dimenet_fused_kernel(%arg0: i32, %arg1: memref<24x6xf32, #tpu.memory_space<vmem>>, %arg2: memref<48x18xf32, #tpu.memory_space<vmem>>, %arg3: memref<24x32xf32, #tpu.memory_space<vmem>>, %arg4: memref<24x32xf32, #tpu.memory_space<vmem>>, %arg5: memref<1x24xi32, #tpu.memory_space<vmem>>, %arg6: memref<48x1xi32, #tpu.memory_space<vmem>>, %arg7: memref<1x48xi32, #tpu.memory_space<vmem>>, %arg8: memref<1x8xi32, #tpu.memory_space<vmem>>, %arg9: memref<6x32xf32, #tpu.memory_space<vmem>>, %arg10: memref<1x32xf32, #tpu.memory_space<vmem>>, %arg11: memref<32x32xf32, #tpu.memory_space<vmem>>, %arg12: memref<32x32xf32, #tpu.memory_space<vmem>>, %arg13: memref<32x32xf32, #tpu.memory_space<vmem>>, %arg14: memref<1x32xf32, #tpu.memory_space<vmem>>, %arg15: memref<2x6x32xf32, #tpu.memory_space<vmem>>, %arg16: memref<2x32x32xf32, #tpu.memory_space<vmem>>, %arg17: memref<2x3x32x32xf32, #tpu.memory_space<vmem>>, %arg18: memref<2x3x1x32xf32, #tpu.memory_space<vmem>>, %arg19: memref<2x32x4xf32, #tpu.memory_space<vmem>>, %arg20: memref<1x32x64xf32, #tpu.memory_space<vmem>>, %arg21: memref<1x1x64xf32, #tpu.memory_space<vmem>>, %arg22: memref<1x6x32xf32, #tpu.memory_space<vmem>>, %arg23: memref<1x32x16xf32, #tpu.memory_space<vmem>>, %arg24: memref<1x18x16xf32, #tpu.memory_space<vmem>>, %arg25: memref<1x16x32xf32, #tpu.memory_space<vmem>>, %arg26: memref<1x2x32x32xf32, #tpu.memory_space<vmem>>, %arg27: memref<1x2x1x32xf32, #tpu.memory_space<vmem>>, %arg28: memref<1x32x32xf32, #tpu.memory_space<vmem>>, %arg29: memref<1x1x32xf32, #tpu.memory_space<vmem>>, %arg30: memref<1x4x32x32xf32, #tpu.memory_space<vmem>>, %arg31: memref<1x4x1x32xf32, #tpu.memory_space<vmem>>, %arg32: memref<2x4xf32, #tpu.memory_space<vmem>>) attributes {dimension_semantics = [#tpu.dimension_semantics<arbitrary>], iteration_bounds = array<i64: 1>, scalar_prefetch = 0 : i64, scratch_operands = 0 : i64, tpu.core_type = #tpu.core_type<tc>, window_params = [{pipeline_mode = #tpu.pipeline_mode<synchronous>, transform_indices = @transform_0, window_bounds = array<i64: 24, 6>}, {pipeline_mode = #tpu.pipeline_mode<synchronous>, transform_indices = @transform_1, window_bounds = array<i64: 48, 18>}, {pipeline_mode = #tpu.pipeline_mode<synchronous>, transform_indices = @transform_2, window_bounds = array<i64: 24, 32>}, {pipeline_mode = #tpu.pipeline_mode<synchronous>, transform_indices = @transform_3, window_bounds = array<i64: 24, 32>}, {pipeline_mode = #tpu.pipeline_mode<synchronous>, transform_indices = @transform_4, window_bounds = array<i64: 1, 24>}, {pipeline_mode = #tpu.pipeline_mode<synchronous>, transform_indices = @transform_5, window_bounds = array<i64: 48, 1>}, {pipeline_mode = #tpu.pipeline_mode<synchronous>, transform_indices = @transform_6, window_bounds = array<i64: 1, 48>}, {pipeline_mode = #tpu.pipeline_mode<synchronous>, transform_indices = @transform_7, window_bounds = array<i64: 1, 8>}, {pipeline_mode = #tpu.pipeline_mode<synchronous>, transform_indices = @transform_8, window_bounds = array<i64: 6, 32>}, {pipeline_mode = #tpu.pipeline_mode<synchronous>, transform_indices = @transform_9, window_bounds = array<i64: 1, 32>}, {pipeline_mode = #tpu.pipeline_mode<synchronous>, transform_indices = @transform_10, window_bounds = array<i64: 32, 32>}, {pipeline_mode = #tpu.pipeline_mode<synchronous>, transform_indices = @transform_11, window_bounds = array<i64: 32, 32>}, {pipeline_mode = #tpu.pipeline_mode<synchronous>, transform_indices = @transform_12, window_bounds = array<i64: 32, 32>}, {pipeline_mode = #tpu.pipeline_mode<synchronous>, transform_indices = @transform_13, window_bounds = array<i64: 1, 32>}, {pipeline_mode = #tpu.pipeline_mode<synchronous>, transform_indices = @transform_14, window_bounds = array<i64: 2, 6, 32>}, {pipeline_mode = #tpu.pipeline_mode<synchronous>, transform_indices = @transform_15, window_bounds = array<i64: 2, 32, 32>}, {pipeline_mode = #tpu.pipeline_mode<synchronous>, transform_indices = @transform_16, window_bounds = array<i64: 2, 3, 32, 32>}, {pipeline_mode = #tpu.pipeline_mode<synchronous>, transform_indices = @transform_17, window_bounds = array<i64: 2, 3, 1, 32>}, {pipeline_mode = #tpu.pipeline_mode<synchronous>, transform_indices = @transform_18, window_bounds = array<i64: 2, 32, 4>}, {pipeline_mode = #tpu.pipeline_mode<synchronous>, transform_indices = @transform_19, window_bounds = array<i64: 1, 32, 64>}, {pipeline_mode = #tpu.pipeline_mode<synchronous>, transform_indices = @transform_20, window_bounds = array<i64: 1, 1, 64>}, {pipeline_mode = #tpu.pipeline_mode<synchronous>, transform_indices = @transform_21, window_bounds = array<i64: 1, 6, 32>}, {pipeline_mode = #tpu.pipeline_mode<synchronous>, transform_indices = @transform_22, window_bounds = array<i64: 1, 32, 16>}, {pipeline_mode = #tpu.pipeline_mode<synchronous>, transform_indices = @transform_23, window_bounds = array<i64: 1, 18, 16>}, {pipeline_mode = #tpu.pipeline_mode<synchronous>, transform_indices = @transform_24, window_bounds = array<i64: 1, 16, 32>}, {pipeline_mode = #tpu.pipeline_mode<synchronous>, transform_indices = @transform_25, window_bounds = array<i64: 1, 2, 32, 32>}, {pipeline_mode = #tpu.pipeline_mode<synchronous>, transform_indices = @transform_26, window_bounds = array<i64: 1, 2, 1, 32>}, {pipeline_mode = #tpu.pipeline_mode<synchronous>, transform_indices = @transform_27, window_bounds = array<i64: 1, 32, 32>}, {pipeline_mode = #tpu.pipeline_mode<synchronous>, transform_indices = @transform_28, window_bounds = array<i64: 1, 1, 32>}, {pipeline_mode = #tpu.pipeline_mode<synchronous>, transform_indices = @transform_29, window_bounds = array<i64: 1, 4, 32, 32>}, {pipeline_mode = #tpu.pipeline_mode<synchronous>, transform_indices = @transform_30, window_bounds = array<i64: 1, 4, 1, 32>}, {pipeline_mode = #tpu.pipeline_mode<synchronous>, transform_indices = @transform_31, window_bounds = array<i64: 2, 4>}]} {
    %c0 = arith.constant 0 : index
    %c0_0 = arith.constant 0 : index
    %0 = vector.load %arg1[%c0, %c0_0] : memref<24x6xf32, #tpu.memory_space<vmem>>, vector<24x6xf32>
    %c0_1 = arith.constant 0 : index
    %c0_2 = arith.constant 0 : index
    %1 = vector.load %arg2[%c0_1, %c0_2] : memref<48x18xf32, #tpu.memory_space<vmem>>, vector<48x18xf32>
    %2 = tpu.iota {dimensions = array<i32: 0>} : vector<8x24xi32>
    %c0_3 = arith.constant 0 : index
    %c0_4 = arith.constant 0 : index
    %3 = vector.load %arg5[%c0_3, %c0_4] : memref<1x24xi32, #tpu.memory_space<vmem>>, vector<1x24xi32>
    %4 = vector.broadcast %3 : vector<1x24xi32> to vector<8x24xi32>
    %5 = arith.cmpi eq, %2, %4 : vector<8x24xi32>
    %6 = arith.extui %5 : vector<8x24xi1> to vector<8x24xi32>
    %7 = arith.sitofp %6 : vector<8x24xi32> to vector<8x24xf32>
    %8 = tpu.iota {dimensions = array<i32: 1>} : vector<48x24xi32>
    %c0_5 = arith.constant 0 : index
    %c0_6 = arith.constant 0 : index
    %9 = vector.load %arg6[%c0_5, %c0_6] : memref<48x1xi32, #tpu.memory_space<vmem>>, vector<48x1xi32>
    %10 = vector.broadcast %9 : vector<48x1xi32> to vector<48x24xi32>
    %11 = arith.cmpi eq, %8, %10 : vector<48x24xi32>
    %12 = arith.extui %11 : vector<48x24xi1> to vector<48x24xi32>
    %13 = arith.sitofp %12 : vector<48x24xi32> to vector<48x24xf32>
    %14 = tpu.iota {dimensions = array<i32: 0>} : vector<24x48xi32>
    %c0_7 = arith.constant 0 : index
    %c0_8 = arith.constant 0 : index
    %15 = vector.load %arg7[%c0_7, %c0_8] : memref<1x48xi32, #tpu.memory_space<vmem>>, vector<1x48xi32>
    %16 = vector.broadcast %15 : vector<1x48xi32> to vector<24x48xi32>
    %17 = arith.cmpi eq, %14, %16 : vector<24x48xi32>
    %18 = arith.extui %17 : vector<24x48xi1> to vector<24x48xi32>
    %19 = arith.sitofp %18 : vector<24x48xi32> to vector<24x48xf32>
    %20 = tpu.iota {dimensions = array<i32: 0>} : vector<2x8xi32>
    %c0_9 = arith.constant 0 : index
    %c0_10 = arith.constant 0 : index
    %21 = vector.load %arg8[%c0_9, %c0_10] : memref<1x8xi32, #tpu.memory_space<vmem>>, vector<1x8xi32>
    %22 = vector.broadcast %21 : vector<1x8xi32> to vector<2x8xi32>
    %23 = arith.cmpi eq, %20, %22 : vector<2x8xi32>
    %24 = arith.extui %23 : vector<2x8xi1> to vector<2x8xi32>
    %25 = arith.sitofp %24 : vector<2x8xi32> to vector<2x8xf32>
    %c0_11 = arith.constant 0 : index
    %c0_12 = arith.constant 0 : index
    %26 = vector.load %arg9[%c0_11, %c0_12] : memref<6x32xf32, #tpu.memory_space<vmem>>, vector<6x32xf32>
    %cst = arith.constant dense<0.000000e+00> : vector<24x32xf32>
    %27 = tpu.matmul %0, %26, %cst {dimension_numbers = #tpu.dot_dimension_numbers<[1], [0], [0], [1], [0, 0, 1, 1], [], []>} : vector<24x6xf32>, vector<6x32xf32>, vector<24x32xf32> -> vector<24x32xf32>
    %c0_13 = arith.constant 0 : index
    %c0_14 = arith.constant 0 : index
    %28 = vector.load %arg10[%c0_13, %c0_14] : memref<1x32xf32, #tpu.memory_space<vmem>>, vector<1x32xf32>
    %29 = vector.broadcast %28 : vector<1x32xf32> to vector<24x32xf32>
    %30 = arith.addf %27, %29 : vector<24x32xf32>
    %31 = arith.negf %30 : vector<24x32xf32>
    %32 = math.exp %31 : vector<24x32xf32>
    %cst_15 = arith.constant 1.000000e+00 : f32
    %33 = vector.broadcast %cst_15 : f32 to vector<24x32xf32>
    %34 = arith.addf %33, %32 : vector<24x32xf32>
    %35 = arith.divf %33, %34 : vector<24x32xf32>
    %36 = arith.mulf %30, %35 : vector<24x32xf32>
    %c0_16 = arith.constant 0 : index
    %c0_17 = arith.constant 0 : index
    %37 = vector.load %arg3[%c0_16, %c0_17] : memref<24x32xf32, #tpu.memory_space<vmem>>, vector<24x32xf32>
    %c0_18 = arith.constant 0 : index
    %c0_19 = arith.constant 0 : index
    %38 = vector.load %arg11[%c0_18, %c0_19] : memref<32x32xf32, #tpu.memory_space<vmem>>, vector<32x32xf32>
    %cst_20 = arith.constant dense<0.000000e+00> : vector<24x32xf32>
    %39 = tpu.matmul %37, %38, %cst_20 {dimension_numbers = #tpu.dot_dimension_numbers<[1], [0], [0], [1], [0, 0, 1, 1], [], []>} : vector<24x32xf32>, vector<32x32xf32>, vector<24x32xf32> -> vector<24x32xf32>
    %c0_21 = arith.constant 0 : index
    %c0_22 = arith.constant 0 : index
    %40 = vector.load %arg4[%c0_21, %c0_22] : memref<24x32xf32, #tpu.memory_space<vmem>>, vector<24x32xf32>
    %c0_23 = arith.constant 0 : index
    %c0_24 = arith.constant 0 : index
    %41 = vector.load %arg12[%c0_23, %c0_24] : memref<32x32xf32, #tpu.memory_space<vmem>>, vector<32x32xf32>
    %cst_25 = arith.constant dense<0.000000e+00> : vector<24x32xf32>
    %42 = tpu.matmul %40, %41, %cst_25 {dimension_numbers = #tpu.dot_dimension_numbers<[1], [0], [0], [1], [0, 0, 1, 1], [], []>} : vector<24x32xf32>, vector<32x32xf32>, vector<24x32xf32> -> vector<24x32xf32>
    %43 = arith.addf %39, %42 : vector<24x32xf32>
    %c0_26 = arith.constant 0 : index
    %c0_27 = arith.constant 0 : index
    %44 = vector.load %arg13[%c0_26, %c0_27] : memref<32x32xf32, #tpu.memory_space<vmem>>, vector<32x32xf32>
    %cst_28 = arith.constant dense<0.000000e+00> : vector<24x32xf32>
    %45 = tpu.matmul %36, %44, %cst_28 {dimension_numbers = #tpu.dot_dimension_numbers<[1], [0], [0], [1], [0, 0, 1, 1], [], []>} : vector<24x32xf32>, vector<32x32xf32>, vector<24x32xf32> -> vector<24x32xf32>
    %46 = arith.addf %43, %45 : vector<24x32xf32>
    %c0_29 = arith.constant 0 : index
    %c0_30 = arith.constant 0 : index
    %47 = vector.load %arg14[%c0_29, %c0_30] : memref<1x32xf32, #tpu.memory_space<vmem>>, vector<1x32xf32>
    %48 = vector.broadcast %47 : vector<1x32xf32> to vector<24x32xf32>
    %49 = arith.addf %46, %48 : vector<24x32xf32>
    %50 = arith.negf %49 : vector<24x32xf32>
    %51 = math.exp %50 : vector<24x32xf32>
    %cst_31 = arith.constant 1.000000e+00 : f32
    %52 = vector.broadcast %cst_31 : f32 to vector<24x32xf32>
    %53 = arith.addf %52, %51 : vector<24x32xf32>
    %54 = arith.divf %52, %53 : vector<24x32xf32>
    %55 = arith.mulf %49, %54 : vector<24x32xf32>
    %c0_32 = arith.constant 0 : index
    %c0_33 = arith.constant 0 : index
    %c0_34 = arith.constant 0 : index
    %56 = vector.load %arg15[%c0_32, %c0_33, %c0_34] : memref<2x6x32xf32, #tpu.memory_space<vmem>>, vector<1x6x32xf32>
    %57 = vector.shape_cast %56 : vector<1x6x32xf32> to vector<6x32xf32>
    %cst_35 = arith.constant dense<0.000000e+00> : vector<24x32xf32>
    %58 = tpu.matmul %0, %57, %cst_35 {dimension_numbers = #tpu.dot_dimension_numbers<[1], [0], [0], [1], [0, 0, 1, 1], [], []>} : vector<24x6xf32>, vector<6x32xf32>, vector<24x32xf32> -> vector<24x32xf32>
    %59 = arith.mulf %58, %55 : vector<24x32xf32>
    %cst_36 = arith.constant dense<0.000000e+00> : vector<8x32xf32>
    %60 = tpu.matmul %7, %59, %cst_36 {dimension_numbers = #tpu.dot_dimension_numbers<[1], [0], [0], [1], [0, 0, 1, 1], [], []>} : vector<8x24xf32>, vector<24x32xf32>, vector<8x32xf32> -> vector<8x32xf32>
    %c0_37 = arith.constant 0 : index
    %c0_38 = arith.constant 0 : index
    %c0_39 = arith.constant 0 : index
    %61 = vector.load %arg16[%c0_37, %c0_38, %c0_39] : memref<2x32x32xf32, #tpu.memory_space<vmem>>, vector<1x32x32xf32>
    %62 = vector.shape_cast %61 : vector<1x32x32xf32> to vector<32x32xf32>
    %cst_40 = arith.constant dense<0.000000e+00> : vector<8x32xf32>
    %63 = tpu.matmul %60, %62, %cst_40 {dimension_numbers = #tpu.dot_dimension_numbers<[1], [0], [0], [1], [0, 0, 1, 1], [], []>} : vector<8x32xf32>, vector<32x32xf32>, vector<8x32xf32> -> vector<8x32xf32>
    %c0_41 = arith.constant 0 : index
    %c0_42 = arith.constant 0 : index
    %c0_43 = arith.constant 0 : index
    %c0_44 = arith.constant 0 : index
    %64 = vector.load %arg17[%c0_41, %c0_42, %c0_43, %c0_44] : memref<2x3x32x32xf32, #tpu.memory_space<vmem>>, vector<1x3x32x32xf32>
    %65 = vector.shape_cast %64 : vector<1x3x32x32xf32> to vector<3x32x32xf32>
    %c0_45 = arith.constant 0 : index
    %c0_46 = arith.constant 0 : index
    %c0_47 = arith.constant 0 : index
    %c0_48 = arith.constant 0 : index
    %66 = vector.load %arg18[%c0_45, %c0_46, %c0_47, %c0_48] : memref<2x3x1x32xf32, #tpu.memory_space<vmem>>, vector<1x3x1x32xf32>
    %67 = vector.shape_cast %66 : vector<1x3x1x32xf32> to vector<3x1x32xf32>
    %68 = vector.extract_strided_slice %65 {offsets = [0, 0, 0], sizes = [1, 32, 32], strides = [1, 1, 1]} : vector<3x32x32xf32> to vector<1x32x32xf32>
    %69 = vector.shape_cast %68 : vector<1x32x32xf32> to vector<32x32xf32>
    %cst_49 = arith.constant dense<0.000000e+00> : vector<8x32xf32>
    %70 = tpu.matmul %63, %69, %cst_49 {dimension_numbers = #tpu.dot_dimension_numbers<[1], [0], [0], [1], [0, 0, 1, 1], [], []>} : vector<8x32xf32>, vector<32x32xf32>, vector<8x32xf32> -> vector<8x32xf32>
    %71 = vector.extract_strided_slice %67 {offsets = [0, 0, 0], sizes = [1, 1, 32], strides = [1, 1, 1]} : vector<3x1x32xf32> to vector<1x1x32xf32>
    %72 = vector.shape_cast %71 : vector<1x1x32xf32> to vector<1x32xf32>
    %73 = vector.broadcast %72 : vector<1x32xf32> to vector<8x32xf32>
    %74 = arith.addf %70, %73 : vector<8x32xf32>
    %75 = arith.negf %74 : vector<8x32xf32>
    %76 = math.exp %75 : vector<8x32xf32>
    %cst_50 = arith.constant 1.000000e+00 : f32
    %77 = vector.broadcast %cst_50 : f32 to vector<8x32xf32>
    %78 = arith.addf %77, %76 : vector<8x32xf32>
    %79 = arith.divf %77, %78 : vector<8x32xf32>
    %80 = arith.mulf %74, %79 : vector<8x32xf32>
    %81 = vector.extract_strided_slice %65 {offsets = [1, 0, 0], sizes = [1, 32, 32], strides = [1, 1, 1]} : vector<3x32x32xf32> to vector<1x32x32xf32>
    %82 = vector.shape_cast %81 : vector<1x32x32xf32> to vector<32x32xf32>
    %cst_51 = arith.constant dense<0.000000e+00> : vector<8x32xf32>
    %83 = tpu.matmul %80, %82, %cst_51 {dimension_numbers = #tpu.dot_dimension_numbers<[1], [0], [0], [1], [0, 0, 1, 1], [], []>} : vector<8x32xf32>, vector<32x32xf32>, vector<8x32xf32> -> vector<8x32xf32>
    %84 = vector.extract_strided_slice %67 {offsets = [1, 0, 0], sizes = [1, 1, 32], strides = [1, 1, 1]} : vector<3x1x32xf32> to vector<1x1x32xf32>
    %85 = vector.shape_cast %84 : vector<1x1x32xf32> to vector<1x32xf32>
    %86 = vector.broadcast %85 : vector<1x32xf32> to vector<8x32xf32>
    %87 = arith.addf %83, %86 : vector<8x32xf32>
    %88 = arith.negf %87 : vector<8x32xf32>
    %89 = math.exp %88 : vector<8x32xf32>
    %cst_52 = arith.constant 1.000000e+00 : f32
    %90 = vector.broadcast %cst_52 : f32 to vector<8x32xf32>
    %91 = arith.addf %90, %89 : vector<8x32xf32>
    %92 = arith.divf %90, %91 : vector<8x32xf32>
    %93 = arith.mulf %87, %92 : vector<8x32xf32>
    %94 = vector.extract_strided_slice %65 {offsets = [2, 0, 0], sizes = [1, 32, 32], strides = [1, 1, 1]} : vector<3x32x32xf32> to vector<1x32x32xf32>
    %95 = vector.shape_cast %94 : vector<1x32x32xf32> to vector<32x32xf32>
    %cst_53 = arith.constant dense<0.000000e+00> : vector<8x32xf32>
    %96 = tpu.matmul %93, %95, %cst_53 {dimension_numbers = #tpu.dot_dimension_numbers<[1], [0], [0], [1], [0, 0, 1, 1], [], []>} : vector<8x32xf32>, vector<32x32xf32>, vector<8x32xf32> -> vector<8x32xf32>
    %97 = vector.extract_strided_slice %67 {offsets = [2, 0, 0], sizes = [1, 1, 32], strides = [1, 1, 1]} : vector<3x1x32xf32> to vector<1x1x32xf32>
    %98 = vector.shape_cast %97 : vector<1x1x32xf32> to vector<1x32xf32>
    %99 = vector.broadcast %98 : vector<1x32xf32> to vector<8x32xf32>
    %100 = arith.addf %96, %99 : vector<8x32xf32>
    %101 = arith.negf %100 : vector<8x32xf32>
    %102 = math.exp %101 : vector<8x32xf32>
    %cst_54 = arith.constant 1.000000e+00 : f32
    %103 = vector.broadcast %cst_54 : f32 to vector<8x32xf32>
    %104 = arith.addf %103, %102 : vector<8x32xf32>
    %105 = arith.divf %103, %104 : vector<8x32xf32>
    %106 = arith.mulf %100, %105 : vector<8x32xf32>
    %c0_55 = arith.constant 0 : index
    %c0_56 = arith.constant 0 : index
    %c0_57 = arith.constant 0 : index
    %107 = vector.load %arg19[%c0_55, %c0_56, %c0_57] : memref<2x32x4xf32, #tpu.memory_space<vmem>>, vector<1x32x4xf32>
    %108 = vector.shape_cast %107 : vector<1x32x4xf32> to vector<32x4xf32>
    %cst_58 = arith.constant dense<0.000000e+00> : vector<8x4xf32>
    %109 = tpu.matmul %106, %108, %cst_58 {dimension_numbers = #tpu.dot_dimension_numbers<[1], [0], [0], [1], [0, 0, 1, 1], [], []>} : vector<8x32xf32>, vector<32x4xf32>, vector<8x4xf32> -> vector<8x4xf32>
    %c0_59 = arith.constant 0 : index
    %c0_60 = arith.constant 0 : index
    %c0_61 = arith.constant 0 : index
    %110 = vector.load %arg20[%c0_59, %c0_60, %c0_61] : memref<1x32x64xf32, #tpu.memory_space<vmem>>, vector<1x32x64xf32>
    %111 = vector.shape_cast %110 : vector<1x32x64xf32> to vector<32x64xf32>
    %cst_62 = arith.constant dense<0.000000e+00> : vector<24x64xf32>
    %112 = tpu.matmul %55, %111, %cst_62 {dimension_numbers = #tpu.dot_dimension_numbers<[1], [0], [0], [1], [0, 0, 1, 1], [], []>} : vector<24x32xf32>, vector<32x64xf32>, vector<24x64xf32> -> vector<24x64xf32>
    %c0_63 = arith.constant 0 : index
    %c0_64 = arith.constant 0 : index
    %c0_65 = arith.constant 0 : index
    %113 = vector.load %arg21[%c0_63, %c0_64, %c0_65] : memref<1x1x64xf32, #tpu.memory_space<vmem>>, vector<1x1x64xf32>
    %114 = vector.shape_cast %113 : vector<1x1x64xf32> to vector<1x64xf32>
    %115 = vector.broadcast %114 : vector<1x64xf32> to vector<24x64xf32>
    %116 = arith.addf %112, %115 : vector<24x64xf32>
    %117 = arith.negf %116 : vector<24x64xf32>
    %118 = math.exp %117 : vector<24x64xf32>
    %cst_66 = arith.constant 1.000000e+00 : f32
    %119 = vector.broadcast %cst_66 : f32 to vector<24x64xf32>
    %120 = arith.addf %119, %118 : vector<24x64xf32>
    %121 = arith.divf %119, %120 : vector<24x64xf32>
    %122 = arith.mulf %116, %121 : vector<24x64xf32>
    %123 = vector.extract_strided_slice %122 {offsets = [0, 0], sizes = [24, 32], strides = [1, 1]} : vector<24x64xf32> to vector<24x32xf32>
    %124 = vector.extract_strided_slice %122 {offsets = [0, 32], sizes = [24, 32], strides = [1, 1]} : vector<24x64xf32> to vector<24x32xf32>
    %c0_67 = arith.constant 0 : index
    %c0_68 = arith.constant 0 : index
    %c0_69 = arith.constant 0 : index
    %125 = vector.load %arg22[%c0_67, %c0_68, %c0_69] : memref<1x6x32xf32, #tpu.memory_space<vmem>>, vector<1x6x32xf32>
    %126 = vector.shape_cast %125 : vector<1x6x32xf32> to vector<6x32xf32>
    %cst_70 = arith.constant dense<0.000000e+00> : vector<24x32xf32>
    %127 = tpu.matmul %0, %126, %cst_70 {dimension_numbers = #tpu.dot_dimension_numbers<[1], [0], [0], [1], [0, 0, 1, 1], [], []>} : vector<24x6xf32>, vector<6x32xf32>, vector<24x32xf32> -> vector<24x32xf32>
    %128 = arith.mulf %124, %127 : vector<24x32xf32>
    %c0_71 = arith.constant 0 : index
    %c0_72 = arith.constant 0 : index
    %c0_73 = arith.constant 0 : index
    %129 = vector.load %arg23[%c0_71, %c0_72, %c0_73] : memref<1x32x16xf32, #tpu.memory_space<vmem>>, vector<1x32x16xf32>
    %130 = vector.shape_cast %129 : vector<1x32x16xf32> to vector<32x16xf32>
    %cst_74 = arith.constant dense<0.000000e+00> : vector<24x16xf32>
    %131 = tpu.matmul %128, %130, %cst_74 {dimension_numbers = #tpu.dot_dimension_numbers<[1], [0], [0], [1], [0, 0, 1, 1], [], []>} : vector<24x32xf32>, vector<32x16xf32>, vector<24x16xf32> -> vector<24x16xf32>
    %132 = arith.negf %131 : vector<24x16xf32>
    %133 = math.exp %132 : vector<24x16xf32>
    %cst_75 = arith.constant 1.000000e+00 : f32
    %134 = vector.broadcast %cst_75 : f32 to vector<24x16xf32>
    %135 = arith.addf %134, %133 : vector<24x16xf32>
    %136 = arith.divf %134, %135 : vector<24x16xf32>
    %137 = arith.mulf %131, %136 : vector<24x16xf32>
    %c0_76 = arith.constant 0 : index
    %c0_77 = arith.constant 0 : index
    %c0_78 = arith.constant 0 : index
    %138 = vector.load %arg24[%c0_76, %c0_77, %c0_78] : memref<1x18x16xf32, #tpu.memory_space<vmem>>, vector<1x18x16xf32>
    %139 = vector.shape_cast %138 : vector<1x18x16xf32> to vector<18x16xf32>
    %cst_79 = arith.constant dense<0.000000e+00> : vector<48x16xf32>
    %140 = tpu.matmul %1, %139, %cst_79 {dimension_numbers = #tpu.dot_dimension_numbers<[1], [0], [0], [1], [0, 0, 1, 1], [], []>} : vector<48x18xf32>, vector<18x16xf32>, vector<48x16xf32> -> vector<48x16xf32>
    %cst_80 = arith.constant dense<0.000000e+00> : vector<48x16xf32>
    %141 = tpu.matmul %13, %137, %cst_80 {dimension_numbers = #tpu.dot_dimension_numbers<[1], [0], [0], [1], [0, 0, 1, 1], [], []>} : vector<48x24xf32>, vector<24x16xf32>, vector<48x16xf32> -> vector<48x16xf32>
    %142 = arith.mulf %141, %140 : vector<48x16xf32>
    %cst_81 = arith.constant dense<0.000000e+00> : vector<24x16xf32>
    %143 = tpu.matmul %19, %142, %cst_81 {dimension_numbers = #tpu.dot_dimension_numbers<[1], [0], [0], [1], [0, 0, 1, 1], [], []>} : vector<24x48xf32>, vector<48x16xf32>, vector<24x16xf32> -> vector<24x16xf32>
    %c0_82 = arith.constant 0 : index
    %c0_83 = arith.constant 0 : index
    %c0_84 = arith.constant 0 : index
    %144 = vector.load %arg25[%c0_82, %c0_83, %c0_84] : memref<1x16x32xf32, #tpu.memory_space<vmem>>, vector<1x16x32xf32>
    %145 = vector.shape_cast %144 : vector<1x16x32xf32> to vector<16x32xf32>
    %cst_85 = arith.constant dense<0.000000e+00> : vector<24x32xf32>
    %146 = tpu.matmul %143, %145, %cst_85 {dimension_numbers = #tpu.dot_dimension_numbers<[1], [0], [0], [1], [0, 0, 1, 1], [], []>} : vector<24x16xf32>, vector<16x32xf32>, vector<24x32xf32> -> vector<24x32xf32>
    %147 = arith.negf %146 : vector<24x32xf32>
    %148 = math.exp %147 : vector<24x32xf32>
    %cst_86 = arith.constant 1.000000e+00 : f32
    %149 = vector.broadcast %cst_86 : f32 to vector<24x32xf32>
    %150 = arith.addf %149, %148 : vector<24x32xf32>
    %151 = arith.divf %149, %150 : vector<24x32xf32>
    %152 = arith.mulf %146, %151 : vector<24x32xf32>
    %153 = arith.addf %123, %152 : vector<24x32xf32>
    %c0_87 = arith.constant 0 : index
    %c0_88 = arith.constant 0 : index
    %c0_89 = arith.constant 0 : index
    %c0_90 = arith.constant 0 : index
    %154 = vector.load %arg26[%c0_87, %c0_88, %c0_89, %c0_90] : memref<1x2x32x32xf32, #tpu.memory_space<vmem>>, vector<1x2x32x32xf32>
    %155 = vector.shape_cast %154 : vector<1x2x32x32xf32> to vector<2x32x32xf32>
    %c0_91 = arith.constant 0 : index
    %c0_92 = arith.constant 0 : index
    %c0_93 = arith.constant 0 : index
    %c0_94 = arith.constant 0 : index
    %156 = vector.load %arg27[%c0_91, %c0_92, %c0_93, %c0_94] : memref<1x2x1x32xf32, #tpu.memory_space<vmem>>, vector<1x2x1x32xf32>
    %157 = vector.shape_cast %156 : vector<1x2x1x32xf32> to vector<2x1x32xf32>
    %158 = vector.extract_strided_slice %155 {offsets = [0, 0, 0], sizes = [1, 32, 32], strides = [1, 1, 1]} : vector<2x32x32xf32> to vector<1x32x32xf32>
    %159 = vector.shape_cast %158 : vector<1x32x32xf32> to vector<32x32xf32>
    %cst_95 = arith.constant dense<0.000000e+00> : vector<24x32xf32>
    %160 = tpu.matmul %153, %159, %cst_95 {dimension_numbers = #tpu.dot_dimension_numbers<[1], [0], [0], [1], [0, 0, 1, 1], [], []>} : vector<24x32xf32>, vector<32x32xf32>, vector<24x32xf32> -> vector<24x32xf32>
    %161 = vector.extract_strided_slice %157 {offsets = [0, 0, 0], sizes = [1, 1, 32], strides = [1, 1, 1]} : vector<2x1x32xf32> to vector<1x1x32xf32>
    %162 = vector.shape_cast %161 : vector<1x1x32xf32> to vector<1x32xf32>
    %163 = vector.broadcast %162 : vector<1x32xf32> to vector<24x32xf32>
    %164 = arith.addf %160, %163 : vector<24x32xf32>
    %165 = arith.negf %164 : vector<24x32xf32>
    %166 = math.exp %165 : vector<24x32xf32>
    %cst_96 = arith.constant 1.000000e+00 : f32
    %167 = vector.broadcast %cst_96 : f32 to vector<24x32xf32>
    %168 = arith.addf %167, %166 : vector<24x32xf32>
    %169 = arith.divf %167, %168 : vector<24x32xf32>
    %170 = arith.mulf %164, %169 : vector<24x32xf32>
    %171 = vector.extract_strided_slice %155 {offsets = [1, 0, 0], sizes = [1, 32, 32], strides = [1, 1, 1]} : vector<2x32x32xf32> to vector<1x32x32xf32>
    %172 = vector.shape_cast %171 : vector<1x32x32xf32> to vector<32x32xf32>
    %cst_97 = arith.constant dense<0.000000e+00> : vector<24x32xf32>
    %173 = tpu.matmul %170, %172, %cst_97 {dimension_numbers = #tpu.dot_dimension_numbers<[1], [0], [0], [1], [0, 0, 1, 1], [], []>} : vector<24x32xf32>, vector<32x32xf32>, vector<24x32xf32> -> vector<24x32xf32>
    %174 = vector.extract_strided_slice %157 {offsets = [1, 0, 0], sizes = [1, 1, 32], strides = [1, 1, 1]} : vector<2x1x32xf32> to vector<1x1x32xf32>
    %175 = vector.shape_cast %174 : vector<1x1x32xf32> to vector<1x32xf32>
    %176 = vector.broadcast %175 : vector<1x32xf32> to vector<24x32xf32>
    %177 = arith.addf %173, %176 : vector<24x32xf32>
    %178 = arith.negf %177 : vector<24x32xf32>
    %179 = math.exp %178 : vector<24x32xf32>
    %cst_98 = arith.constant 1.000000e+00 : f32
    %180 = vector.broadcast %cst_98 : f32 to vector<24x32xf32>
    %181 = arith.addf %180, %179 : vector<24x32xf32>
    %182 = arith.divf %180, %181 : vector<24x32xf32>
    %183 = arith.mulf %177, %182 : vector<24x32xf32>
    %184 = arith.addf %153, %183 : vector<24x32xf32>
    %c0_99 = arith.constant 0 : index
    %c0_100 = arith.constant 0 : index
    %c0_101 = arith.constant 0 : index
    %185 = vector.load %arg28[%c0_99, %c0_100, %c0_101] : memref<1x32x32xf32, #tpu.memory_space<vmem>>, vector<1x32x32xf32>
    %186 = vector.shape_cast %185 : vector<1x32x32xf32> to vector<32x32xf32>
    %cst_102 = arith.constant dense<0.000000e+00> : vector<24x32xf32>
    %187 = tpu.matmul %184, %186, %cst_102 {dimension_numbers = #tpu.dot_dimension_numbers<[1], [0], [0], [1], [0, 0, 1, 1], [], []>} : vector<24x32xf32>, vector<32x32xf32>, vector<24x32xf32> -> vector<24x32xf32>
    %c0_103 = arith.constant 0 : index
    %c0_104 = arith.constant 0 : index
    %c0_105 = arith.constant 0 : index
    %188 = vector.load %arg29[%c0_103, %c0_104, %c0_105] : memref<1x1x32xf32, #tpu.memory_space<vmem>>, vector<1x1x32xf32>
    %189 = vector.shape_cast %188 : vector<1x1x32xf32> to vector<1x32xf32>
    %190 = vector.broadcast %189 : vector<1x32xf32> to vector<24x32xf32>
    %191 = arith.addf %187, %190 : vector<24x32xf32>
    %192 = arith.negf %191 : vector<24x32xf32>
    %193 = math.exp %192 : vector<24x32xf32>
    %cst_106 = arith.constant 1.000000e+00 : f32
    %194 = vector.broadcast %cst_106 : f32 to vector<24x32xf32>
    %195 = arith.addf %194, %193 : vector<24x32xf32>
    %196 = arith.divf %194, %195 : vector<24x32xf32>
    %197 = arith.mulf %191, %196 : vector<24x32xf32>
    %198 = arith.addf %197, %55 : vector<24x32xf32>
    %c0_107 = arith.constant 0 : index
    %c0_108 = arith.constant 0 : index
    %c0_109 = arith.constant 0 : index
    %c0_110 = arith.constant 0 : index
    %199 = vector.load %arg30[%c0_107, %c0_108, %c0_109, %c0_110] : memref<1x4x32x32xf32, #tpu.memory_space<vmem>>, vector<1x4x32x32xf32>
    %200 = vector.shape_cast %199 : vector<1x4x32x32xf32> to vector<4x32x32xf32>
    %c0_111 = arith.constant 0 : index
    %c0_112 = arith.constant 0 : index
    %c0_113 = arith.constant 0 : index
    %c0_114 = arith.constant 0 : index
    %201 = vector.load %arg31[%c0_111, %c0_112, %c0_113, %c0_114] : memref<1x4x1x32xf32, #tpu.memory_space<vmem>>, vector<1x4x1x32xf32>
    %202 = vector.shape_cast %201 : vector<1x4x1x32xf32> to vector<4x1x32xf32>
    %203 = vector.extract_strided_slice %200 {offsets = [0, 0, 0], sizes = [1, 32, 32], strides = [1, 1, 1]} : vector<4x32x32xf32> to vector<1x32x32xf32>
    %204 = vector.shape_cast %203 : vector<1x32x32xf32> to vector<32x32xf32>
    %cst_115 = arith.constant dense<0.000000e+00> : vector<24x32xf32>
    %205 = tpu.matmul %198, %204, %cst_115 {dimension_numbers = #tpu.dot_dimension_numbers<[1], [0], [0], [1], [0, 0, 1, 1], [], []>} : vector<24x32xf32>, vector<32x32xf32>, vector<24x32xf32> -> vector<24x32xf32>
    %206 = vector.extract_strided_slice %202 {offsets = [0, 0, 0], sizes = [1, 1, 32], strides = [1, 1, 1]} : vector<4x1x32xf32> to vector<1x1x32xf32>
    %207 = vector.shape_cast %206 : vector<1x1x32xf32> to vector<1x32xf32>
    %208 = vector.broadcast %207 : vector<1x32xf32> to vector<24x32xf32>
    %209 = arith.addf %205, %208 : vector<24x32xf32>
    %210 = arith.negf %209 : vector<24x32xf32>
    %211 = math.exp %210 : vector<24x32xf32>
    %cst_116 = arith.constant 1.000000e+00 : f32
    %212 = vector.broadcast %cst_116 : f32 to vector<24x32xf32>
    %213 = arith.addf %212, %211 : vector<24x32xf32>
    %214 = arith.divf %212, %213 : vector<24x32xf32>
    %215 = arith.mulf %209, %214 : vector<24x32xf32>
    %216 = vector.extract_strided_slice %200 {offsets = [1, 0, 0], sizes = [1, 32, 32], strides = [1, 1, 1]} : vector<4x32x32xf32> to vector<1x32x32xf32>
    %217 = vector.shape_cast %216 : vector<1x32x32xf32> to vector<32x32xf32>
    %cst_117 = arith.constant dense<0.000000e+00> : vector<24x32xf32>
    %218 = tpu.matmul %215, %217, %cst_117 {dimension_numbers = #tpu.dot_dimension_numbers<[1], [0], [0], [1], [0, 0, 1, 1], [], []>} : vector<24x32xf32>, vector<32x32xf32>, vector<24x32xf32> -> vector<24x32xf32>
    %219 = vector.extract_strided_slice %202 {offsets = [1, 0, 0], sizes = [1, 1, 32], strides = [1, 1, 1]} : vector<4x1x32xf32> to vector<1x1x32xf32>
    %220 = vector.shape_cast %219 : vector<1x1x32xf32> to vector<1x32xf32>
    %221 = vector.broadcast %220 : vector<1x32xf32> to vector<24x32xf32>
    %222 = arith.addf %218, %221 : vector<24x32xf32>
    %223 = arith.negf %222 : vector<24x32xf32>
    %224 = math.exp %223 : vector<24x32xf32>
    %cst_118 = arith.constant 1.000000e+00 : f32
    %225 = vector.broadcast %cst_118 : f32 to vector<24x32xf32>
    %226 = arith.addf %225, %224 : vector<24x32xf32>
    %227 = arith.divf %225, %226 : vector<24x32xf32>
    %228 = arith.mulf %222, %227 : vector<24x32xf32>
    %229 = arith.addf %198, %228 : vector<24x32xf32>
    %230 = vector.extract_strided_slice %200 {offsets = [2, 0, 0], sizes = [1, 32, 32], strides = [1, 1, 1]} : vector<4x32x32xf32> to vector<1x32x32xf32>
    %231 = vector.shape_cast %230 : vector<1x32x32xf32> to vector<32x32xf32>
    %cst_119 = arith.constant dense<0.000000e+00> : vector<24x32xf32>
    %232 = tpu.matmul %229, %231, %cst_119 {dimension_numbers = #tpu.dot_dimension_numbers<[1], [0], [0], [1], [0, 0, 1, 1], [], []>} : vector<24x32xf32>, vector<32x32xf32>, vector<24x32xf32> -> vector<24x32xf32>
    %233 = vector.extract_strided_slice %202 {offsets = [2, 0, 0], sizes = [1, 1, 32], strides = [1, 1, 1]} : vector<4x1x32xf32> to vector<1x1x32xf32>
    %234 = vector.shape_cast %233 : vector<1x1x32xf32> to vector<1x32xf32>
    %235 = vector.broadcast %234 : vector<1x32xf32> to vector<24x32xf32>
    %236 = arith.addf %232, %235 : vector<24x32xf32>
    %237 = arith.negf %236 : vector<24x32xf32>
    %238 = math.exp %237 : vector<24x32xf32>
    %cst_120 = arith.constant 1.000000e+00 : f32
    %239 = vector.broadcast %cst_120 : f32 to vector<24x32xf32>
    %240 = arith.addf %239, %238 : vector<24x32xf32>
    %241 = arith.divf %239, %240 : vector<24x32xf32>
    %242 = arith.mulf %236, %241 : vector<24x32xf32>
    %243 = vector.extract_strided_slice %200 {offsets = [3, 0, 0], sizes = [1, 32, 32], strides = [1, 1, 1]} : vector<4x32x32xf32> to vector<1x32x32xf32>
    %244 = vector.shape_cast %243 : vector<1x32x32xf32> to vector<32x32xf32>
    %cst_121 = arith.constant dense<0.000000e+00> : vector<24x32xf32>
    %245 = tpu.matmul %242, %244, %cst_121 {dimension_numbers = #tpu.dot_dimension_numbers<[1], [0], [0], [1], [0, 0, 1, 1], [], []>} : vector<24x32xf32>, vector<32x32xf32>, vector<24x32xf32> -> vector<24x32xf32>
    %246 = vector.extract_strided_slice %202 {offsets = [3, 0, 0], sizes = [1, 1, 32], strides = [1, 1, 1]} : vector<4x1x32xf32> to vector<1x1x32xf32>
    %247 = vector.shape_cast %246 : vector<1x1x32xf32> to vector<1x32xf32>
    %248 = vector.broadcast %247 : vector<1x32xf32> to vector<24x32xf32>
    %249 = arith.addf %245, %248 : vector<24x32xf32>
    %250 = arith.negf %249 : vector<24x32xf32>
    %251 = math.exp %250 : vector<24x32xf32>
    %cst_122 = arith.constant 1.000000e+00 : f32
    %252 = vector.broadcast %cst_122 : f32 to vector<24x32xf32>
    %253 = arith.addf %252, %251 : vector<24x32xf32>
    %254 = arith.divf %252, %253 : vector<24x32xf32>
    %255 = arith.mulf %249, %254 : vector<24x32xf32>
    %256 = arith.addf %229, %255 : vector<24x32xf32>
    %c1 = arith.constant 1 : index
    %c0_123 = arith.constant 0 : index
    %c0_124 = arith.constant 0 : index
    %257 = vector.load %arg15[%c1, %c0_123, %c0_124] : memref<2x6x32xf32, #tpu.memory_space<vmem>>, vector<1x6x32xf32>
    %258 = vector.shape_cast %257 : vector<1x6x32xf32> to vector<6x32xf32>
    %cst_125 = arith.constant dense<0.000000e+00> : vector<24x32xf32>
    %259 = tpu.matmul %0, %258, %cst_125 {dimension_numbers = #tpu.dot_dimension_numbers<[1], [0], [0], [1], [0, 0, 1, 1], [], []>} : vector<24x6xf32>, vector<6x32xf32>, vector<24x32xf32> -> vector<24x32xf32>
    %260 = arith.mulf %259, %256 : vector<24x32xf32>
    %cst_126 = arith.constant dense<0.000000e+00> : vector<8x32xf32>
    %261 = tpu.matmul %7, %260, %cst_126 {dimension_numbers = #tpu.dot_dimension_numbers<[1], [0], [0], [1], [0, 0, 1, 1], [], []>} : vector<8x24xf32>, vector<24x32xf32>, vector<8x32xf32> -> vector<8x32xf32>
    %c1_127 = arith.constant 1 : index
    %c0_128 = arith.constant 0 : index
    %c0_129 = arith.constant 0 : index
    %262 = vector.load %arg16[%c1_127, %c0_128, %c0_129] : memref<2x32x32xf32, #tpu.memory_space<vmem>>, vector<1x32x32xf32>
    %263 = vector.shape_cast %262 : vector<1x32x32xf32> to vector<32x32xf32>
    %cst_130 = arith.constant dense<0.000000e+00> : vector<8x32xf32>
    %264 = tpu.matmul %261, %263, %cst_130 {dimension_numbers = #tpu.dot_dimension_numbers<[1], [0], [0], [1], [0, 0, 1, 1], [], []>} : vector<8x32xf32>, vector<32x32xf32>, vector<8x32xf32> -> vector<8x32xf32>
    %c1_131 = arith.constant 1 : index
    %c0_132 = arith.constant 0 : index
    %c0_133 = arith.constant 0 : index
    %c0_134 = arith.constant 0 : index
    %265 = vector.load %arg17[%c1_131, %c0_132, %c0_133, %c0_134] : memref<2x3x32x32xf32, #tpu.memory_space<vmem>>, vector<1x3x32x32xf32>
    %266 = vector.shape_cast %265 : vector<1x3x32x32xf32> to vector<3x32x32xf32>
    %c1_135 = arith.constant 1 : index
    %c0_136 = arith.constant 0 : index
    %c0_137 = arith.constant 0 : index
    %c0_138 = arith.constant 0 : index
    %267 = vector.load %arg18[%c1_135, %c0_136, %c0_137, %c0_138] : memref<2x3x1x32xf32, #tpu.memory_space<vmem>>, vector<1x3x1x32xf32>
    %268 = vector.shape_cast %267 : vector<1x3x1x32xf32> to vector<3x1x32xf32>
    %269 = vector.extract_strided_slice %266 {offsets = [0, 0, 0], sizes = [1, 32, 32], strides = [1, 1, 1]} : vector<3x32x32xf32> to vector<1x32x32xf32>
    %270 = vector.shape_cast %269 : vector<1x32x32xf32> to vector<32x32xf32>
    %cst_139 = arith.constant dense<0.000000e+00> : vector<8x32xf32>
    %271 = tpu.matmul %264, %270, %cst_139 {dimension_numbers = #tpu.dot_dimension_numbers<[1], [0], [0], [1], [0, 0, 1, 1], [], []>} : vector<8x32xf32>, vector<32x32xf32>, vector<8x32xf32> -> vector<8x32xf32>
    %272 = vector.extract_strided_slice %268 {offsets = [0, 0, 0], sizes = [1, 1, 32], strides = [1, 1, 1]} : vector<3x1x32xf32> to vector<1x1x32xf32>
    %273 = vector.shape_cast %272 : vector<1x1x32xf32> to vector<1x32xf32>
    %274 = vector.broadcast %273 : vector<1x32xf32> to vector<8x32xf32>
    %275 = arith.addf %271, %274 : vector<8x32xf32>
    %276 = arith.negf %275 : vector<8x32xf32>
    %277 = math.exp %276 : vector<8x32xf32>
    %cst_140 = arith.constant 1.000000e+00 : f32
    %278 = vector.broadcast %cst_140 : f32 to vector<8x32xf32>
    %279 = arith.addf %278, %277 : vector<8x32xf32>
    %280 = arith.divf %278, %279 : vector<8x32xf32>
    %281 = arith.mulf %275, %280 : vector<8x32xf32>
    %282 = vector.extract_strided_slice %266 {offsets = [1, 0, 0], sizes = [1, 32, 32], strides = [1, 1, 1]} : vector<3x32x32xf32> to vector<1x32x32xf32>
    %283 = vector.shape_cast %282 : vector<1x32x32xf32> to vector<32x32xf32>
    %cst_141 = arith.constant dense<0.000000e+00> : vector<8x32xf32>
    %284 = tpu.matmul %281, %283, %cst_141 {dimension_numbers = #tpu.dot_dimension_numbers<[1], [0], [0], [1], [0, 0, 1, 1], [], []>} : vector<8x32xf32>, vector<32x32xf32>, vector<8x32xf32> -> vector<8x32xf32>
    %285 = vector.extract_strided_slice %268 {offsets = [1, 0, 0], sizes = [1, 1, 32], strides = [1, 1, 1]} : vector<3x1x32xf32> to vector<1x1x32xf32>
    %286 = vector.shape_cast %285 : vector<1x1x32xf32> to vector<1x32xf32>
    %287 = vector.broadcast %286 : vector<1x32xf32> to vector<8x32xf32>
    %288 = arith.addf %284, %287 : vector<8x32xf32>
    %289 = arith.negf %288 : vector<8x32xf32>
    %290 = math.exp %289 : vector<8x32xf32>
    %cst_142 = arith.constant 1.000000e+00 : f32
    %291 = vector.broadcast %cst_142 : f32 to vector<8x32xf32>
    %292 = arith.addf %291, %290 : vector<8x32xf32>
    %293 = arith.divf %291, %292 : vector<8x32xf32>
    %294 = arith.mulf %288, %293 : vector<8x32xf32>
    %295 = vector.extract_strided_slice %266 {offsets = [2, 0, 0], sizes = [1, 32, 32], strides = [1, 1, 1]} : vector<3x32x32xf32> to vector<1x32x32xf32>
    %296 = vector.shape_cast %295 : vector<1x32x32xf32> to vector<32x32xf32>
    %cst_143 = arith.constant dense<0.000000e+00> : vector<8x32xf32>
    %297 = tpu.matmul %294, %296, %cst_143 {dimension_numbers = #tpu.dot_dimension_numbers<[1], [0], [0], [1], [0, 0, 1, 1], [], []>} : vector<8x32xf32>, vector<32x32xf32>, vector<8x32xf32> -> vector<8x32xf32>
    %298 = vector.extract_strided_slice %268 {offsets = [2, 0, 0], sizes = [1, 1, 32], strides = [1, 1, 1]} : vector<3x1x32xf32> to vector<1x1x32xf32>
    %299 = vector.shape_cast %298 : vector<1x1x32xf32> to vector<1x32xf32>
    %300 = vector.broadcast %299 : vector<1x32xf32> to vector<8x32xf32>
    %301 = arith.addf %297, %300 : vector<8x32xf32>
    %302 = arith.negf %301 : vector<8x32xf32>
    %303 = math.exp %302 : vector<8x32xf32>
    %cst_144 = arith.constant 1.000000e+00 : f32
    %304 = vector.broadcast %cst_144 : f32 to vector<8x32xf32>
    %305 = arith.addf %304, %303 : vector<8x32xf32>
    %306 = arith.divf %304, %305 : vector<8x32xf32>
    %307 = arith.mulf %301, %306 : vector<8x32xf32>
    %c1_145 = arith.constant 1 : index
    %c0_146 = arith.constant 0 : index
    %c0_147 = arith.constant 0 : index
    %308 = vector.load %arg19[%c1_145, %c0_146, %c0_147] : memref<2x32x4xf32, #tpu.memory_space<vmem>>, vector<1x32x4xf32>
    %309 = vector.shape_cast %308 : vector<1x32x4xf32> to vector<32x4xf32>
    %cst_148 = arith.constant dense<0.000000e+00> : vector<8x4xf32>
    %310 = tpu.matmul %307, %309, %cst_148 {dimension_numbers = #tpu.dot_dimension_numbers<[1], [0], [0], [1], [0, 0, 1, 1], [], []>} : vector<8x32xf32>, vector<32x4xf32>, vector<8x4xf32> -> vector<8x4xf32>
    %311 = arith.addf %109, %310 : vector<8x4xf32>
    %cst_149 = arith.constant dense<0.000000e+00> : vector<2x4xf32>
    %312 = tpu.matmul %25, %311, %cst_149 {dimension_numbers = #tpu.dot_dimension_numbers<[1], [0], [0], [1], [0, 0, 1, 1], [], []>} : vector<2x8xf32>, vector<8x4xf32>, vector<2x4xf32> -> vector<2x4xf32>
    %c0_150 = arith.constant 0 : index
    %c0_151 = arith.constant 0 : index
    %313 = vector.load %arg32[%c0_150, %c0_151] : memref<2x4xf32, #tpu.memory_space<vmem>>, vector<2x4xf32>
    tpu.vector_store %arg32[%c0_150, %c0_151], %312 {strides = array<i32>} : memref<2x4xf32, #tpu.memory_space<vmem>>, vector<2x4xf32>,
    return
  }
  func.func @transform_0(%arg0: i32) -> (i32, i32) {
    %c0_i32 = arith.constant 0 : i32
    %c0_i32_0 = arith.constant 0 : i32
    %c0_i32_1 = arith.constant 0 : i32
    return %c0_i32, %c0_i32_0 : i32, i32
  }
  func.func @transform_1(%arg0: i32) -> (i32, i32) {
    %c0_i32 = arith.constant 0 : i32
    %c0_i32_0 = arith.constant 0 : i32
    %c0_i32_1 = arith.constant 0 : i32
    return %c0_i32, %c0_i32_0 : i32, i32
  }
  func.func @transform_2(%arg0: i32) -> (i32, i32) {
    %c0_i32 = arith.constant 0 : i32
    %c0_i32_0 = arith.constant 0 : i32
    %c0_i32_1 = arith.constant 0 : i32
    return %c0_i32, %c0_i32_0 : i32, i32
  }
  func.func @transform_3(%arg0: i32) -> (i32, i32) {
    %c0_i32 = arith.constant 0 : i32
    %c0_i32_0 = arith.constant 0 : i32
    %c0_i32_1 = arith.constant 0 : i32
    return %c0_i32, %c0_i32_0 : i32, i32
  }
  func.func @transform_4(%arg0: i32) -> (i32, i32) {
    %c0_i32 = arith.constant 0 : i32
    %c0_i32_0 = arith.constant 0 : i32
    %c0_i32_1 = arith.constant 0 : i32
    return %c0_i32, %c0_i32_0 : i32, i32
  }
  func.func @transform_5(%arg0: i32) -> (i32, i32) {
    %c0_i32 = arith.constant 0 : i32
    %c0_i32_0 = arith.constant 0 : i32
    %c0_i32_1 = arith.constant 0 : i32
    return %c0_i32, %c0_i32_0 : i32, i32
  }
  func.func @transform_6(%arg0: i32) -> (i32, i32) {
    %c0_i32 = arith.constant 0 : i32
    %c0_i32_0 = arith.constant 0 : i32
    %c0_i32_1 = arith.constant 0 : i32
    return %c0_i32, %c0_i32_0 : i32, i32
  }
  func.func @transform_7(%arg0: i32) -> (i32, i32) {
    %c0_i32 = arith.constant 0 : i32
    %c0_i32_0 = arith.constant 0 : i32
    %c0_i32_1 = arith.constant 0 : i32
    return %c0_i32, %c0_i32_0 : i32, i32
  }
  func.func @transform_8(%arg0: i32) -> (i32, i32) {
    %c0_i32 = arith.constant 0 : i32
    %c0_i32_0 = arith.constant 0 : i32
    %c0_i32_1 = arith.constant 0 : i32
    return %c0_i32, %c0_i32_0 : i32, i32
  }
  func.func @transform_9(%arg0: i32) -> (i32, i32) {
    %c0_i32 = arith.constant 0 : i32
    %c0_i32_0 = arith.constant 0 : i32
    %c0_i32_1 = arith.constant 0 : i32
    return %c0_i32, %c0_i32_0 : i32, i32
  }
  func.func @transform_10(%arg0: i32) -> (i32, i32) {
    %c0_i32 = arith.constant 0 : i32
    %c0_i32_0 = arith.constant 0 : i32
    %c0_i32_1 = arith.constant 0 : i32
    return %c0_i32, %c0_i32_0 : i32, i32
  }
  func.func @transform_11(%arg0: i32) -> (i32, i32) {
    %c0_i32 = arith.constant 0 : i32
    %c0_i32_0 = arith.constant 0 : i32
    %c0_i32_1 = arith.constant 0 : i32
    return %c0_i32, %c0_i32_0 : i32, i32
  }
  func.func @transform_12(%arg0: i32) -> (i32, i32) {
    %c0_i32 = arith.constant 0 : i32
    %c0_i32_0 = arith.constant 0 : i32
    %c0_i32_1 = arith.constant 0 : i32
    return %c0_i32, %c0_i32_0 : i32, i32
  }
  func.func @transform_13(%arg0: i32) -> (i32, i32) {
    %c0_i32 = arith.constant 0 : i32
    %c0_i32_0 = arith.constant 0 : i32
    %c0_i32_1 = arith.constant 0 : i32
    return %c0_i32, %c0_i32_0 : i32, i32
  }
  func.func @transform_14(%arg0: i32) -> (i32, i32, i32) {
    %c0_i32 = arith.constant 0 : i32
    %c0_i32_0 = arith.constant 0 : i32
    %c0_i32_1 = arith.constant 0 : i32
    %c0_i32_2 = arith.constant 0 : i32
    return %c0_i32, %c0_i32_0, %c0_i32_1 : i32, i32, i32
  }
  func.func @transform_15(%arg0: i32) -> (i32, i32, i32) {
    %c0_i32 = arith.constant 0 : i32
    %c0_i32_0 = arith.constant 0 : i32
    %c0_i32_1 = arith.constant 0 : i32
    %c0_i32_2 = arith.constant 0 : i32
    return %c0_i32, %c0_i32_0, %c0_i32_1 : i32, i32, i32
  }
  func.func @transform_16(%arg0: i32) -> (i32, i32, i32, i32) {
    %c0_i32 = arith.constant 0 : i32
    %c0_i32_0 = arith.constant 0 : i32
    %c0_i32_1 = arith.constant 0 : i32
    %c0_i32_2 = arith.constant 0 : i32
    %c0_i32_3 = arith.constant 0 : i32
    return %c0_i32, %c0_i32_0, %c0_i32_1, %c0_i32_2 : i32, i32, i32, i32
  }
  func.func @transform_17(%arg0: i32) -> (i32, i32, i32, i32) {
    %c0_i32 = arith.constant 0 : i32
    %c0_i32_0 = arith.constant 0 : i32
    %c0_i32_1 = arith.constant 0 : i32
    %c0_i32_2 = arith.constant 0 : i32
    %c0_i32_3 = arith.constant 0 : i32
    return %c0_i32, %c0_i32_0, %c0_i32_1, %c0_i32_2 : i32, i32, i32, i32
  }
  func.func @transform_18(%arg0: i32) -> (i32, i32, i32) {
    %c0_i32 = arith.constant 0 : i32
    %c0_i32_0 = arith.constant 0 : i32
    %c0_i32_1 = arith.constant 0 : i32
    %c0_i32_2 = arith.constant 0 : i32
    return %c0_i32, %c0_i32_0, %c0_i32_1 : i32, i32, i32
  }
  func.func @transform_19(%arg0: i32) -> (i32, i32, i32) {
    %c0_i32 = arith.constant 0 : i32
    %c0_i32_0 = arith.constant 0 : i32
    %c0_i32_1 = arith.constant 0 : i32
    %c0_i32_2 = arith.constant 0 : i32
    return %c0_i32, %c0_i32_0, %c0_i32_1 : i32, i32, i32
  }
  func.func @transform_20(%arg0: i32) -> (i32, i32, i32) {
    %c0_i32 = arith.constant 0 : i32
    %c0_i32_0 = arith.constant 0 : i32
    %c0_i32_1 = arith.constant 0 : i32
    %c0_i32_2 = arith.constant 0 : i32
    return %c0_i32, %c0_i32_0, %c0_i32_1 : i32, i32, i32
  }
  func.func @transform_21(%arg0: i32) -> (i32, i32, i32) {
    %c0_i32 = arith.constant 0 : i32
    %c0_i32_0 = arith.constant 0 : i32
    %c0_i32_1 = arith.constant 0 : i32
    %c0_i32_2 = arith.constant 0 : i32
    return %c0_i32, %c0_i32_0, %c0_i32_1 : i32, i32, i32
  }
  func.func @transform_22(%arg0: i32) -> (i32, i32, i32) {
    %c0_i32 = arith.constant 0 : i32
    %c0_i32_0 = arith.constant 0 : i32
    %c0_i32_1 = arith.constant 0 : i32
    %c0_i32_2 = arith.constant 0 : i32
    return %c0_i32, %c0_i32_0, %c0_i32_1 : i32, i32, i32
  }
  func.func @transform_23(%arg0: i32) -> (i32, i32, i32) {
    %c0_i32 = arith.constant 0 : i32
    %c0_i32_0 = arith.constant 0 : i32
    %c0_i32_1 = arith.constant 0 : i32
    %c0_i32_2 = arith.constant 0 : i32
    return %c0_i32, %c0_i32_0, %c0_i32_1 : i32, i32, i32
  }
  func.func @transform_24(%arg0: i32) -> (i32, i32, i32) {
    %c0_i32 = arith.constant 0 : i32
    %c0_i32_0 = arith.constant 0 : i32
    %c0_i32_1 = arith.constant 0 : i32
    %c0_i32_2 = arith.constant 0 : i32
    return %c0_i32, %c0_i32_0, %c0_i32_1 : i32, i32, i32
  }
  func.func @transform_25(%arg0: i32) -> (i32, i32, i32, i32) {
    %c0_i32 = arith.constant 0 : i32
    %c0_i32_0 = arith.constant 0 : i32
    %c0_i32_1 = arith.constant 0 : i32
    %c0_i32_2 = arith.constant 0 : i32
    %c0_i32_3 = arith.constant 0 : i32
    return %c0_i32, %c0_i32_0, %c0_i32_1, %c0_i32_2 : i32, i32, i32, i32
  }
  func.func @transform_26(%arg0: i32) -> (i32, i32, i32, i32) {
    %c0_i32 = arith.constant 0 : i32
    %c0_i32_0 = arith.constant 0 : i32
    %c0_i32_1 = arith.constant 0 : i32
    %c0_i32_2 = arith.constant 0 : i32
    %c0_i32_3 = arith.constant 0 : i32
    return %c0_i32, %c0_i32_0, %c0_i32_1, %c0_i32_2 : i32, i32, i32, i32
  }
  func.func @transform_27(%arg0: i32) -> (i32, i32, i32) {
    %c0_i32 = arith.constant 0 : i32
    %c0_i32_0 = arith.constant 0 : i32
    %c0_i32_1 = arith.constant 0 : i32
    %c0_i32_2 = arith.constant 0 : i32
    return %c0_i32, %c0_i32_0, %c0_i32_1 : i32, i32, i32
  }
  func.func @transform_28(%arg0: i32) -> (i32, i32, i32) {
    %c0_i32 = arith.constant 0 : i32
    %c0_i32_0 = arith.constant 0 : i32
    %c0_i32_1 = arith.constant 0 : i32
    %c0_i32_2 = arith.constant 0 : i32
    return %c0_i32, %c0_i32_0, %c0_i32_1 : i32, i32, i32
  }
  func.func @transform_29(%arg0: i32) -> (i32, i32, i32, i32) {
    %c0_i32 = arith.constant 0 : i32
    %c0_i32_0 = arith.constant 0 : i32
    %c0_i32_1 = arith.constant 0 : i32
    %c0_i32_2 = arith.constant 0 : i32
    %c0_i32_3 = arith.constant 0 : i32
    return %c0_i32, %c0_i32_0, %c0_i32_1, %c0_i32_2 : i32, i32, i32, i32
  }
  func.func @transform_30(%arg0: i32) -> (i32, i32, i32, i32) {
    %c0_i32 = arith.constant 0 : i32
    %c0_i32_0 = arith.constant 0 : i32
    %c0_i32_1 = arith.constant 0 : i32
    %c0_i32_2 = arith.constant 0 : i32
    %c0_i32_3 = arith.constant 0 : i32
    return %c0_i32, %c0_i32_0, %c0_i32_1, %c0_i32_2 : i32, i32, i32, i32
  }
  func.func @transform_31(%arg0: i32) -> (i32, i32) {
    %c0_i32 = arith.constant 0 : i32
    %c0_i32_0 = arith.constant 0 : i32
    %c0_i32_1 = arith.constant 0 : i32
    return %c0_i32, %c0_i32_0 : i32, i32
  }
}

</mosaic_0001>

<llo_original>
// kernel: dimenet_forward_pallas.1
$region0: #{dimenet_forward_pallas.1}
  #allocation0 [shape = 'u32[]', space=smem, size = 0x4, offset = 0x4, fixed_abs, tag = 'smem constant byte address 0x4 - core index']
  #allocation1 [shape = 'u32[144,128]{1,0:T(1,128)}', space=vmem, size = 0x12000, scoped, tag = 'internal scratch']
  %s0 = inlined_call_operand.smem [shape: u32[32], index: -1, kind: input, shape index: {}]
  %s1 = sld [smem:[%s0]]
  %s2 = scalar_lea.smem %s0, 1
  %s3 = sld [smem:[%s2]]
  %s4 = scalar_lea.smem %s0, 2
  %s5 = sld [smem:[%s4]]
  %s6 = scalar_lea.smem %s0, 3
  %s7 = sld [smem:[%s6]]
  %s8 = scalar_lea.smem %s0, 4
  %s9 = sld [smem:[%s8]]
  %s10 = scalar_lea.smem %s0, 5
  %s11 = sld [smem:[%s10]]
  %s12 = scalar_lea.smem %s0, 6
  %s13 = sld [smem:[%s12]]
  %s14 = scalar_lea.smem %s0, 7
  %s15 = sld [smem:[%s14]]
  %s16 = scalar_lea.smem %s0, 8
  %s17 = sld [smem:[%s16]]
  %s18 = scalar_lea.smem %s0, 9
  %s19 = sld [smem:[%s18]]
  %s20 = scalar_lea.smem %s0, 10
  %s21 = sld [smem:[%s20]]
  %s22 = scalar_lea.smem %s0, 11
  %s23 = sld [smem:[%s22]]
  %s24 = scalar_lea.smem %s0, 12
  %s25 = sld [smem:[%s24]]
  %s26 = scalar_lea.smem %s0, 13
  %s27 = sld [smem:[%s26]]
  %s28 = scalar_lea.smem %s0, 14
  %s29 = sld [smem:[%s28]]
  %s30 = scalar_lea.smem %s0, 15
  %s31 = sld [smem:[%s30]]
  %s32 = scalar_lea.smem %s0, 16
  %s33 = sld [smem:[%s32]]
  %s34 = scalar_lea.smem %s0, 17
  %s35 = sld [smem:[%s34]]
  %s36 = scalar_lea.smem %s0, 18
  %s37 = sld [smem:[%s36]]
  %s38 = scalar_lea.smem %s0, 19
  %s39 = sld [smem:[%s38]]
  %s40 = scalar_lea.smem %s0, 20
  %s41 = sld [smem:[%s40]]
  %s42 = scalar_lea.smem %s0, 21
  %s43 = sld [smem:[%s42]]
  %s44 = scalar_lea.smem %s0, 22
  %s45 = sld [smem:[%s44]]
  %s46 = scalar_lea.smem %s0, 23
  %s47 = sld [smem:[%s46]]
  %s48 = scalar_lea.smem %s0, 24
  %s49 = sld [smem:[%s48]]
  %s50 = scalar_lea.smem %s0, 25
  %s51 = sld [smem:[%s50]]
  %s52 = scalar_lea.smem %s0, 26
  %s53 = sld [smem:[%s52]]
  %s54 = scalar_lea.smem %s0, 27
  %s55 = sld [smem:[%s54]]
  %s56 = scalar_lea.smem %s0, 28
  %s57 = sld [smem:[%s56]]
  %s58 = scalar_lea.smem %s0, 29
  %s59 = sld [smem:[%s58]]
  %s60 = scalar_lea.smem %s0, 30
  %s61 = sld [smem:[%s60]]
  %s62 = scalar_lea.smem %s0, 31
  %s63 = sld [smem:[%s62]]
  %s64 = sld [smem:[#allocation0]]
  $region134: #{dimenet_forward_pallas.1} parent=0
    _
  %s66 = ssub.s32 1, %s64
  %s67 = scalar_select 0, %s66, %s64
  $region1: #{dimenet_forward_pallas.1} parent=0
    #allocation2 [shape = 'u8[1024]{0}', space=vmem, size = 0x400, scoped, tag = 'output window, operand 0, single buffered']
    #allocation3 [shape = 's32[1]{0}', space=sflag, size = 0x4, scoped, tag = 'scoped memory for dimenet_forward_pallas.1']
    %68 = vsyncpa [#allocation3], 0
    // Predicated region
    $region2: #{dimenet_forward_pallas.1} parent=1 // pred_check
      _
    $region3: #{dimenet_forward_pallas.1} parent=1 // pred_check_branch
      %70 = sbr.rel (0) target = $region5
    $region4: #{dimenet_forward_pallas.1} parent=1 // pred_region
      _
    $region5: #{dimenet_forward_pallas.1} parent=1 // pred_fallthru
      _
    // Predicated region
    $region6: #{dimenet_forward_pallas.1} parent=1 // pred_check
      _
    $region7: #{dimenet_forward_pallas.1} parent=1 // pred_check_branch
      %72 = sbr.rel (0) target = $region9
    $region8: #{dimenet_forward_pallas.1} parent=1 // pred_region
      _
    $region9: #{dimenet_forward_pallas.1} parent=1 // pred_fallthru
      _
    // Predicated region
    $region10: #{dimenet_forward_pallas.1} parent=1 // pred_check
      _
    $region11: #{dimenet_forward_pallas.1} parent=1 // pred_check_branch
      %74 = sbr.rel (0) target = $region13
    $region12: #{dimenet_forward_pallas.1} parent=1 // pred_region
      _
    $region13: #{dimenet_forward_pallas.1} parent=1 // pred_fallthru
      _
    // Predicated region
    $region14: #{dimenet_forward_pallas.1} parent=1 // pred_check
      _
    $region15: #{dimenet_forward_pallas.1} parent=1 // pred_check_branch
      %76 = sbr.rel (0) target = $region17
    $region16: #{dimenet_forward_pallas.1} parent=1 // pred_region
      _
    $region17: #{dimenet_forward_pallas.1} parent=1 // pred_fallthru
      _
    // Predicated region
    $region18: #{dimenet_forward_pallas.1} parent=1 // pred_check
      _
    $region19: #{dimenet_forward_pallas.1} parent=1 // pred_check_branch
      %78 = sbr.rel (0) target = $region21
    $region20: #{dimenet_forward_pallas.1} parent=1 // pred_region
      _
    $region21: #{dimenet_forward_pallas.1} parent=1 // pred_fallthru
      _
    // Predicated region
    $region22: #{dimenet_forward_pallas.1} parent=1 // pred_check
      _
    $region23: #{dimenet_forward_pallas.1} parent=1 // pred_check_branch
      %80 = sbr.rel (0) target = $region25
    $region24: #{dimenet_forward_pallas.1} parent=1 // pred_region
      _
    $region25: #{dimenet_forward_pallas.1} parent=1 // pred_fallthru
      _
    // Predicated region
    $region26: #{dimenet_forward_pallas.1} parent=1 // pred_check
      _
    $region27: #{dimenet_forward_pallas.1} parent=1 // pred_check_branch
      %82 = sbr.rel (0) target = $region29
    $region28: #{dimenet_forward_pallas.1} parent=1 // pred_region
      _
    $region29: #{dimenet_forward_pallas.1} parent=1 // pred_fallthru
      _
    // Predicated region
    $region30: #{dimenet_forward_pallas.1} parent=1 // pred_check
      _
    $region31: #{dimenet_forward_pallas.1} parent=1 // pred_check_branch
      %84 = sbr.rel (0) target = $region33
    $region32: #{dimenet_forward_pallas.1} parent=1 // pred_region
      _
    $region33: #{dimenet_forward_pallas.1} parent=1 // pred_fallthru
      _
    // Predicated region
    $region34: #{dimenet_forward_pallas.1} parent=1 // pred_check
      _
    $region35: #{dimenet_forward_pallas.1} parent=1 // pred_check_branch
      %86 = sbr.rel (0) target = $region37
    $region36: #{dimenet_forward_pallas.1} parent=1 // pred_region
      _
    $region37: #{dimenet_forward_pallas.1} parent=1 // pred_fallthru
      _
    // Predicated region
    $region38: #{dimenet_forward_pallas.1} parent=1 // pred_check
      _
    $region39: #{dimenet_forward_pallas.1} parent=1 // pred_check_branch
      %88 = sbr.rel (0) target = $region41
    $region40: #{dimenet_forward_pallas.1} parent=1 // pred_region
      _
    $region41: #{dimenet_forward_pallas.1} parent=1 // pred_fallthru
      _
    // Predicated region
    $region42: #{dimenet_forward_pallas.1} parent=1 // pred_check
      _
    $region43: #{dimenet_forward_pallas.1} parent=1 // pred_check_branch
      %90 = sbr.rel (0) target = $region45
    $region44: #{dimenet_forward_pallas.1} parent=1 // pred_region
      _
    $region45: #{dimenet_forward_pallas.1} parent=1 // pred_fallthru
      _
    // Predicated region
    $region46: #{dimenet_forward_pallas.1} parent=1 // pred_check
      _
    $region47: #{dimenet_forward_pallas.1} parent=1 // pred_check_branch
      %92 = sbr.rel (0) target = $region49
    $region48: #{dimenet_forward_pallas.1} parent=1 // pred_region
      _
    $region49: #{dimenet_forward_pallas.1} parent=1 // pred_fallthru
      _
    // Predicated region
    $region50: #{dimenet_forward_pallas.1} parent=1 // pred_check
      _
    $region51: #{dimenet_forward_pallas.1} parent=1 // pred_check_branch
      %94 = sbr.rel (0) target = $region53
    $region52: #{dimenet_forward_pallas.1} parent=1 // pred_region
      _
    $region53: #{dimenet_forward_pallas.1} parent=1 // pred_fallthru
      _
    // Predicated region
    $region54: #{dimenet_forward_pallas.1} parent=1 // pred_check
      _
    $region55: #{dimenet_forward_pallas.1} parent=1 // pred_check_branch
      %96 = sbr.rel (0) target = $region57
    $region56: #{dimenet_forward_pallas.1} parent=1 // pred_region
      _
    $region57: #{dimenet_forward_pallas.1} parent=1 // pred_fallthru
      _
    // Predicated region
    $region58: #{dimenet_forward_pallas.1} parent=1 // pred_check
      _
    $region59: #{dimenet_forward_pallas.1} parent=1 // pred_check_branch
      %98 = sbr.rel (0) target = $region61
    $region60: #{dimenet_forward_pallas.1} parent=1 // pred_region
      _
    $region61: #{dimenet_forward_pallas.1} parent=1 // pred_fallthru
      _
    // Predicated region
    $region62: #{dimenet_forward_pallas.1} parent=1 // pred_check
      _
    $region63: #{dimenet_forward_pallas.1} parent=1 // pred_check_branch
      %100 = sbr.rel (0) target = $region65
    $region64: #{dimenet_forward_pallas.1} parent=1 // pred_region
      _
    $region65: #{dimenet_forward_pallas.1} parent=1 // pred_fallthru
      _
    // Predicated region
    $region66: #{dimenet_forward_pallas.1} parent=1 // pred_check
      _
    $region67: #{dimenet_forward_pallas.1} parent=1 // pred_check_branch
      %102 = sbr.rel (0) target = $region69
    $region68: #{dimenet_forward_pallas.1} parent=1 // pred_region
      _
    $region69: #{dimenet_forward_pallas.1} parent=1 // pred_fallthru
      _
    // Predicated region
    $region70: #{dimenet_forward_pallas.1} parent=1 // pred_check
      _
    $region71: #{dimenet_forward_pallas.1} parent=1 // pred_check_branch
      %104 = sbr.rel (0) target = $region73
    $region72: #{dimenet_forward_pallas.1} parent=1 // pred_region
      _
    $region73: #{dimenet_forward_pallas.1} parent=1 // pred_fallthru
      _
    // Predicated region
    $region74: #{dimenet_forward_pallas.1} parent=1 // pred_check
      _
    $region75: #{dimenet_forward_pallas.1} parent=1 // pred_check_branch
      %106 = sbr.rel (0) target = $region77
    $region76: #{dimenet_forward_pallas.1} parent=1 // pred_region
      _
    $region77: #{dimenet_forward_pallas.1} parent=1 // pred_fallthru
      _
    // Predicated region
    $region78: #{dimenet_forward_pallas.1} parent=1 // pred_check
      _
    $region79: #{dimenet_forward_pallas.1} parent=1 // pred_check_branch
      %108 = sbr.rel (0) target = $region81
    $region80: #{dimenet_forward_pallas.1} parent=1 // pred_region
      _
    $region81: #{dimenet_forward_pallas.1} parent=1 // pred_fallthru
      _
    // Predicated region
    $region82: #{dimenet_forward_pallas.1} parent=1 // pred_check
      _
    $region83: #{dimenet_forward_pallas.1} parent=1 // pred_check_branch
      %110 = sbr.rel (0) target = $region85
    $region84: #{dimenet_forward_pallas.1} parent=1 // pred_region
      _
    $region85: #{dimenet_forward_pallas.1} parent=1 // pred_fallthru
      _
    // Predicated region
    $region86: #{dimenet_forward_pallas.1} parent=1 // pred_check
      _
    $region87: #{dimenet_forward_pallas.1} parent=1 // pred_check_branch
      %112 = sbr.rel (0) target = $region89
    $region88: #{dimenet_forward_pallas.1} parent=1 // pred_region
      _
    $region89: #{dimenet_forward_pallas.1} parent=1 // pred_fallthru
      _
    // Predicated region
    $region90: #{dimenet_forward_pallas.1} parent=1 // pred_check
      _
    $region91: #{dimenet_forward_pallas.1} parent=1 // pred_check_branch
      %114 = sbr.rel (0) target = $region93
    $region92: #{dimenet_forward_pallas.1} parent=1 // pred_region
      _
    $region93: #{dimenet_forward_pallas.1} parent=1 // pred_fallthru
      _
    // Predicated region
    $region94: #{dimenet_forward_pallas.1} parent=1 // pred_check
      _
    $region95: #{dimenet_forward_pallas.1} parent=1 // pred_check_branch
      %116 = sbr.rel (0) target = $region97
    $region96: #{dimenet_forward_pallas.1} parent=1 // pred_region
      _
    $region97: #{dimenet_forward_pallas.1} parent=1 // pred_fallthru
      _
    // Predicated region
    $region98: #{dimenet_forward_pallas.1} parent=1 // pred_check
      _
    $region99: #{dimenet_forward_pallas.1} parent=1 // pred_check_branch
      %118 = sbr.rel (0) target = $region101
    $region100: #{dimenet_forward_pallas.1} parent=1 // pred_region
      _
    $region101: #{dimenet_forward_pallas.1} parent=1 // pred_fallthru
      _
    // Predicated region
    $region102: #{dimenet_forward_pallas.1} parent=1 // pred_check
      _
    $region103: #{dimenet_forward_pallas.1} parent=1 // pred_check_branch
      %120 = sbr.rel (0) target = $region105
    $region104: #{dimenet_forward_pallas.1} parent=1 // pred_region
      _
    $region105: #{dimenet_forward_pallas.1} parent=1 // pred_fallthru
      _
    // Predicated region
    $region106: #{dimenet_forward_pallas.1} parent=1 // pred_check
      _
    $region107: #{dimenet_forward_pallas.1} parent=1 // pred_check_branch
      %122 = sbr.rel (0) target = $region109
    $region108: #{dimenet_forward_pallas.1} parent=1 // pred_region
      _
    $region109: #{dimenet_forward_pallas.1} parent=1 // pred_fallthru
      _
    // Predicated region
    $region110: #{dimenet_forward_pallas.1} parent=1 // pred_check
      _
    $region111: #{dimenet_forward_pallas.1} parent=1 // pred_check_branch
      %124 = sbr.rel (0) target = $region113
    $region112: #{dimenet_forward_pallas.1} parent=1 // pred_region
      _
    $region113: #{dimenet_forward_pallas.1} parent=1 // pred_fallthru
      _
    // Predicated region
    $region114: #{dimenet_forward_pallas.1} parent=1 // pred_check
      _
    $region115: #{dimenet_forward_pallas.1} parent=1 // pred_check_branch
      %126 = sbr.rel (0) target = $region117
    $region116: #{dimenet_forward_pallas.1} parent=1 // pred_region
      _
    $region117: #{dimenet_forward_pallas.1} parent=1 // pred_fallthru
      _
    // Predicated region
    $region118: #{dimenet_forward_pallas.1} parent=1 // pred_check
      _
    $region119: #{dimenet_forward_pallas.1} parent=1 // pred_check_branch
      %128 = sbr.rel (0) target = $region121
    $region120: #{dimenet_forward_pallas.1} parent=1 // pred_region
      _
    $region121: #{dimenet_forward_pallas.1} parent=1 // pred_fallthru
      _
    // Predicated region
    $region122: #{dimenet_forward_pallas.1} parent=1 // pred_check
      _
    $region123: #{dimenet_forward_pallas.1} parent=1 // pred_check_branch
      %130 = sbr.rel (0) target = $region125
    $region124: #{dimenet_forward_pallas.1} parent=1 // pred_region
      _
    $region125: #{dimenet_forward_pallas.1} parent=1 // pred_fallthru
      _
    %v131 = vld [vmem:[%s1] sm:$0xff]
    %v132 = vld [vmem:[%s1 + $0x8] sm:$0xff]
    %v133 = vld [vmem:[%s1 + $0x10] sm:$0xff]
    %v134 = vld [vmem:[%s3] sm:$0xff]
    %v135 = vld [vmem:[%s3 + $0x8] sm:$0xff]
    %v136 = vld [vmem:[%s3 + $0x10] sm:$0xff]
    %v137 = vld [vmem:[%s3 + $0x18] sm:$0xff]
    %v138 = vld [vmem:[%s3 + $0x20] sm:$0xff]
    %v139 = vld [vmem:[%s3 + $0x28] sm:$0xff]
    %v140 = vlaneseq
    %v141 = vshrl.u32 %v140, 7
    %v142 = vld [vmem:[%s9] sm:$0x1]
    %v143 = vlaneseq
    %v144 = vshrl.u32 %v143, 7
    %v145 = vsub.s32 0, %v144
    %v146 = vrot.slane %v142, %v145
    %vm147 = vcmp.eq.s32.totalorder %v141, %v146
    %v148 = vsel %vm147, 1, 0
    %v149 = vcvt.s32.f32 %v148
    %v150 = vlaneseq
    %v151 = vand.u32 %v150, 127
    %v152 = vld [vmem:[%s11] sm:$0xff]
    %v153 = vld [vmem:[%s11 + $0x8] sm:$0xff]
    %v154 = vld [vmem:[%s11 + $0x10] sm:$0xff]
    %v155 = vld [vmem:[%s11 + $0x18] sm:$0xff]
    %v156 = vld [vmem:[%s11 + $0x20] sm:$0xff]
    %v157 = vld [vmem:[%s11 + $0x28] sm:$0xff]
    %158 = vset.pattern.permute.xlu0 0
    %159 = vperm.xlu0 %158, %v152
    %v160 = vpop.permute.xlu0 %159
    %161 = vset.pattern.permute.xlu0 0
    %162 = vperm.xlu0 %161, %v153
    %v163 = vpop.permute.xlu0 %162
    %164 = vset.pattern.permute.xlu0 0
    %165 = vperm.xlu0 %164, %v154
    %v166 = vpop.permute.xlu0 %165
    %167 = vset.pattern.permute.xlu0 0
    %168 = vperm.xlu0 %167, %v155
    %v169 = vpop.permute.xlu0 %168
    %170 = vset.pattern.permute.xlu0 0
    %171 = vperm.xlu0 %170, %v156
    %v172 = vpop.permute.xlu0 %171
    %173 = vset.pattern.permute.xlu0 0
    %174 = vperm.xlu0 %173, %v157
    %v175 = vpop.permute.xlu0 %174
    %vm176 = vcmp.eq.s32.totalorder %v151, %v160
    %vm177 = vcmp.eq.s32.totalorder %v151, %v163
    %vm178 = vcmp.eq.s32.totalorder %v151, %v166
    %vm179 = vcmp.eq.s32.totalorder %v151, %v169
    %vm180 = vcmp.eq.s32.totalorder %v151, %v172
    %vm181 = vcmp.eq.s32.totalorder %v151, %v175
    %v182 = vsel %vm176, 1, 0
    %v183 = vsel %vm177, 1, 0
    %v184 = vsel %vm178, 1, 0
    %v185 = vsel %vm179, 1, 0
    %v186 = vsel %vm180, 1, 0
    %v187 = vsel %vm181, 1, 0
    %v188 = vcvt.s32.f32 %v182
    %v189 = vcvt.s32.f32 %v183
    %v190 = vcvt.s32.f32 %v184
    %v191 = vcvt.s32.f32 %v185
    %v192 = vcvt.s32.f32 %v186
    %v193 = vcvt.s32.f32 %v187
    %v194 = vadd.s32 %v141, 8
    %v195 = vadd.s32 %v141, 16
    %v196 = vld [vmem:[%s13] sm:$0x1]
    %v197 = vlaneseq
    %v198 = vshrl.u32 %v197, 7
    %v199 = vsub.s32 0, %v198
    %v200 = vrot.slane %v196, %v199
    %vm201 = vcmp.eq.s32.totalorder %v141, %v200
    %vm202 = vcmp.eq.s32.totalorder %v194, %v200
    %vm203 = vcmp.eq.s32.totalorder %v195, %v200
    %v204 = vsel %vm201, 1, 0
    %v205 = vsel %vm202, 1, 0
    %v206 = vsel %vm203, 1, 0
    %v207 = vcvt.s32.f32 %v204
    %v208 = vcvt.s32.f32 %v205
    %v209 = vcvt.s32.f32 %v206
    %v210 = vld [vmem:[%s15] sm:$0x1]
    %v211 = vlaneseq
    %v212 = vshrl.u32 %v211, 7
    %v213 = vsub.s32 0, %v212
    %v214 = vrot.slane %v210, %v213
    %vm215 = vcmp.eq.s32.totalorder %v141, %v214
    %v216 = vsel %vm215, 1, 0
    %v217 = vcvt.s32.f32 %v216
    %v218 = vld [vmem:[%s17] sm:$0x3f]
    %v219 = vld [vmem:[%s19] sm:$0x1]
    %v221 = vlaneseq
    %v222 = vshrl.u32 %v221, 7
    %v223 = vsub.s32 0, %v222
    %v224 = vrot.slane %v219, %v223
    %vm226 = vcmask 48128
    %v228 = vsel %vm226, %v131, 0
    %v231 = vsel %vm226, %v132, 0
    %v234 = vsel %vm226, %v133, 0
    %vm236 = vcmask 1045504
    %v238 = vsel %vm236, %v218, 0
    %240 = vmatprep.subr.mxu0 0.0
    %241 = vmatpush1.msra.mxu0 %v238
    %242 = vmatprep.subr.mxu0 0.0
    %243 = vmatpush1.msra.mxu0 0.0
    %244 = vmatprep.subr.mxu0 0.0
    %245 = vmatpush1.msra.mxu0 0.0
    %246 = vmatprep.subr.mxu0 0.0
    %247 = vmatpush1.msra.mxu0 0.0
    %248 = vmatprep.subr.mxu0 0.0
    %249 = vmatpush1.msra.mxu0 0.0
    %250 = vmatprep.subr.mxu0 0.0
    %251 = vmatpush1.msra.mxu0 0.0
    %252 = vmatprep.subr.mxu0 0.0
    %253 = vmatpush1.msra.mxu0 0.0
    %254 = vmatprep.subr.mxu0 0.0
    %255 = vmatpush1.msra.mxu0 0.0
    %256 = vmatprep.subr.mxu0 0.0
    %257 = vmatpush1.msra.mxu0 0.0
    %258 = vmatprep.subr.mxu0 0.0
    %259 = vmatpush1.msra.mxu0 0.0
    %260 = vmatprep.subr.mxu0 0.0
    %261 = vmatpush1.msra.mxu0 0.0
    %262 = vmatprep.subr.mxu0 0.0
    %263 = vmatpush1.msra.mxu0 0.0
    %264 = vmatprep.subr.mxu0 0.0
    %265 = vmatpush1.msra.mxu0 0.0
    %266 = vmatprep.subr.mxu0 0.0
    %267 = vmatpush1.msra.mxu0 0.0
    %268 = vmatprep.subr.mxu0 0.0
    %269 = vmatpush1.msra.mxu0 0.0
    %270 = vmatprep.subr.mxu0 0.0
    %271 = vmatpush1.msra.mxu0 0.0
    %272 = vmatprep.subr.mxu0 0.0
    %273 = vmatpush1.msra.mxu0 0.0
    %274 = vmatprep.subr.mxu0 0.0
    %275 = vmatpush1.msra.mxu0 0.0
    %276 = vmatprep.subr.mxu0 0.0
    %277 = vmatpush1.msra.mxu0 0.0
    %278 = vmatprep.subr.mxu0 0.0
    %279 = vmatpush1.msra.mxu0 0.0
    %280 = vmatprep.subr.mxu0 0.0
    %281 = vmatpush1.msra.mxu0 0.0
    %282 = vmatprep.subr.mxu0 0.0
    %283 = vmatpush1.msra.mxu0 0.0
    %284 = vmatprep.subr.mxu0 0.0
    %285 = vmatpush1.msra.mxu0 0.0
    %286 = vmatprep.subr.mxu0 0.0
    %287 = vmatpush1.msra.mxu0 0.0
    %288 = vmatprep.subr.mxu0 0.0
    %289 = vmatpush1.msra.mxu0 0.0
    %290 = vmatprep.subr.mxu0 0.0
    %291 = vmatpush1.msra.mxu0 0.0
    %292 = vmatprep.subr.mxu0 0.0
    %293 = vmatpush1.msra.mxu0 0.0
    %294 = vmatprep.subr.mxu0 0.0
    %295 = vmatpush1.msra.mxu0 0.0
    %296 = vmatprep.subr.mxu0 0.0
    %297 = vmatpush1.msra.mxu0 0.0
    %298 = vmatprep.subr.mxu0 0.0
    %299 = vmatpush1.msra.mxu0 0.0
    %300 = vmatprep.subr.mxu0 0.0
    %301 = vmatpush1.msra.mxu0 0.0
    %302 = vmatprep.subr.mxu0 0.0
    %303 = vmatpush1.msra.mxu0 0.0
    %304 = vmatprep.mubr.f32.mxu0 0.0
    %305 = vmatmul.mubr.f32.gmra.mrb[0].mxu0 %v228
    %v306 = vpop.f32.mrb[0].mxu0
    %v307 = vadd.f32 %v224, %v306
    %v308 = vpop.f32.mrb[0].mxu0
    %309 = vmatprep.mubr.f32.mxu0 0.0
    %310 = vmatmul.mubr.f32.gmra.mrb[0].mxu0 %v231
    %v311 = vpop.f32.mrb[0].mxu0
    %v312 = vadd.f32 %v224, %v311
    %v313 = vpop.f32.mrb[0].mxu0
    %314 = vmatprep.mubr.f32.mxu0 0.0
    %315 = vmatmul.mubr.f32.gmra.mrb[0].mxu0 %v234
    %v316 = vpop.f32.mrb[0].mxu0
    %v317 = vadd.f32 %v224, %v316
    %v318 = vpop.f32.mrb[0].mxu0
    %319 = vdwg.mxu0
    %v320 = vxor.u32 %v307, 2147483648
    %v321 = vxor.u32 %v312, 2147483648
    %v322 = vxor.u32 %v317, 2147483648
    %v323 = vmul.f32 %v320, 1.442695
    %v324 = vpow.pop %v323
    %v325 = vmul.f32 %v321, 1.442695
    %v326 = vpow.pop %v325
    %v327 = vmul.f32 %v322, 1.442695
    %v328 = vpow.pop %v327
    %v329 = vadd.f32 %v324, 1.0
    %v330 = vadd.f32 %v326, 1.0
    %v331 = vadd.f32 %v328, 1.0
    %v332 = vrcp.pop %v329
    %v333 = vmul.f32 1.0, %v332
    %v334 = vrcp.pop %v330
    %v335 = vmul.f32 1.0, %v334
    %v336 = vrcp.pop %v331
    %v337 = vmul.f32 1.0, %v336
    %v338 = vmul.f32 %v307, %v333
    %v339 = vmul.f32 %v312, %v335
    %v340 = vmul.f32 %v317, %v337
    %v341 = vld [vmem:[%s5] sm:$0xff]
    %v342 = vld [vmem:[%s5 + $0x8] sm:$0xff]
    %v343 = vld [vmem:[%s5 + $0x10] sm:$0xff]
    %v344 = vld [vmem:[%s21] sm:$0xff]
    %v345 = vld [vmem:[%s21 + $0x8] sm:$0xff]
    %v346 = vld [vmem:[%s21 + $0x10] sm:$0xff]
    %v347 = vld [vmem:[%s21 + $0x18] sm:$0xff]
    %v348 = vld [vmem:[%s7] sm:$0xff]
    %v349 = vld [vmem:[%s7 + $0x8] sm:$0xff]
    %v350 = vld [vmem:[%s7 + $0x10] sm:$0xff]
    %v351 = vld [vmem:[%s23] sm:$0xff]
    %v352 = vld [vmem:[%s23 + $0x8] sm:$0xff]
    %v353 = vld [vmem:[%s23 + $0x10] sm:$0xff]
    %v354 = vld [vmem:[%s23 + $0x18] sm:$0xff]
    %vm355 = vcmask 261120
    %v357 = vsel %vm355, %v348, 0
    %v360 = vsel %vm355, %v349, 0
    %v363 = vsel %vm355, %v350, 0
    %365 = vmatprep.subr.mxu0 0.0
    %366 = vmatpush1.msra.mxu0 %v351
    %367 = vmatprep.subr.mxu0 0.0
    %368 = vmatpush1.msra.mxu0 %v352
    %369 = vmatprep.subr.mxu0 0.0
    %370 = vmatpush1.msra.mxu0 %v353
    %371 = vmatprep.subr.mxu0 0.0
    %372 = vmatpush1.msra.mxu0 %v354
    %373 = vmatprep.subr.mxu0 0.0
    %374 = vmatpush1.msra.mxu0 0.0
    %375 = vmatprep.subr.mxu0 0.0
    %376 = vmatpush1.msra.mxu0 0.0
    %377 = vmatprep.subr.mxu0 0.0
    %378 = vmatpush1.msra.mxu0 0.0
    %379 = vmatprep.subr.mxu0 0.0
    %380 = vmatpush1.msra.mxu0 0.0
    %381 = vmatprep.subr.mxu0 0.0
    %382 = vmatpush1.msra.mxu0 0.0
    %383 = vmatprep.subr.mxu0 0.0
    %384 = vmatpush1.msra.mxu0 0.0
    %385 = vmatprep.subr.mxu0 0.0
    %386 = vmatpush1.msra.mxu0 0.0
    %387 = vmatprep.subr.mxu0 0.0
    %388 = vmatpush1.msra.mxu0 0.0
    %389 = vmatprep.subr.mxu0 0.0
    %390 = vmatpush1.msra.mxu0 0.0
    %391 = vmatprep.subr.mxu0 0.0
    %392 = vmatpush1.msra.mxu0 0.0
    %393 = vmatprep.subr.mxu0 0.0
    %394 = vmatpush1.msra.mxu0 0.0
    %395 = vmatprep.subr.mxu0 0.0
    %396 = vmatpush1.msra.mxu0 0.0
    %397 = vmatprep.subr.mxu0 0.0
    %398 = vmatpush1.msra.mxu0 0.0
    %399 = vmatprep.subr.mxu0 0.0
    %400 = vmatpush1.msra.mxu0 0.0
    %401 = vmatprep.subr.mxu0 0.0
    %402 = vmatpush1.msra.mxu0 0.0
    %403 = vmatprep.subr.mxu0 0.0
    %404 = vmatpush1.msra.mxu0 0.0
    %405 = vmatprep.subr.mxu0 0.0
    %406 = vmatpush1.msra.mxu0 0.0
    %407 = vmatprep.subr.mxu0 0.0
    %408 = vmatpush1.msra.mxu0 0.0
    %409 = vmatprep.subr.mxu0 0.0
    %410 = vmatpush1.msra.mxu0 0.0
    %411 = vmatprep.subr.mxu0 0.0
    %412 = vmatpush1.msra.mxu0 0.0
    %413 = vmatprep.subr.mxu0 0.0
    %414 = vmatpush1.msra.mxu0 0.0
    %415 = vmatprep.subr.mxu0 0.0
    %416 = vmatpush1.msra.mxu0 0.0
    %417 = vmatprep.subr.mxu0 0.0
    %418 = vmatpush1.msra.mxu0 0.0
    %419 = vmatprep.subr.mxu0 0.0
    %420 = vmatpush1.msra.mxu0 0.0
    %421 = vmatprep.subr.mxu0 0.0
    %422 = vmatpush1.msra.mxu0 0.0
    %423 = vmatprep.subr.mxu0 0.0
    %424 = vmatpush1.msra.mxu0 0.0
    %425 = vmatprep.subr.mxu0 0.0
    %426 = vmatpush1.msra.mxu0 0.0
    %427 = vmatprep.subr.mxu0 0.0
    %428 = vmatpush1.msra.mxu0 0.0
    %429 = vmatprep.mubr.f32.mxu0 0.0
    %430 = vmatmul.mubr.f32.gmra.mrb[0].mxu0 %v357
    %v431 = vpop.f32.mrb[0].mxu0
    %v432 = vadd.f32 0.0, %v431
    %v433 = vpop.f32.mrb[0].mxu0
    %434 = vmatprep.mubr.f32.mxu0 0.0
    %435 = vmatmul.mubr.f32.gmra.mrb[0].mxu0 %v360
    %v436 = vpop.f32.mrb[0].mxu0
    %v437 = vadd.f32 0.0, %v436
    %v438 = vpop.f32.mrb[0].mxu0
    %439 = vmatprep.mubr.f32.mxu0 0.0
    %440 = vmatmul.mubr.f32.gmra.mrb[0].mxu0 %v363
    %v441 = vpop.f32.mrb[0].mxu0
    %v442 = vadd.f32 0.0, %v441
    %v443 = vpop.f32.mrb[0].mxu0
    %444 = vdwg.mxu0
    %v446 = vsel %vm355, %v341, 0
    %v449 = vsel %vm355, %v342, 0
    %v452 = vsel %vm355, %v343, 0
    %454 = vmatprep.subr.mxu0 0.0
    %455 = vmatpush1.msra.mxu0 %v344
    %456 = vmatprep.subr.mxu0 0.0
    %457 = vmatpush1.msra.mxu0 %v345
    %458 = vmatprep.subr.mxu0 0.0
    %459 = vmatpush1.msra.mxu0 %v346
    %460 = vmatprep.subr.mxu0 0.0
    %461 = vmatpush1.msra.mxu0 %v347
    %462 = vmatprep.subr.mxu0 0.0
    %463 = vmatpush1.msra.mxu0 0.0
    %464 = vmatprep.subr.mxu0 0.0
    %465 = vmatpush1.msra.mxu0 0.0
    %466 = vmatprep.subr.mxu0 0.0
    %467 = vmatpush1.msra.mxu0 0.0
    %468 = vmatprep.subr.mxu0 0.0
    %469 = vmatpush1.msra.mxu0 0.0
    %470 = vmatprep.subr.mxu0 0.0
    %471 = vmatpush1.msra.mxu0 0.0
    %472 = vmatprep.subr.mxu0 0.0
    %473 = vmatpush1.msra.mxu0 0.0
    %474 = vmatprep.subr.mxu0 0.0
    %475 = vmatpush1.msra.mxu0 0.0
    %476 = vmatprep.subr.mxu0 0.0
    %477 = vmatpush1.msra.mxu0 0.0
    %478 = vmatprep.subr.mxu0 0.0
    %479 = vmatpush1.msra.mxu0 0.0
    %480 = vmatprep.subr.mxu0 0.0
    %481 = vmatpush1.msra.mxu0 0.0
    %482 = vmatprep.subr.mxu0 0.0
    %483 = vmatpush1.msra.mxu0 0.0
    %484 = vmatprep.subr.mxu0 0.0
    %485 = vmatpush1.msra.mxu0 0.0
    %486 = vmatprep.subr.mxu0 0.0
    %487 = vmatpush1.msra.mxu0 0.0
    %488 = vmatprep.subr.mxu0 0.0
    %489 = vmatpush1.msra.mxu0 0.0
    %490 = vmatprep.subr.mxu0 0.0
    %491 = vmatpush1.msra.mxu0 0.0
    %492 = vmatprep.subr.mxu0 0.0
    %493 = vmatpush1.msra.mxu0 0.0
    %494 = vmatprep.subr.mxu0 0.0
    %495 = vmatpush1.msra.mxu0 0.0
    %496 = vmatprep.subr.mxu0 0.0
    %497 = vmatpush1.msra.mxu0 0.0
    %498 = vmatprep.subr.mxu0 0.0
    %499 = vmatpush1.msra.mxu0 0.0
    %500 = vmatprep.subr.mxu0 0.0
    %501 = vmatpush1.msra.mxu0 0.0
    %502 = vmatprep.subr.mxu0 0.0
    %503 = vmatpush1.msra.mxu0 0.0
    %504 = vmatprep.subr.mxu0 0.0
    %505 = vmatpush1.msra.mxu0 0.0
    %506 = vmatprep.subr.mxu0 0.0
    %507 = vmatpush1.msra.mxu0 0.0
    %508 = vmatprep.subr.mxu0 0.0
    %509 = vmatpush1.msra.mxu0 0.0
    %510 = vmatprep.subr.mxu0 0.0
    %511 = vmatpush1.msra.mxu0 0.0
    %512 = vmatprep.subr.mxu0 0.0
    %513 = vmatpush1.msra.mxu0 0.0
    %514 = vmatprep.subr.mxu0 0.0
    %515 = vmatpush1.msra.mxu0 0.0
    %516 = vmatprep.subr.mxu0 0.0
    %517 = vmatpush1.msra.mxu0 0.0
    %518 = vmatprep.mubr.f32.mxu0 0.0
    %519 = vmatmul.mubr.f32.gmra.mrb[0].mxu0 %v446
    %v520 = vpop.f32.mrb[0].mxu0
    %v521 = vadd.f32 %v432, %v520
    %v522 = vpop.f32.mrb[0].mxu0
    %523 = vmatprep.mubr.f32.mxu0 0.0
    %524 = vmatmul.mubr.f32.gmra.mrb[0].mxu0 %v449
    %v525 = vpop.f32.mrb[0].mxu0
    %v526 = vadd.f32 %v437, %v525
    %v527 = vpop.f32.mrb[0].mxu0
    %528 = vmatprep.mubr.f32.mxu0 0.0
    %529 = vmatmul.mubr.f32.gmra.mrb[0].mxu0 %v452
    %v530 = vpop.f32.mrb[0].mxu0
    %v531 = vadd.f32 %v442, %v530
    %v532 = vpop.f32.mrb[0].mxu0
    %533 = vdwg.mxu0
    %v534 = vld [vmem:[%s25] sm:$0xff]
    %v535 = vld [vmem:[%s25 + $0x8] sm:$0xff]
    %v536 = vld [vmem:[%s25 + $0x10] sm:$0xff]
    %v537 = vld [vmem:[%s25 + $0x18] sm:$0xff]
    %v539 = vsel %vm355, %v338, 0
    %v542 = vsel %vm355, %v339, 0
    %v545 = vsel %vm355, %v340, 0
    %547 = vmatprep.subr.mxu0 0.0
    %548 = vmatpush1.msra.mxu0 %v534
    %549 = vmatprep.subr.mxu0 0.0
    %550 = vmatpush1.msra.mxu0 %v535
    %551 = vmatprep.subr.mxu0 0.0
    %552 = vmatpush1.msra.mxu0 %v536
    %553 = vmatprep.subr.mxu0 0.0
    %554 = vmatpush1.msra.mxu0 %v537
    %555 = vmatprep.subr.mxu0 0.0
    %556 = vmatpush1.msra.mxu0 0.0
    %557 = vmatprep.subr.mxu0 0.0
    %558 = vmatpush1.msra.mxu0 0.0
    %559 = vmatprep.subr.mxu0 0.0
    %560 = vmatpush1.msra.mxu0 0.0
    %561 = vmatprep.subr.mxu0 0.0
    %562 = vmatpush1.msra.mxu0 0.0
    %563 = vmatprep.subr.mxu0 0.0
    %564 = vmatpush1.msra.mxu0 0.0
    %565 = vmatprep.subr.mxu0 0.0
    %566 = vmatpush1.msra.mxu0 0.0
    %567 = vmatprep.subr.mxu0 0.0
    %568 = vmatpush1.msra.mxu0 0.0
    %569 = vmatprep.subr.mxu0 0.0
    %570 = vmatpush1.msra.mxu0 0.0
    %571 = vmatprep.subr.mxu0 0.0
    %572 = vmatpush1.msra.mxu0 0.0
    %573 = vmatprep.subr.mxu0 0.0
    %574 = vmatpush1.msra.mxu0 0.0
    %575 = vmatprep.subr.mxu0 0.0
    %576 = vmatpush1.msra.mxu0 0.0
    %577 = vmatprep.subr.mxu0 0.0
    %578 = vmatpush1.msra.mxu0 0.0
    %579 = vmatprep.subr.mxu0 0.0
    %580 = vmatpush1.msra.mxu0 0.0
    %581 = vmatprep.subr.mxu0 0.0
    %582 = vmatpush1.msra.mxu0 0.0
    %583 = vmatprep.subr.mxu0 0.0
    %584 = vmatpush1.msra.mxu0 0.0
    %585 = vmatprep.subr.mxu0 0.0
    %586 = vmatpush1.msra.mxu0 0.0
    %587 = vmatprep.subr.mxu0 0.0
    %588 = vmatpush1.msra.mxu0 0.0
    %589 = vmatprep.subr.mxu0 0.0
    %590 = vmatpush1.msra.mxu0 0.0
    %591 = vmatprep.subr.mxu0 0.0
    %592 = vmatpush1.msra.mxu0 0.0
    %593 = vmatprep.subr.mxu0 0.0
    %594 = vmatpush1.msra.mxu0 0.0
    %595 = vmatprep.subr.mxu0 0.0
    %596 = vmatpush1.msra.mxu0 0.0
    %597 = vmatprep.subr.mxu0 0.0
    %598 = vmatpush1.msra.mxu0 0.0
    %599 = vmatprep.subr.mxu0 0.0
    %600 = vmatpush1.msra.mxu0 0.0
    %601 = vmatprep.subr.mxu0 0.0
    %602 = vmatpush1.msra.mxu0 0.0
    %603 = vmatprep.subr.mxu0 0.0
    %604 = vmatpush1.msra.mxu0 0.0
    %605 = vmatprep.subr.mxu0 0.0
    %606 = vmatpush1.msra.mxu0 0.0
    %607 = vmatprep.subr.mxu0 0.0
    %608 = vmatpush1.msra.mxu0 0.0
    %609 = vmatprep.subr.mxu0 0.0
    %610 = vmatpush1.msra.mxu0 0.0
    %611 = vmatprep.mubr.f32.mxu0 0.0
    %612 = vmatmul.mubr.f32.gmra.mrb[0].mxu0 %v539
    %v613 = vpop.f32.mrb[0].mxu0
    %v614 = vadd.f32 0.0, %v613
    %v615 = vpop.f32.mrb[0].mxu0
    %616 = vmatprep.mubr.f32.mxu0 0.0
    %617 = vmatmul.mubr.f32.gmra.mrb[0].mxu0 %v542
    %v618 = vpop.f32.mrb[0].mxu0
    %v619 = vadd.f32 0.0, %v618
    %v620 = vpop.f32.mrb[0].mxu0
    %621 = vmatprep.mubr.f32.mxu0 0.0
    %622 = vmatmul.mubr.f32.gmra.mrb[0].mxu0 %v545
    %v623 = vpop.f32.mrb[0].mxu0
    %v624 = vadd.f32 0.0, %v623
    %v625 = vpop.f32.mrb[0].mxu0
    %626 = vdwg.mxu0
    %v627 = vadd.f32 %v521, %v614
    %v628 = vadd.f32 %v526, %v619
    %v629 = vadd.f32 %v531, %v624
    %v630 = vld [vmem:[%s27] sm:$0x1]
    %v632 = vlaneseq
    %v633 = vshrl.u32 %v632, 7
    %v634 = vsub.s32 0, %v633
    %v635 = vrot.slane %v630, %v634
    %v637 = vadd.f32 %v627, %v635
    %v638 = vadd.f32 %v628, %v635
    %v639 = vadd.f32 %v629, %v635
    %v640 = vxor.u32 %v637, 2147483648
    %v641 = vxor.u32 %v638, 2147483648
    %v642 = vxor.u32 %v639, 2147483648
    %v643 = vmul.f32 %v640, 1.442695
    %v644 = vpow.pop %v643
    %v645 = vmul.f32 %v641, 1.442695
    %v646 = vpow.pop %v645
    %v647 = vmul.f32 %v642, 1.442695
    %v648 = vpow.pop %v647
    %v649 = vadd.f32 %v644, 1.0
    %v650 = vadd.f32 %v646, 1.0
    %v651 = vadd.f32 %v648, 1.0
    %v652 = vrcp.pop %v649
    %v653 = vmul.f32 1.0, %v652
    %v654 = vrcp.pop %v650
    %v655 = vmul.f32 1.0, %v654
    %v656 = vrcp.pop %v651
    %v657 = vmul.f32 1.0, %v656
    %v658 = vmul.f32 %v637, %v653
    %v659 = vmul.f32 %v638, %v655
    %v660 = vmul.f32 %v639, %v657
    %v661 = vld [vmem:[%s29] sm:$0x3f]
    %v663 = vsel %vm236, %v661, 0
    %665 = vmatprep.subr.mxu0 0.0
    %666 = vmatpush1.msra.mxu0 %v663
    %667 = vmatprep.subr.mxu0 0.0
    %668 = vmatpush1.msra.mxu0 0.0
    %669 = vmatprep.subr.mxu0 0.0
    %670 = vmatpush1.msra.mxu0 0.0
    %671 = vmatprep.subr.mxu0 0.0
    %672 = vmatpush1.msra.mxu0 0.0
    %673 = vmatprep.subr.mxu0 0.0
    %674 = vmatpush1.msra.mxu0 0.0
    %675 = vmatprep.subr.mxu0 0.0
    %676 = vmatpush1.msra.mxu0 0.0
    %677 = vmatprep.subr.mxu0 0.0
    %678 = vmatpush1.msra.mxu0 0.0
    %679 = vmatprep.subr.mxu0 0.0
    %680 = vmatpush1.msra.mxu0 0.0
    %681 = vmatprep.subr.mxu0 0.0
    %682 = vmatpush1.msra.mxu0 0.0
    %683 = vmatprep.subr.mxu0 0.0
    %684 = vmatpush1.msra.mxu0 0.0
    %685 = vmatprep.subr.mxu0 0.0
    %686 = vmatpush1.msra.mxu0 0.0
    %687 = vmatprep.subr.mxu0 0.0
    %688 = vmatpush1.msra.mxu0 0.0
    %689 = vmatprep.subr.mxu0 0.0
    %690 = vmatpush1.msra.mxu0 0.0
    %691 = vmatprep.subr.mxu0 0.0
    %692 = vmatpush1.msra.mxu0 0.0
    %693 = vmatprep.subr.mxu0 0.0
    %694 = vmatpush1.msra.mxu0 0.0
    %695 = vmatprep.subr.mxu0 0.0
    %696 = vmatpush1.msra.mxu0 0.0
    %697 = vmatprep.subr.mxu0 0.0
    %698 = vmatpush1.msra.mxu0 0.0
    %699 = vmatprep.subr.mxu0 0.0
    %700 = vmatpush1.msra.mxu0 0.0
    %701 = vmatprep.subr.mxu0 0.0
    %702 = vmatpush1.msra.mxu0 0.0
    %703 = vmatprep.subr.mxu0 0.0
    %704 = vmatpush1.msra.mxu0 0.0
    %705 = vmatprep.subr.mxu0 0.0
    %706 = vmatpush1.msra.mxu0 0.0
    %707 = vmatprep.subr.mxu0 0.0
    %708 = vmatpush1.msra.mxu0 0.0
    %709 = vmatprep.subr.mxu0 0.0
    %710 = vmatpush1.msra.mxu0 0.0
    %711 = vmatprep.subr.mxu0 0.0
    %712 = vmatpush1.msra.mxu0 0.0
    %713 = vmatprep.subr.mxu0 0.0
    %714 = vmatpush1.msra.mxu0 0.0
    %715 = vmatprep.subr.mxu0 0.0
    %716 = vmatpush1.msra.mxu0 0.0
    %717 = vmatprep.subr.mxu0 0.0
    %718 = vmatpush1.msra.mxu0 0.0
    %719 = vmatprep.subr.mxu0 0.0
    %720 = vmatpush1.msra.mxu0 0.0
    %721 = vmatprep.subr.mxu0 0.0
    %722 = vmatpush1.msra.mxu0 0.0
    %723 = vmatprep.subr.mxu0 0.0
    %724 = vmatpush1.msra.mxu0 0.0
    %725 = vmatprep.subr.mxu0 0.0
    %726 = vmatpush1.msra.mxu0 0.0
    %727 = vmatprep.subr.mxu0 0.0
    %728 = vmatpush1.msra.mxu0 0.0
    %729 = vmatprep.mubr.f32.mxu0 0.0
    %730 = vmatmul.mubr.f32.gmra.mrb[0].mxu0 %v228
    %v731 = vpop.f32.mrb[0].mxu0
    %v732 = vadd.f32 0.0, %v731
    %v733 = vpop.f32.mrb[0].mxu0
    %734 = vmatprep.mubr.f32.mxu0 0.0
    %735 = vmatmul.mubr.f32.gmra.mrb[0].mxu0 %v231
    %v736 = vpop.f32.mrb[0].mxu0
    %v737 = vadd.f32 0.0, %v736
    %v738 = vpop.f32.mrb[0].mxu0
    %739 = vmatprep.mubr.f32.mxu0 0.0
    %740 = vmatmul.mubr.f32.gmra.mrb[0].mxu0 %v234
    %v741 = vpop.f32.mrb[0].mxu0
    %v742 = vadd.f32 0.0, %v741
    %v743 = vpop.f32.mrb[0].mxu0
    %744 = vdwg.mxu0
    %v745 = vmul.f32 %v732, %v658
    %v746 = vmul.f32 %v737, %v659
    %v747 = vmul.f32 %v742, %v660
    %vm748 = vcmask 195584
    %v750 = vsel %vm748, %v149, 0
    %752 = vmatprep.subr.mxu0 0.0
    %753 = vmatpush1.msra.mxu0 %v745
    %754 = vmatprep.subr.mxu0 0.0
    %755 = vmatpush1.msra.mxu0 %v746
    %756 = vmatprep.subr.mxu0 0.0
    %757 = vmatpush1.msra.mxu0 %v747
    %758 = vmatprep.subr.mxu0 0.0
    %759 = vmatpush1.msra.mxu0 0.0
    %760 = vmatprep.subr.mxu0 0.0
    %761 = vmatpush1.msra.mxu0 0.0
    %762 = vmatprep.subr.mxu0 0.0
    %763 = vmatpush1.msra.mxu0 0.0
    %764 = vmatprep.subr.mxu0 0.0
    %765 = vmatpush1.msra.mxu0 0.0
    %766 = vmatprep.subr.mxu0 0.0
    %767 = vmatpush1.msra.mxu0 0.0
    %768 = vmatprep.subr.mxu0 0.0
    %769 = vmatpush1.msra.mxu0 0.0
    %770 = vmatprep.subr.mxu0 0.0
    %771 = vmatpush1.msra.mxu0 0.0
    %772 = vmatprep.subr.mxu0 0.0
    %773 = vmatpush1.msra.mxu0 0.0
    %774 = vmatprep.subr.mxu0 0.0
    %775 = vmatpush1.msra.mxu0 0.0
    %776 = vmatprep.subr.mxu0 0.0
    %777 = vmatpush1.msra.mxu0 0.0
    %778 = vmatprep.subr.mxu0 0.0
    %779 = vmatpush1.msra.mxu0 0.0
    %780 = vmatprep.subr.mxu0 0.0
    %781 = vmatpush1.msra.mxu0 0.0
    %782 = vmatprep.subr.mxu0 0.0
    %783 = vmatpush1.msra.mxu0 0.0
    %784 = vmatprep.subr.mxu0 0.0
    %785 = vmatpush1.msra.mxu0 0.0
    %786 = vmatprep.subr.mxu0 0.0
    %787 = vmatpush1.msra.mxu0 0.0
    %788 = vmatprep.subr.mxu0 0.0
    %789 = vmatpush1.msra.mxu0 0.0
    %790 = vmatprep.subr.mxu0 0.0
    %791 = vmatpush1.msra.mxu0 0.0
    %792 = vmatprep.subr.mxu0 0.0
    %793 = vmatpush1.msra.mxu0 0.0
    %794 = vmatprep.subr.mxu0 0.0
    %795 = vmatpush1.msra.mxu0 0.0
    %796 = vmatprep.subr.mxu0 0.0
    %797 = vmatpush1.msra.mxu0 0.0
    %798 = vmatprep.subr.mxu0 0.0
    %799 = vmatpush1.msra.mxu0 0.0
    %800 = vmatprep.subr.mxu0 0.0
    %801 = vmatpush1.msra.mxu0 0.0
    %802 = vmatprep.subr.mxu0 0.0
    %803 = vmatpush1.msra.mxu0 0.0
    %804 = vmatprep.subr.mxu0 0.0
    %805 = vmatpush1.msra.mxu0 0.0
    %806 = vmatprep.subr.mxu0 0.0
    %807 = vmatpush1.msra.mxu0 0.0
    %808 = vmatprep.subr.mxu0 0.0
    %809 = vmatpush1.msra.mxu0 0.0
    %810 = vmatprep.subr.mxu0 0.0
    %811 = vmatpush1.msra.mxu0 0.0
    %812 = vmatprep.subr.mxu0 0.0
    %813 = vmatpush1.msra.mxu0 0.0
    %814 = vmatprep.subr.mxu0 0.0
    %815 = vmatpush1.msra.mxu0 0.0
    %816 = vmatprep.mubr.f32.mxu0 0.0
    %817 = vmatmul.mubr.f32.gmra.mrb[0].mxu0 %v750
    %v818 = vpop.f32.mrb[0].mxu0
    %v819 = vadd.f32 0.0, %v818
    %v820 = vpop.f32.mrb[0].mxu0
    %821 = vdwg.mxu0
    %v822 = vld [vmem:[%s31] sm:$0xff]
    %v823 = vld [vmem:[%s31 + $0x8] sm:$0xff]
    %v824 = vld [vmem:[%s31 + $0x10] sm:$0xff]
    %v825 = vld [vmem:[%s31 + $0x18] sm:$0xff]
    %v827 = vsel %vm355, %v819, 0
    %829 = vmatprep.subr.mxu0 0.0
    %830 = vmatpush1.msra.mxu0 %v822
    %831 = vmatprep.subr.mxu0 0.0
    %832 = vmatpush1.msra.mxu0 %v823
    %833 = vmatprep.subr.mxu0 0.0
    %834 = vmatpush1.msra.mxu0 %v824
    %835 = vmatprep.subr.mxu0 0.0
    %836 = vmatpush1.msra.mxu0 %v825
    %837 = vmatprep.subr.mxu0 0.0
    %838 = vmatpush1.msra.mxu0 0.0
    %839 = vmatprep.subr.mxu0 0.0
    %840 = vmatpush1.msra.mxu0 0.0
    %841 = vmatprep.subr.mxu0 0.0
    %842 = vmatpush1.msra.mxu0 0.0
    %843 = vmatprep.subr.mxu0 0.0
    %844 = vmatpush1.msra.mxu0 0.0
    %845 = vmatprep.subr.mxu0 0.0
    %846 = vmatpush1.msra.mxu0 0.0
    %847 = vmatprep.subr.mxu0 0.0
    %848 = vmatpush1.msra.mxu0 0.0
    %849 = vmatprep.subr.mxu0 0.0
    %850 = vmatpush1.msra.mxu0 0.0
    %851 = vmatprep.subr.mxu0 0.0
    %852 = vmatpush1.msra.mxu0 0.0
    %853 = vmatprep.subr.mxu0 0.0
    %854 = vmatpush1.msra.mxu0 0.0
    %855 = vmatprep.subr.mxu0 0.0
    %856 = vmatpush1.msra.mxu0 0.0
    %857 = vmatprep.subr.mxu0 0.0
    %858 = vmatpush1.msra.mxu0 0.0
    %859 = vmatprep.subr.mxu0 0.0
    %860 = vmatpush1.msra.mxu0 0.0
    %861 = vmatprep.subr.mxu0 0.0
    %862 = vmatpush1.msra.mxu0 0.0
    %863 = vmatprep.subr.mxu0 0.0
    %864 = vmatpush1.msra.mxu0 0.0
    %865 = vmatprep.subr.mxu0 0.0
    %866 = vmatpush1.msra.mxu0 0.0
    %867 = vmatprep.subr.mxu0 0.0
    %868 = vmatpush1.msra.mxu0 0.0
    %869 = vmatprep.subr.mxu0 0.0
    %870 = vmatpush1.msra.mxu0 0.0
    %871 = vmatprep.subr.mxu0 0.0
    %872 = vmatpush1.msra.mxu0 0.0
    %873 = vmatprep.subr.mxu0 0.0
    %874 = vmatpush1.msra.mxu0 0.0
    %875 = vmatprep.subr.mxu0 0.0
    %876 = vmatpush1.msra.mxu0 0.0
    %877 = vmatprep.subr.mxu0 0.0
    %878 = vmatpush1.msra.mxu0 0.0
    %879 = vmatprep.subr.mxu0 0.0
    %880 = vmatpush1.msra.mxu0 0.0
    %881 = vmatprep.subr.mxu0 0.0
    %882 = vmatpush1.msra.mxu0 0.0
    %883 = vmatprep.subr.mxu0 0.0
    %884 = vmatpush1.msra.mxu0 0.0
    %885 = vmatprep.subr.mxu0 0.0
    %886 = vmatpush1.msra.mxu0 0.0
    %887 = vmatprep.subr.mxu0 0.0
    %888 = vmatpush1.msra.mxu0 0.0
    %889 = vmatprep.subr.mxu0 0.0
    %890 = vmatpush1.msra.mxu0 0.0
    %891 = vmatprep.subr.mxu0 0.0
    %892 = vmatpush1.msra.mxu0 0.0
    %893 = vmatprep.mubr.f32.mxu0 0.0
    %894 = vmatmul.mubr.f32.gmra.mrb[0].mxu0 %v827
    %v895 = vpop.f32.mrb[0].mxu0
    %v896 = vadd.f32 0.0, %v895
    %v897 = vpop.f32.mrb[0].mxu0
    %898 = vdwg.mxu0
    %v899 = vld [vmem:[%s33] sm:$0xff]
    %v900 = vld [vmem:[%s33 + $0x8] sm:$0xff]
    %v901 = vld [vmem:[%s33 + $0x10] sm:$0xff]
    %v902 = vld [vmem:[%s33 + $0x18] sm:$0xff]
    %v903 = vld [vmem:[%s33 + $0x20] sm:$0xff]
    %v904 = vld [vmem:[%s33 + $0x28] sm:$0xff]
    %v905 = vld [vmem:[%s33 + $0x30] sm:$0xff]
    %v906 = vld [vmem:[%s33 + $0x38] sm:$0xff]
    %v907 = vld [vmem:[%s33 + $0x40] sm:$0xff]
    %v908 = vld [vmem:[%s33 + $0x48] sm:$0xff]
    %v909 = vld [vmem:[%s33 + $0x50] sm:$0xff]
    %v910 = vld [vmem:[%s33 + $0x58] sm:$0xff]
    %v911 = vld [vmem:[%s35] sm:$0x1]
    %v912 = vld [vmem:[%s35 + $0x1] sm:$0x1]
    %v913 = vld [vmem:[%s35 + $0x2] sm:$0x1]
    %v915 = vlaneseq
    %v916 = vshrl.u32 %v915, 7
    %v917 = vsub.s32 0, %v916
    %v918 = vrot.slane %v911, %v917
    %v921 = vsel %vm355, %v896, 0
    %923 = vmatprep.subr.mxu0 0.0
    %924 = vmatpush1.msra.mxu0 %v899
    %925 = vmatprep.subr.mxu0 0.0
    %926 = vmatpush1.msra.mxu0 %v900
    %927 = vmatprep.subr.mxu0 0.0
    %928 = vmatpush1.msra.mxu0 %v901
    %929 = vmatprep.subr.mxu0 0.0
    %930 = vmatpush1.msra.mxu0 %v902
    %931 = vmatprep.subr.mxu0 0.0
    %932 = vmatpush1.msra.mxu0 0.0
    %933 = vmatprep.subr.mxu0 0.0
    %934 = vmatpush1.msra.mxu0 0.0
    %935 = vmatprep.subr.mxu0 0.0
    %936 = vmatpush1.msra.mxu0 0.0
    %937 = vmatprep.subr.mxu0 0.0
    %938 = vmatpush1.msra.mxu0 0.0
    %939 = vmatprep.subr.mxu0 0.0
    %940 = vmatpush1.msra.mxu0 0.0
    %941 = vmatprep.subr.mxu0 0.0
    %942 = vmatpush1.msra.mxu0 0.0
    %943 = vmatprep.subr.mxu0 0.0
    %944 = vmatpush1.msra.mxu0 0.0
    %945 = vmatprep.subr.mxu0 0.0
    %946 = vmatpush1.msra.mxu0 0.0
    %947 = vmatprep.subr.mxu0 0.0
    %948 = vmatpush1.msra.mxu0 0.0
    %949 = vmatprep.subr.mxu0 0.0
    %950 = vmatpush1.msra.mxu0 0.0
    %951 = vmatprep.subr.mxu0 0.0
    %952 = vmatpush1.msra.mxu0 0.0
    %953 = vmatprep.subr.mxu0 0.0
    %954 = vmatpush1.msra.mxu0 0.0
    %955 = vmatprep.subr.mxu0 0.0
    %956 = vmatpush1.msra.mxu0 0.0
    %957 = vmatprep.subr.mxu0 0.0
    %958 = vmatpush1.msra.mxu0 0.0
    %959 = vmatprep.subr.mxu0 0.0
    %960 = vmatpush1.msra.mxu0 0.0
    %961 = vmatprep.subr.mxu0 0.0
    %962 = vmatpush1.msra.mxu0 0.0
    %963 = vmatprep.subr.mxu0 0.0
    %964 = vmatpush1.msra.mxu0 0.0
    %965 = vmatprep.subr.mxu0 0.0
    %966 = vmatpush1.msra.mxu0 0.0
    %967 = vmatprep.subr.mxu0 0.0
    %968 = vmatpush1.msra.mxu0 0.0
    %969 = vmatprep.subr.mxu0 0.0
    %970 = vmatpush1.msra.mxu0 0.0
    %971 = vmatprep.subr.mxu0 0.0
    %972 = vmatpush1.msra.mxu0 0.0
    %973 = vmatprep.subr.mxu0 0.0
    %974 = vmatpush1.msra.mxu0 0.0
    %975 = vmatprep.subr.mxu0 0.0
    %976 = vmatpush1.msra.mxu0 0.0
    %977 = vmatprep.subr.mxu0 0.0
    %978 = vmatpush1.msra.mxu0 0.0
    %979 = vmatprep.subr.mxu0 0.0
    %980 = vmatpush1.msra.mxu0 0.0
    %981 = vmatprep.subr.mxu0 0.0
    %982 = vmatpush1.msra.mxu0 0.0
    %983 = vmatprep.subr.mxu0 0.0
    %984 = vmatpush1.msra.mxu0 0.0
    %985 = vmatprep.subr.mxu0 0.0
    %986 = vmatpush1.msra.mxu0 0.0
    %987 = vmatprep.mubr.f32.mxu0 0.0
    %988 = vmatmul.mubr.f32.gmra.mrb[0].mxu0 %v921
    %v989 = vpop.f32.mrb[0].mxu0
    %v990 = vadd.f32 %v918, %v989
    %v991 = vpop.f32.mrb[0].mxu0
    %992 = vdwg.mxu0
    %v993 = vxor.u32 %v990, 2147483648
    %v994 = vmul.f32 %v993, 1.442695
    %v995 = vpow.pop %v994
    %v996 = vadd.f32 %v995, 1.0
    %v997 = vrcp.pop %v996
    %v998 = vmul.f32 1.0, %v997
    %v999 = vmul.f32 %v990, %v998
    %v1001 = vlaneseq
    %v1002 = vshrl.u32 %v1001, 7
    %v1003 = vsub.s32 0, %v1002
    %v1004 = vrot.slane %v912, %v1003
    %v1007 = vsel %vm355, %v999, 0
    %1009 = vmatprep.subr.mxu0 0.0
    %1010 = vmatpush1.msra.mxu0 %v903
    %1011 = vmatprep.subr.mxu0 0.0
    %1012 = vmatpush1.msra.mxu0 %v904
    %1013 = vmatprep.subr.mxu0 0.0
    %1014 = vmatpush1.msra.mxu0 %v905
    %1015 = vmatprep.subr.mxu0 0.0
    %1016 = vmatpush1.msra.mxu0 %v906
    %1017 = vmatprep.subr.mxu0 0.0
    %1018 = vmatpush1.msra.mxu0 0.0
    %1019 = vmatprep.subr.mxu0 0.0
    %1020 = vmatpush1.msra.mxu0 0.0
    %1021 = vmatprep.subr.mxu0 0.0
    %1022 = vmatpush1.msra.mxu0 0.0
    %1023 = vmatprep.subr.mxu0 0.0
    %1024 = vmatpush1.msra.mxu0 0.0
    %1025 = vmatprep.subr.mxu0 0.0
    %1026 = vmatpush1.msra.mxu0 0.0
    %1027 = vmatprep.subr.mxu0 0.0
    %1028 = vmatpush1.msra.mxu0 0.0
    %1029 = vmatprep.subr.mxu0 0.0
    %1030 = vmatpush1.msra.mxu0 0.0
    %1031 = vmatprep.subr.mxu0 0.0
    %1032 = vmatpush1.msra.mxu0 0.0
    %1033 = vmatprep.subr.mxu0 0.0
    %1034 = vmatpush1.msra.mxu0 0.0
    %1035 = vmatprep.subr.mxu0 0.0
    %1036 = vmatpush1.msra.mxu0 0.0
    %1037 = vmatprep.subr.mxu0 0.0
    %1038 = vmatpush1.msra.mxu0 0.0
    %1039 = vmatprep.subr.mxu0 0.0
    %1040 = vmatpush1.msra.mxu0 0.0
    %1041 = vmatprep.subr.mxu0 0.0
    %1042 = vmatpush1.msra.mxu0 0.0
    %1043 = vmatprep.subr.mxu0 0.0
    %1044 = vmatpush1.msra.mxu0 0.0
    %1045 = vmatprep.subr.mxu0 0.0
    %1046 = vmatpush1.msra.mxu0 0.0
    %1047 = vmatprep.subr.mxu0 0.0
    %1048 = vmatpush1.msra.mxu0 0.0
    %1049 = vmatprep.subr.mxu0 0.0
    %1050 = vmatpush1.msra.mxu0 0.0
    %1051 = vmatprep.subr.mxu0 0.0
    %1052 = vmatpush1.msra.mxu0 0.0
    %1053 = vmatprep.subr.mxu0 0.0
    %1054 = vmatpush1.msra.mxu0 0.0
    %1055 = vmatprep.subr.mxu0 0.0
    %1056 = vmatpush1.msra.mxu0 0.0
    %1057 = vmatprep.subr.mxu0 0.0
    %1058 = vmatpush1.msra.mxu0 0.0
    %1059 = vmatprep.subr.mxu0 0.0
    %1060 = vmatpush1.msra.mxu0 0.0
    %1061 = vmatprep.subr.mxu0 0.0
    %1062 = vmatpush1.msra.mxu0 0.0
    %1063 = vmatprep.subr.mxu0 0.0
    %1064 = vmatpush1.msra.mxu0 0.0
    %1065 = vmatprep.subr.mxu0 0.0
    %1066 = vmatpush1.msra.mxu0 0.0
    %1067 = vmatprep.subr.mxu0 0.0
    %1068 = vmatpush1.msra.mxu0 0.0
    %1069 = vmatprep.subr.mxu0 0.0
    %1070 = vmatpush1.msra.mxu0 0.0
    %1071 = vmatprep.subr.mxu0 0.0
    %1072 = vmatpush1.msra.mxu0 0.0
    %1073 = vmatprep.mubr.f32.mxu0 0.0
    %1074 = vmatmul.mubr.f32.gmra.mrb[0].mxu0 %v1007
    %v1075 = vpop.f32.mrb[0].mxu0
    %v1076 = vadd.f32 %v1004, %v1075
    %v1077 = vpop.f32.mrb[0].mxu0
    %1078 = vdwg.mxu0
    %v1079 = vxor.u32 %v1076, 2147483648
    %v1080 = vmul.f32 %v1079, 1.442695
    %v1081 = vpow.pop %v1080
    %v1082 = vadd.f32 %v1081, 1.0
    %v1083 = vrcp.pop %v1082
    %v1084 = vmul.f32 1.0, %v1083
    %v1085 = vmul.f32 %v1076, %v1084
    %v1087 = vlaneseq
    %v1088 = vshrl.u32 %v1087, 7
    %v1089 = vsub.s32 0, %v1088
    %v1090 = vrot.slane %v913, %v1089
    %v1093 = vsel %vm355, %v1085, 0
    %1095 = vmatprep.subr.mxu0 0.0
    %1096 = vmatpush1.msra.mxu0 %v907
    %1097 = vmatprep.subr.mxu0 0.0
    %1098 = vmatpush1.msra.mxu0 %v908
    %1099 = vmatprep.subr.mxu0 0.0
    %1100 = vmatpush1.msra.mxu0 %v909
    %1101 = vmatprep.subr.mxu0 0.0
    %1102 = vmatpush1.msra.mxu0 %v910
    %1103 = vmatprep.subr.mxu0 0.0
    %1104 = vmatpush1.msra.mxu0 0.0
    %1105 = vmatprep.subr.mxu0 0.0
    %1106 = vmatpush1.msra.mxu0 0.0
    %1107 = vmatprep.subr.mxu0 0.0
    %1108 = vmatpush1.msra.mxu0 0.0
    %1109 = vmatprep.subr.mxu0 0.0
    %1110 = vmatpush1.msra.mxu0 0.0
    %1111 = vmatprep.subr.mxu0 0.0
    %1112 = vmatpush1.msra.mxu0 0.0
    %1113 = vmatprep.subr.mxu0 0.0
    %1114 = vmatpush1.msra.mxu0 0.0
    %1115 = vmatprep.subr.mxu0 0.0
    %1116 = vmatpush1.msra.mxu0 0.0
    %1117 = vmatprep.subr.mxu0 0.0
    %1118 = vmatpush1.msra.mxu0 0.0
    %1119 = vmatprep.subr.mxu0 0.0
    %1120 = vmatpush1.msra.mxu0 0.0
    %1121 = vmatprep.subr.mxu0 0.0
    %1122 = vmatpush1.msra.mxu0 0.0
    %1123 = vmatprep.subr.mxu0 0.0
    %1124 = vmatpush1.msra.mxu0 0.0
    %1125 = vmatprep.subr.mxu0 0.0
    %1126 = vmatpush1.msra.mxu0 0.0
    %1127 = vmatprep.subr.mxu0 0.0
    %1128 = vmatpush1.msra.mxu0 0.0
    %1129 = vmatprep.subr.mxu0 0.0
    %1130 = vmatpush1.msra.mxu0 0.0
    %1131 = vmatprep.subr.mxu0 0.0
    %1132 = vmatpush1.msra.mxu0 0.0
    %1133 = vmatprep.subr.mxu0 0.0
    %1134 = vmatpush1.msra.mxu0 0.0
    %1135 = vmatprep.subr.mxu0 0.0
    %1136 = vmatpush1.msra.mxu0 0.0
    %1137 = vmatprep.subr.mxu0 0.0
    %1138 = vmatpush1.msra.mxu0 0.0
    %1139 = vmatprep.subr.mxu0 0.0
    %1140 = vmatpush1.msra.mxu0 0.0
    %1141 = vmatprep.subr.mxu0 0.0
    %1142 = vmatpush1.msra.mxu0 0.0
    %1143 = vmatprep.subr.mxu0 0.0
    %1144 = vmatpush1.msra.mxu0 0.0
    %1145 = vmatprep.subr.mxu0 0.0
    %1146 = vmatpush1.msra.mxu0 0.0
    %1147 = vmatprep.subr.mxu0 0.0
    %1148 = vmatpush1.msra.mxu0 0.0
    %1149 = vmatprep.subr.mxu0 0.0
    %1150 = vmatpush1.msra.mxu0 0.0
    %1151 = vmatprep.subr.mxu0 0.0
    %1152 = vmatpush1.msra.mxu0 0.0
    %1153 = vmatprep.subr.mxu0 0.0
    %1154 = vmatpush1.msra.mxu0 0.0
    %1155 = vmatprep.subr.mxu0 0.0
    %1156 = vmatpush1.msra.mxu0 0.0
    %1157 = vmatprep.subr.mxu0 0.0
    %1158 = vmatpush1.msra.mxu0 0.0
    %1159 = vmatprep.mubr.f32.mxu0 0.0
    %1160 = vmatmul.mubr.f32.gmra.mrb[0].mxu0 %v1093
    %v1161 = vpop.f32.mrb[0].mxu0
    %v1162 = vadd.f32 %v1090, %v1161
    %v1163 = vpop.f32.mrb[0].mxu0
    %1164 = vdwg.mxu0
    %v1165 = vxor.u32 %v1162, 2147483648
    %v1166 = vmul.f32 %v1165, 1.442695
    %v1167 = vpow.pop %v1166
    %v1168 = vadd.f32 %v1167, 1.0
    %v1169 = vrcp.pop %v1168
    %v1170 = vmul.f32 1.0, %v1169
    %v1171 = vmul.f32 %v1162, %v1170
    %v1172 = vld [vmem:[%s37] sm:$0xff]
    %v1173 = vld [vmem:[%s37 + $0x8] sm:$0xff]
    %v1174 = vld [vmem:[%s37 + $0x10] sm:$0xff]
    %v1175 = vld [vmem:[%s37 + $0x18] sm:$0xff]
    %v1176 = vld [vmem:[%s39] sm:$0xff]
    %v1177 = vld [vmem:[%s39 + $0x8] sm:$0xff]
    %v1178 = vld [vmem:[%s39 + $0x10] sm:$0xff]
    %v1179 = vld [vmem:[%s39 + $0x18] sm:$0xff]
    %v1180 = vld [vmem:[%s41] sm:$0x1]
    %v1182 = vlaneseq
    %v1183 = vshrl.u32 %v1182, 7
    %v1184 = vsub.s32 0, %v1183
    %v1185 = vrot.slane %v1180, %v1184
    %v1188 = vsel %vm355, %v658, 0
    %v1191 = vsel %vm355, %v659, 0
    %v1194 = vsel %vm355, %v660, 0
    %1196 = vmatprep.subr.mxu0 0.0
    %1197 = vmatpush1.msra.mxu0 %v1176
    %1198 = vmatprep.subr.mxu0 0.0
    %1199 = vmatpush1.msra.mxu0 %v1177
    %1200 = vmatprep.subr.mxu0 0.0
    %1201 = vmatpush1.msra.mxu0 %v1178
    %1202 = vmatprep.subr.mxu0 0.0
    %1203 = vmatpush1.msra.mxu0 %v1179
    %1204 = vmatprep.subr.mxu0 0.0
    %1205 = vmatpush1.msra.mxu0 0.0
    %1206 = vmatprep.subr.mxu0 0.0
    %1207 = vmatpush1.msra.mxu0 0.0
    %1208 = vmatprep.subr.mxu0 0.0
    %1209 = vmatpush1.msra.mxu0 0.0
    %1210 = vmatprep.subr.mxu0 0.0
    %1211 = vmatpush1.msra.mxu0 0.0
    %1212 = vmatprep.subr.mxu0 0.0
    %1213 = vmatpush1.msra.mxu0 0.0
    %1214 = vmatprep.subr.mxu0 0.0
    %1215 = vmatpush1.msra.mxu0 0.0
    %1216 = vmatprep.subr.mxu0 0.0
    %1217 = vmatpush1.msra.mxu0 0.0
    %1218 = vmatprep.subr.mxu0 0.0
    %1219 = vmatpush1.msra.mxu0 0.0
    %1220 = vmatprep.subr.mxu0 0.0
    %1221 = vmatpush1.msra.mxu0 0.0
    %1222 = vmatprep.subr.mxu0 0.0
    %1223 = vmatpush1.msra.mxu0 0.0
    %1224 = vmatprep.subr.mxu0 0.0
    %1225 = vmatpush1.msra.mxu0 0.0
    %1226 = vmatprep.subr.mxu0 0.0
    %1227 = vmatpush1.msra.mxu0 0.0
    %1228 = vmatprep.subr.mxu0 0.0
    %1229 = vmatpush1.msra.mxu0 0.0
    %1230 = vmatprep.subr.mxu0 0.0
    %1231 = vmatpush1.msra.mxu0 0.0
    %1232 = vmatprep.subr.mxu0 0.0
    %1233 = vmatpush1.msra.mxu0 0.0
    %1234 = vmatprep.subr.mxu0 0.0
    %1235 = vmatpush1.msra.mxu0 0.0
    %1236 = vmatprep.subr.mxu0 0.0
    %1237 = vmatpush1.msra.mxu0 0.0
    %1238 = vmatprep.subr.mxu0 0.0
    %1239 = vmatpush1.msra.mxu0 0.0
    %1240 = vmatprep.subr.mxu0 0.0
    %1241 = vmatpush1.msra.mxu0 0.0
    %1242 = vmatprep.subr.mxu0 0.0
    %1243 = vmatpush1.msra.mxu0 0.0
    %1244 = vmatprep.subr.mxu0 0.0
    %1245 = vmatpush1.msra.mxu0 0.0
    %1246 = vmatprep.subr.mxu0 0.0
    %1247 = vmatpush1.msra.mxu0 0.0
    %1248 = vmatprep.subr.mxu0 0.0
    %1249 = vmatpush1.msra.mxu0 0.0
    %1250 = vmatprep.subr.mxu0 0.0
    %1251 = vmatpush1.msra.mxu0 0.0
    %1252 = vmatprep.subr.mxu0 0.0
    %1253 = vmatpush1.msra.mxu0 0.0
    %1254 = vmatprep.subr.mxu0 0.0
    %1255 = vmatpush1.msra.mxu0 0.0
    %1256 = vmatprep.subr.mxu0 0.0
    %1257 = vmatpush1.msra.mxu0 0.0
    %1258 = vmatprep.subr.mxu0 0.0
    %1259 = vmatpush1.msra.mxu0 0.0
    %1260 = vmatprep.mubr.f32.mxu0 0.0
    %1261 = vmatmul.mubr.f32.gmra.mrb[0].mxu0 %v1188
    %v1262 = vpop.f32.mrb[0].mxu0
    %v1263 = vadd.f32 %v1185, %v1262
    %v1264 = vpop.f32.mrb[0].mxu0
    %1265 = vmatprep.mubr.f32.mxu0 0.0
    %1266 = vmatmul.mubr.f32.gmra.mrb[0].mxu0 %v1191
    %v1267 = vpop.f32.mrb[0].mxu0
    %v1268 = vadd.f32 %v1185, %v1267
    %v1269 = vpop.f32.mrb[0].mxu0
    %1270 = vmatprep.mubr.f32.mxu0 0.0
    %1271 = vmatmul.mubr.f32.gmra.mrb[0].mxu0 %v1194
    %v1272 = vpop.f32.mrb[0].mxu0
    %v1273 = vadd.f32 %v1185, %v1272
    %v1274 = vpop.f32.mrb[0].mxu0
    %1275 = vdwg.mxu0
    %v1276 = vxor.u32 %v1263, 2147483648
    %v1277 = vxor.u32 %v1268, 2147483648
    %v1278 = vxor.u32 %v1273, 2147483648
    %v1279 = vmul.f32 %v1276, 1.442695
    %v1280 = vpow.pop %v1279
    %v1281 = vmul.f32 %v1277, 1.442695
    %v1282 = vpow.pop %v1281
    %v1283 = vmul.f32 %v1278, 1.442695
    %v1284 = vpow.pop %v1283
    %v1285 = vadd.f32 %v1280, 1.0
    %v1286 = vadd.f32 %v1282, 1.0
    %v1287 = vadd.f32 %v1284, 1.0
    %v1288 = vrcp.pop %v1285
    %v1289 = vmul.f32 1.0, %v1288
    %v1290 = vrcp.pop %v1286
    %v1291 = vmul.f32 1.0, %v1290
    %v1292 = vrcp.pop %v1287
    %v1293 = vmul.f32 1.0, %v1292
    %v1294 = vmul.f32 %v1263, %v1289
    %v1295 = vmul.f32 %v1268, %v1291
    %v1296 = vmul.f32 %v1273, %v1293
    %v1297 = vld [vmem:[%s43] sm:$0x3f]
    %v1299 = vsel %vm236, %v1297, 0
    %1301 = vmatprep.subr.mxu0 0.0
    %1302 = vmatpush1.msra.mxu0 %v1299
    %1303 = vmatprep.subr.mxu0 0.0
    %1304 = vmatpush1.msra.mxu0 0.0
    %1305 = vmatprep.subr.mxu0 0.0
    %1306 = vmatpush1.msra.mxu0 0.0
    %1307 = vmatprep.subr.mxu0 0.0
    %1308 = vmatpush1.msra.mxu0 0.0
    %1309 = vmatprep.subr.mxu0 0.0
    %1310 = vmatpush1.msra.mxu0 0.0
    %1311 = vmatprep.subr.mxu0 0.0
    %1312 = vmatpush1.msra.mxu0 0.0
    %1313 = vmatprep.subr.mxu0 0.0
    %1314 = vmatpush1.msra.mxu0 0.0
    %1315 = vmatprep.subr.mxu0 0.0
    %1316 = vmatpush1.msra.mxu0 0.0
    %1317 = vmatprep.subr.mxu0 0.0
    %1318 = vmatpush1.msra.mxu0 0.0
    %1319 = vmatprep.subr.mxu0 0.0
    %1320 = vmatpush1.msra.mxu0 0.0
    %1321 = vmatprep.subr.mxu0 0.0
    %1322 = vmatpush1.msra.mxu0 0.0
    %1323 = vmatprep.subr.mxu0 0.0
    %1324 = vmatpush1.msra.mxu0 0.0
    %1325 = vmatprep.subr.mxu0 0.0
    %1326 = vmatpush1.msra.mxu0 0.0
    %1327 = vmatprep.subr.mxu0 0.0
    %1328 = vmatpush1.msra.mxu0 0.0
    %1329 = vmatprep.subr.mxu0 0.0
    %1330 = vmatpush1.msra.mxu0 0.0
    %1331 = vmatprep.subr.mxu0 0.0
    %1332 = vmatpush1.msra.mxu0 0.0
    %1333 = vmatprep.subr.mxu0 0.0
    %1334 = vmatpush1.msra.mxu0 0.0
    %1335 = vmatprep.subr.mxu0 0.0
    %1336 = vmatpush1.msra.mxu0 0.0
    %1337 = vmatprep.subr.mxu0 0.0
    %1338 = vmatpush1.msra.mxu0 0.0
    %1339 = vmatprep.subr.mxu0 0.0
    %1340 = vmatpush1.msra.mxu0 0.0
    %1341 = vmatprep.subr.mxu0 0.0
    %1342 = vmatpush1.msra.mxu0 0.0
    %1343 = vmatprep.subr.mxu0 0.0
    %1344 = vmatpush1.msra.mxu0 0.0
    %1345 = vmatprep.subr.mxu0 0.0
    %1346 = vmatpush1.msra.mxu0 0.0
    %1347 = vmatprep.subr.mxu0 0.0
    %1348 = vmatpush1.msra.mxu0 0.0
    %1349 = vmatprep.subr.mxu0 0.0
    %1350 = vmatpush1.msra.mxu0 0.0
    %1351 = vmatprep.subr.mxu0 0.0
    %1352 = vmatpush1.msra.mxu0 0.0
    %1353 = vmatprep.subr.mxu0 0.0
    %1354 = vmatpush1.msra.mxu0 0.0
    %1355 = vmatprep.subr.mxu0 0.0
    %1356 = vmatpush1.msra.mxu0 0.0
    %1357 = vmatprep.subr.mxu0 0.0
    %1358 = vmatpush1.msra.mxu0 0.0
    %1359 = vmatprep.subr.mxu0 0.0
    %1360 = vmatpush1.msra.mxu0 0.0
    %1361 = vmatprep.subr.mxu0 0.0
    %1362 = vmatpush1.msra.mxu0 0.0
    %1363 = vmatprep.subr.mxu0 0.0
    %1364 = vmatpush1.msra.mxu0 0.0
    %1365 = vmatprep.mubr.f32.mxu0 0.0
    %1366 = vmatmul.mubr.f32.gmra.mrb[0].mxu0 %v228
    %v1367 = vpop.f32.mrb[0].mxu0
    %v1368 = vadd.f32 0.0, %v1367
    %v1369 = vpop.f32.mrb[0].mxu0
    %1370 = vmatprep.mubr.f32.mxu0 0.0
    %1371 = vmatmul.mubr.f32.gmra.mrb[0].mxu0 %v231
    %v1372 = vpop.f32.mrb[0].mxu0
    %v1373 = vadd.f32 0.0, %v1372
    %v1374 = vpop.f32.mrb[0].mxu0
    %1375 = vmatprep.mubr.f32.mxu0 0.0
    %1376 = vmatmul.mubr.f32.gmra.mrb[0].mxu0 %v234
    %v1377 = vpop.f32.mrb[0].mxu0
    %v1378 = vadd.f32 0.0, %v1377
    %v1379 = vpop.f32.mrb[0].mxu0
    %1380 = vdwg.mxu0
    %1384 = vrot.lane.b32.xlu0 %v1368, 32
    %v1385 = vpop.permute.xlu0 %1384
    %1386 = vrot.lane.b32.xlu0 %v1373, 32
    %v1387 = vpop.permute.xlu0 %1386
    %1388 = vrot.lane.b32.xlu0 %v1378, 32
    %v1389 = vpop.permute.xlu0 %1388
    %v1393 = vmul.f32 %v1294, %v1385
    %v1394 = vmul.f32 %v1295, %v1387
    %v1395 = vmul.f32 %v1296, %v1389
    %v1396 = vld [vmem:[%s45] sm:$0xff]
    %v1397 = vld [vmem:[%s45 + $0x8] sm:$0xff]
    %v1398 = vld [vmem:[%s45 + $0x10] sm:$0xff]
    %v1399 = vld [vmem:[%s45 + $0x18] sm:$0xff]
    %1403 = vrot.lane.b32.xlu0 %v1393, 96
    %v1404 = vpop.permute.xlu0 %1403
    %1405 = vrot.lane.b32.xlu0 %v1394, 96
    %v1406 = vpop.permute.xlu0 %1405
    %1407 = vrot.lane.b32.xlu0 %v1395, 96
    %v1408 = vpop.permute.xlu0 %1407
    %v1409 = vsel %vm355, %v1404, 0
    %v1411 = vsel %vm355, %v1406, 0
    %v1413 = vsel %vm355, %v1408, 0
    %1415 = vmatprep.subr.mxu0 0.0
    %1416 = vmatpush1.msra.mxu0 %v1396
    %1417 = vmatprep.subr.mxu0 0.0
    %1418 = vmatpush1.msra.mxu0 %v1397
    %1419 = vmatprep.subr.mxu0 0.0
    %1420 = vmatpush1.msra.mxu0 %v1398
    %1421 = vmatprep.subr.mxu0 0.0
    %1422 = vmatpush1.msra.mxu0 %v1399
    %1423 = vmatprep.subr.mxu0 0.0
    %1424 = vmatpush1.msra.mxu0 0.0
    %1425 = vmatprep.subr.mxu0 0.0
    %1426 = vmatpush1.msra.mxu0 0.0
    %1427 = vmatprep.subr.mxu0 0.0
    %1428 = vmatpush1.msra.mxu0 0.0
    %1429 = vmatprep.subr.mxu0 0.0
    %1430 = vmatpush1.msra.mxu0 0.0
    %1431 = vmatprep.subr.mxu0 0.0
    %1432 = vmatpush1.msra.mxu0 0.0
    %1433 = vmatprep.subr.mxu0 0.0
    %1434 = vmatpush1.msra.mxu0 0.0
    %1435 = vmatprep.subr.mxu0 0.0
    %1436 = vmatpush1.msra.mxu0 0.0
    %1437 = vmatprep.subr.mxu0 0.0
    %1438 = vmatpush1.msra.mxu0 0.0
    %1439 = vmatprep.subr.mxu0 0.0
    %1440 = vmatpush1.msra.mxu0 0.0
    %1441 = vmatprep.subr.mxu0 0.0
    %1442 = vmatpush1.msra.mxu0 0.0
    %1443 = vmatprep.subr.mxu0 0.0
    %1444 = vmatpush1.msra.mxu0 0.0
    %1445 = vmatprep.subr.mxu0 0.0
    %1446 = vmatpush1.msra.mxu0 0.0
    %1447 = vmatprep.subr.mxu0 0.0
    %1448 = vmatpush1.msra.mxu0 0.0
    %1449 = vmatprep.subr.mxu0 0.0
    %1450 = vmatpush1.msra.mxu0 0.0
    %1451 = vmatprep.subr.mxu0 0.0
    %1452 = vmatpush1.msra.mxu0 0.0
    %1453 = vmatprep.subr.mxu0 0.0
    %1454 = vmatpush1.msra.mxu0 0.0
    %1455 = vmatprep.subr.mxu0 0.0
    %1456 = vmatpush1.msra.mxu0 0.0
    %1457 = vmatprep.subr.mxu0 0.0
    %1458 = vmatpush1.msra.mxu0 0.0
    %1459 = vmatprep.subr.mxu0 0.0
    %1460 = vmatpush1.msra.mxu0 0.0
    %1461 = vmatprep.subr.mxu0 0.0
    %1462 = vmatpush1.msra.mxu0 0.0
    %1463 = vmatprep.subr.mxu0 0.0
    %1464 = vmatpush1.msra.mxu0 0.0
    %1465 = vmatprep.subr.mxu0 0.0
    %1466 = vmatpush1.msra.mxu0 0.0
    %1467 = vmatprep.subr.mxu0 0.0
    %1468 = vmatpush1.msra.mxu0 0.0
    %1469 = vmatprep.subr.mxu0 0.0
    %1470 = vmatpush1.msra.mxu0 0.0
    %1471 = vmatprep.subr.mxu0 0.0
    %1472 = vmatpush1.msra.mxu0 0.0
    %1473 = vmatprep.subr.mxu0 0.0
    %1474 = vmatpush1.msra.mxu0 0.0
    %1475 = vmatprep.subr.mxu0 0.0
    %1476 = vmatpush1.msra.mxu0 0.0
    %1477 = vmatprep.subr.mxu0 0.0
    %1478 = vmatpush1.msra.mxu0 0.0
    %1479 = vmatprep.mubr.f32.mxu0 0.0
    %1480 = vmatmul.mubr.f32.gmra.mrb[0].mxu0 %v1409
    %v1481 = vpop.f32.mrb[0].mxu0
    %v1482 = vadd.f32 0.0, %v1481
    %v1483 = vpop.f32.mrb[0].mxu0
    %1484 = vmatprep.mubr.f32.mxu0 0.0
    %1485 = vmatmul.mubr.f32.gmra.mrb[0].mxu0 %v1411
    %v1486 = vpop.f32.mrb[0].mxu0
    %v1487 = vadd.f32 0.0, %v1486
    %v1488 = vpop.f32.mrb[0].mxu0
    %1489 = vmatprep.mubr.f32.mxu0 0.0
    %1490 = vmatmul.mubr.f32.gmra.mrb[0].mxu0 %v1413
    %v1491 = vpop.f32.mrb[0].mxu0
    %v1492 = vadd.f32 0.0, %v1491
    %v1493 = vpop.f32.mrb[0].mxu0
    %1494 = vdwg.mxu0
    %v1495 = vxor.u32 %v1482, 2147483648
    %v1496 = vxor.u32 %v1487, 2147483648
    %v1497 = vxor.u32 %v1492, 2147483648
    %v1498 = vmul.f32 %v1495, 1.442695
    %v1499 = vpow.pop %v1498
    %v1500 = vmul.f32 %v1496, 1.442695
    %v1501 = vpow.pop %v1500
    %v1502 = vmul.f32 %v1497, 1.442695
    %v1503 = vpow.pop %v1502
    %v1504 = vadd.f32 %v1499, 1.0
    %v1505 = vadd.f32 %v1501, 1.0
    %v1506 = vadd.f32 %v1503, 1.0
    %v1507 = vrcp.pop %v1504
    %v1508 = vmul.f32 1.0, %v1507
    %v1509 = vrcp.pop %v1505
    %v1510 = vmul.f32 1.0, %v1509
    %v1511 = vrcp.pop %v1506
    %v1512 = vmul.f32 1.0, %v1511
    %v1513 = vmul.f32 %v1482, %v1508
    %v1514 = vmul.f32 %v1487, %v1510
    %v1515 = vmul.f32 %v1492, %v1512
    %v1516 = vld [vmem:[%s47] sm:$0xff]
    %v1517 = vld [vmem:[%s47 + $0x8] sm:$0xff]
    %v1518 = vld [vmem:[%s47 + $0x10] sm:$0x3]
    %vm1519 = vcmask 146432
    %v1521 = vsel %vm1519, %v134, 0
    %v1524 = vsel %vm1519, %v135, 0
    %v1527 = vsel %vm1519, %v136, 0
    %v1530 = vsel %vm1519, %v137, 0
    %v1533 = vsel %vm1519, %v138, 0
    %v1536 = vsel %vm1519, %v139, 0
    %vm1538 = vcmask 1041408
    %v1540 = vsel %vm1538, %v1518, 0
    %1542 = vmatprep.subr.mxu0 0.0
    %1543 = vmatpush1.msra.mxu0 %v1516
    %1544 = vmatprep.subr.mxu0 0.0
    %1545 = vmatpush1.msra.mxu0 %v1517
    %1546 = vmatprep.subr.mxu0 0.0
    %1547 = vmatpush1.msra.mxu0 %v1540
    %1548 = vmatprep.subr.mxu0 0.0
    %1549 = vmatpush1.msra.mxu0 0.0
    %1550 = vmatprep.subr.mxu0 0.0
    %1551 = vmatpush1.msra.mxu0 0.0
    %1552 = vmatprep.subr.mxu0 0.0
    %1553 = vmatpush1.msra.mxu0 0.0
    %1554 = vmatprep.subr.mxu0 0.0
    %1555 = vmatpush1.msra.mxu0 0.0
    %1556 = vmatprep.subr.mxu0 0.0
    %1557 = vmatpush1.msra.mxu0 0.0
    %1558 = vmatprep.subr.mxu0 0.0
    %1559 = vmatpush1.msra.mxu0 0.0
    %1560 = vmatprep.subr.mxu0 0.0
    %1561 = vmatpush1.msra.mxu0 0.0
    %1562 = vmatprep.subr.mxu0 0.0
    %1563 = vmatpush1.msra.mxu0 0.0
    %1564 = vmatprep.subr.mxu0 0.0
    %1565 = vmatpush1.msra.mxu0 0.0
    %1566 = vmatprep.subr.mxu0 0.0
    %1567 = vmatpush1.msra.mxu0 0.0
    %1568 = vmatprep.subr.mxu0 0.0
    %1569 = vmatpush1.msra.mxu0 0.0
    %1570 = vmatprep.subr.mxu0 0.0
    %1571 = vmatpush1.msra.mxu0 0.0
    %1572 = vmatprep.subr.mxu0 0.0
    %1573 = vmatpush1.msra.mxu0 0.0
    %1574 = vmatprep.subr.mxu0 0.0
    %1575 = vmatpush1.msra.mxu0 0.0
    %1576 = vmatprep.subr.mxu0 0.0
    %1577 = vmatpush1.msra.mxu0 0.0
    %1578 = vmatprep.subr.mxu0 0.0
    %1579 = vmatpush1.msra.mxu0 0.0
    %1580 = vmatprep.subr.mxu0 0.0
    %1581 = vmatpush1.msra.mxu0 0.0
    %1582 = vmatprep.subr.mxu0 0.0
    %1583 = vmatpush1.msra.mxu0 0.0
    %1584 = vmatprep.subr.mxu0 0.0
    %1585 = vmatpush1.msra.mxu0 0.0
    %1586 = vmatprep.subr.mxu0 0.0
    %1587 = vmatpush1.msra.mxu0 0.0
    %1588 = vmatprep.subr.mxu0 0.0
    %1589 = vmatpush1.msra.mxu0 0.0
    %1590 = vmatprep.subr.mxu0 0.0
    %1591 = vmatpush1.msra.mxu0 0.0
    %1592 = vmatprep.subr.mxu0 0.0
    %1593 = vmatpush1.msra.mxu0 0.0
    %1594 = vmatprep.subr.mxu0 0.0
    %1595 = vmatpush1.msra.mxu0 0.0
    %1596 = vmatprep.subr.mxu0 0.0
    %1597 = vmatpush1.msra.mxu0 0.0
    %1598 = vmatprep.subr.mxu0 0.0
    %1599 = vmatpush1.msra.mxu0 0.0
    %1600 = vmatprep.subr.mxu0 0.0
    %1601 = vmatpush1.msra.mxu0 0.0
    %1602 = vmatprep.subr.mxu0 0.0
    %1603 = vmatpush1.msra.mxu0 0.0
    %1604 = vmatprep.subr.mxu0 0.0
    %1605 = vmatpush1.msra.mxu0 0.0
    %1606 = vmatprep.mubr.f32.mxu0 0.0
    %1607 = vmatmul.mubr.f32.gmra.mrb[0].mxu0 %v1521
    %v1608 = vpop.f32.mrb[0].mxu0
    %v1609 = vadd.f32 0.0, %v1608
    %v1610 = vpop.f32.mrb[0].mxu0
    %1611 = vmatprep.mubr.f32.mxu0 0.0
    %1612 = vmatmul.mubr.f32.gmra.mrb[0].mxu0 %v1524
    %v1613 = vpop.f32.mrb[0].mxu0
    %v1614 = vadd.f32 0.0, %v1613
    %v1615 = vpop.f32.mrb[0].mxu0
    %1616 = vmatprep.mubr.f32.mxu0 0.0
    %1617 = vmatmul.mubr.f32.gmra.mrb[0].mxu0 %v1527
    %v1618 = vpop.f32.mrb[0].mxu0
    %v1619 = vadd.f32 0.0, %v1618
    %v1620 = vpop.f32.mrb[0].mxu0
    %1621 = vmatprep.mubr.f32.mxu0 0.0
    %1622 = vmatmul.mubr.f32.gmra.mrb[0].mxu0 %v1530
    %v1623 = vpop.f32.mrb[0].mxu0
    %v1624 = vadd.f32 0.0, %v1623
    %v1625 = vpop.f32.mrb[0].mxu0
    %1626 = vmatprep.mubr.f32.mxu0 0.0
    %1627 = vmatmul.mubr.f32.gmra.mrb[0].mxu0 %v1533
    %v1628 = vpop.f32.mrb[0].mxu0
    %v1629 = vadd.f32 0.0, %v1628
    %v1630 = vpop.f32.mrb[0].mxu0
    %1631 = vmatprep.mubr.f32.mxu0 0.0
    %1632 = vmatmul.mubr.f32.gmra.mrb[0].mxu0 %v1536
    %v1633 = vpop.f32.mrb[0].mxu0
    %v1634 = vadd.f32 0.0, %v1633
    %v1635 = vpop.f32.mrb[0].mxu0
    %1636 = vdwg.mxu0
    %v1638 = vsel %vm748, %v188, 0
    %v1641 = vsel %vm748, %v189, 0
    %v1644 = vsel %vm748, %v190, 0
    %v1647 = vsel %vm748, %v191, 0
    %v1650 = vsel %vm748, %v192, 0
    %v1653 = vsel %vm748, %v193, 0
    %1655 = vmatprep.subr.mxu0 0.0
    %1656 = vmatpush1.msra.mxu0 %v1513
    %1657 = vmatprep.subr.mxu0 0.0
    %1658 = vmatpush1.msra.mxu0 %v1514
    %1659 = vmatprep.subr.mxu0 0.0
    %1660 = vmatpush1.msra.mxu0 %v1515
    %1661 = vmatprep.subr.mxu0 0.0
    %1662 = vmatpush1.msra.mxu0 0.0
    %1663 = vmatprep.subr.mxu0 0.0
    %1664 = vmatpush1.msra.mxu0 0.0
    %1665 = vmatprep.subr.mxu0 0.0
    %1666 = vmatpush1.msra.mxu0 0.0
    %1667 = vmatprep.subr.mxu0 0.0
    %1668 = vmatpush1.msra.mxu0 0.0
    %1669 = vmatprep.subr.mxu0 0.0
    %1670 = vmatpush1.msra.mxu0 0.0
    %1671 = vmatprep.subr.mxu0 0.0
    %1672 = vmatpush1.msra.mxu0 0.0
    %1673 = vmatprep.subr.mxu0 0.0
    %1674 = vmatpush1.msra.mxu0 0.0
    %1675 = vmatprep.subr.mxu0 0.0
    %1676 = vmatpush1.msra.mxu0 0.0
    %1677 = vmatprep.subr.mxu0 0.0
    %1678 = vmatpush1.msra.mxu0 0.0
    %1679 = vmatprep.subr.mxu0 0.0
    %1680 = vmatpush1.msra.mxu0 0.0
    %1681 = vmatprep.subr.mxu0 0.0
    %1682 = vmatpush1.msra.mxu0 0.0
    %1683 = vmatprep.subr.mxu0 0.0
    %1684 = vmatpush1.msra.mxu0 0.0
    %1685 = vmatprep.subr.mxu0 0.0
    %1686 = vmatpush1.msra.mxu0 0.0
    %1687 = vmatprep.subr.mxu0 0.0
    %1688 = vmatpush1.msra.mxu0 0.0
    %1689 = vmatprep.subr.mxu0 0.0
    %1690 = vmatpush1.msra.mxu0 0.0
    %1691 = vmatprep.subr.mxu0 0.0
    %1692 = vmatpush1.msra.mxu0 0.0
    %1693 = vmatprep.subr.mxu0 0.0
    %1694 = vmatpush1.msra.mxu0 0.0
    %1695 = vmatprep.subr.mxu0 0.0
    %1696 = vmatpush1.msra.mxu0 0.0
    %1697 = vmatprep.subr.mxu0 0.0
    %1698 = vmatpush1.msra.mxu0 0.0
    %1699 = vmatprep.subr.mxu0 0.0
    %1700 = vmatpush1.msra.mxu0 0.0
    %1701 = vmatprep.subr.mxu0 0.0
    %1702 = vmatpush1.msra.mxu0 0.0
    %1703 = vmatprep.subr.mxu0 0.0
    %1704 = vmatpush1.msra.mxu0 0.0
    %1705 = vmatprep.subr.mxu0 0.0
    %1706 = vmatpush1.msra.mxu0 0.0
    %1707 = vmatprep.subr.mxu0 0.0
    %1708 = vmatpush1.msra.mxu0 0.0
    %1709 = vmatprep.subr.mxu0 0.0
    %1710 = vmatpush1.msra.mxu0 0.0
    %1711 = vmatprep.subr.mxu0 0.0
    %1712 = vmatpush1.msra.mxu0 0.0
    %1713 = vmatprep.subr.mxu0 0.0
    %1714 = vmatpush1.msra.mxu0 0.0
    %1715 = vmatprep.subr.mxu0 0.0
    %1716 = vmatpush1.msra.mxu0 0.0
    %1717 = vmatprep.subr.mxu0 0.0
    %1718 = vmatpush1.msra.mxu0 0.0
    %1719 = vmatprep.mubr.f32.mxu0 0.0
    %1720 = vmatmul.mubr.f32.gmra.mrb[0].mxu0 %v1638
    %v1721 = vpop.f32.mrb[0].mxu0
    %v1722 = vadd.f32 0.0, %v1721
    %v1723 = vpop.f32.mrb[0].mxu0
    %1724 = vmatprep.mubr.f32.mxu0 0.0
    %1725 = vmatmul.mubr.f32.gmra.mrb[0].mxu0 %v1641
    %v1726 = vpop.f32.mrb[0].mxu0
    %v1727 = vadd.f32 0.0, %v1726
    %v1728 = vpop.f32.mrb[0].mxu0
    %1729 = vmatprep.mubr.f32.mxu0 0.0
    %1730 = vmatmul.mubr.f32.gmra.mrb[0].mxu0 %v1644
    %v1731 = vpop.f32.mrb[0].mxu0
    %v1732 = vadd.f32 0.0, %v1731
    %v1733 = vpop.f32.mrb[0].mxu0
    %1734 = vmatprep.mubr.f32.mxu0 0.0
    %1735 = vmatmul.mubr.f32.gmra.mrb[0].mxu0 %v1647
    %v1736 = vpop.f32.mrb[0].mxu0
    %v1737 = vadd.f32 0.0, %v1736
    %v1738 = vpop.f32.mrb[0].mxu0
    %1739 = vmatprep.mubr.f32.mxu0 0.0
    %1740 = vmatmul.mubr.f32.gmra.mrb[0].mxu0 %v1650
    %v1741 = vpop.f32.mrb[0].mxu0
    %v1742 = vadd.f32 0.0, %v1741
    %v1743 = vpop.f32.mrb[0].mxu0
    %1744 = vmatprep.mubr.f32.mxu0 0.0
    %1745 = vmatmul.mubr.f32.gmra.mrb[0].mxu0 %v1653
    %v1746 = vpop.f32.mrb[0].mxu0
    %v1747 = vadd.f32 0.0, %v1746
    %v1748 = vpop.f32.mrb[0].mxu0
    %1749 = vdwg.mxu0
    %v1750 = vmul.f32 %v1722, %v1609
    %v1751 = vmul.f32 %v1727, %v1614
    %v1752 = vmul.f32 %v1732, %v1619
    %v1753 = vmul.f32 %v1737, %v1624
    %v1754 = vmul.f32 %v1742, %v1629
    %v1755 = vmul.f32 %v1747, %v1634
    %vm1756 = vcmask 392192
    %v1758 = vsel %vm1756, %v207, 0
    %v1761 = vsel %vm1756, %v208, 0
    %v1764 = vsel %vm1756, %v209, 0
    %1766 = vmatprep.subr.mxu0 0.0
    %1767 = vmatpush1.msra.mxu0 %v1750
    %1768 = vmatprep.subr.mxu0 0.0
    %1769 = vmatpush1.msra.mxu0 %v1751
    %1770 = vmatprep.subr.mxu0 0.0
    %1771 = vmatpush1.msra.mxu0 %v1752
    %1772 = vmatprep.subr.mxu0 0.0
    %1773 = vmatpush1.msra.mxu0 %v1753
    %1774 = vmatprep.subr.mxu0 0.0
    %1775 = vmatpush1.msra.mxu0 %v1754
    %1776 = vmatprep.subr.mxu0 0.0
    %1777 = vmatpush1.msra.mxu0 %v1755
    %1778 = vmatprep.subr.mxu0 0.0
    %1779 = vmatpush1.msra.mxu0 0.0
    %1780 = vmatprep.subr.mxu0 0.0
    %1781 = vmatpush1.msra.mxu0 0.0
    %1782 = vmatprep.subr.mxu0 0.0
    %1783 = vmatpush1.msra.mxu0 0.0
    %1784 = vmatprep.subr.mxu0 0.0
    %1785 = vmatpush1.msra.mxu0 0.0
    %1786 = vmatprep.subr.mxu0 0.0
    %1787 = vmatpush1.msra.mxu0 0.0
    %1788 = vmatprep.subr.mxu0 0.0
    %1789 = vmatpush1.msra.mxu0 0.0
    %1790 = vmatprep.subr.mxu0 0.0
    %1791 = vmatpush1.msra.mxu0 0.0
    %1792 = vmatprep.subr.mxu0 0.0
    %1793 = vmatpush1.msra.mxu0 0.0
    %1794 = vmatprep.subr.mxu0 0.0
    %1795 = vmatpush1.msra.mxu0 0.0
    %1796 = vmatprep.subr.mxu0 0.0
    %1797 = vmatpush1.msra.mxu0 0.0
    %1798 = vmatprep.subr.mxu0 0.0
    %1799 = vmatpush1.msra.mxu0 0.0
    %1800 = vmatprep.subr.mxu0 0.0
    %1801 = vmatpush1.msra.mxu0 0.0
    %1802 = vmatprep.subr.mxu0 0.0
    %1803 = vmatpush1.msra.mxu0 0.0
    %1804 = vmatprep.subr.mxu0 0.0
    %1805 = vmatpush1.msra.mxu0 0.0
    %1806 = vmatprep.subr.mxu0 0.0
    %1807 = vmatpush1.msra.mxu0 0.0
    %1808 = vmatprep.subr.mxu0 0.0
    %1809 = vmatpush1.msra.mxu0 0.0
    %1810 = vmatprep.subr.mxu0 0.0
    %1811 = vmatpush1.msra.mxu0 0.0
    %1812 = vmatprep.subr.mxu0 0.0
    %1813 = vmatpush1.msra.mxu0 0.0
    %1814 = vmatprep.subr.mxu0 0.0
    %1815 = vmatpush1.msra.mxu0 0.0
    %1816 = vmatprep.subr.mxu0 0.0
    %1817 = vmatpush1.msra.mxu0 0.0
    %1818 = vmatprep.subr.mxu0 0.0
    %1819 = vmatpush1.msra.mxu0 0.0
    %1820 = vmatprep.subr.mxu0 0.0
    %1821 = vmatpush1.msra.mxu0 0.0
    %1822 = vmatprep.subr.mxu0 0.0
    %1823 = vmatpush1.msra.mxu0 0.0
    %1824 = vmatprep.subr.mxu0 0.0
    %1825 = vmatpush1.msra.mxu0 0.0
    %1826 = vmatprep.subr.mxu0 0.0
    %1827 = vmatpush1.msra.mxu0 0.0
    %1828 = vmatprep.subr.mxu0 0.0
    %1829 = vmatpush1.msra.mxu0 0.0
    %1830 = vmatprep.mubr.f32.mxu0 0.0
    %1831 = vmatmul.mubr.f32.gmra.mrb[0].mxu0 %v1758
    %v1832 = vpop.f32.mrb[0].mxu0
    %v1833 = vadd.f32 0.0, %v1832
    %v1834 = vpop.f32.mrb[0].mxu0
    %1835 = vmatprep.mubr.f32.mxu0 0.0
    %1836 = vmatmul.mubr.f32.gmra.mrb[0].mxu0 %v1761
    %v1837 = vpop.f32.mrb[0].mxu0
    %v1838 = vadd.f32 0.0, %v1837
    %v1839 = vpop.f32.mrb[0].mxu0
    %1840 = vmatprep.mubr.f32.mxu0 0.0
    %1841 = vmatmul.mubr.f32.gmra.mrb[0].mxu0 %v1764
    %v1842 = vpop.f32.mrb[0].mxu0
    %v1843 = vadd.f32 0.0, %v1842
    %v1844 = vpop.f32.mrb[0].mxu0
    %1845 = vdwg.mxu0
    %v1846 = vld [vmem:[%s49] sm:$0xff]
    %v1847 = vld [vmem:[%s49 + $0x8] sm:$0xff]
    %vm1848 = vcmask 130048
    %v1850 = vsel %vm1848, %v1833, 0
    %v1853 = vsel %vm1848, %v1838, 0
    %v1856 = vsel %vm1848, %v1843, 0
    %1858 = vmatprep.subr.mxu0 0.0
    %1859 = vmatpush1.msra.mxu0 %v1846
    %1860 = vmatprep.subr.mxu0 0.0
    %1861 = vmatpush1.msra.mxu0 %v1847
    %1862 = vmatprep.subr.mxu0 0.0
    %1863 = vmatpush1.msra.mxu0 0.0
    %1864 = vmatprep.subr.mxu0 0.0
    %1865 = vmatpush1.msra.mxu0 0.0
    %1866 = vmatprep.subr.mxu0 0.0
    %1867 = vmatpush1.msra.mxu0 0.0
    %1868 = vmatprep.subr.mxu0 0.0
    %1869 = vmatpush1.msra.mxu0 0.0
    %1870 = vmatprep.subr.mxu0 0.0
    %1871 = vmatpush1.msra.mxu0 0.0
    %1872 = vmatprep.subr.mxu0 0.0
    %1873 = vmatpush1.msra.mxu0 0.0
    %1874 = vmatprep.subr.mxu0 0.0
    %1875 = vmatpush1.msra.mxu0 0.0
    %1876 = vmatprep.subr.mxu0 0.0
    %1877 = vmatpush1.msra.mxu0 0.0
    %1878 = vmatprep.subr.mxu0 0.0
    %1879 = vmatpush1.msra.mxu0 0.0
    %1880 = vmatprep.subr.mxu0 0.0
    %1881 = vmatpush1.msra.mxu0 0.0
    %1882 = vmatprep.subr.mxu0 0.0
    %1883 = vmatpush1.msra.mxu0 0.0
    %1884 = vmatprep.subr.mxu0 0.0
    %1885 = vmatpush1.msra.mxu0 0.0
    %1886 = vmatprep.subr.mxu0 0.0
    %1887 = vmatpush1.msra.mxu0 0.0
    %1888 = vmatprep.subr.mxu0 0.0
    %1889 = vmatpush1.msra.mxu0 0.0
    %1890 = vmatprep.subr.mxu0 0.0
    %1891 = vmatpush1.msra.mxu0 0.0
    %1892 = vmatprep.subr.mxu0 0.0
    %1893 = vmatpush1.msra.mxu0 0.0
    %1894 = vmatprep.subr.mxu0 0.0
    %1895 = vmatpush1.msra.mxu0 0.0
    %1896 = vmatprep.subr.mxu0 0.0
    %1897 = vmatpush1.msra.mxu0 0.0
    %1898 = vmatprep.subr.mxu0 0.0
    %1899 = vmatpush1.msra.mxu0 0.0
    %1900 = vmatprep.subr.mxu0 0.0
    %1901 = vmatpush1.msra.mxu0 0.0
    %1902 = vmatprep.subr.mxu0 0.0
    %1903 = vmatpush1.msra.mxu0 0.0
    %1904 = vmatprep.subr.mxu0 0.0
    %1905 = vmatpush1.msra.mxu0 0.0
    %1906 = vmatprep.subr.mxu0 0.0
    %1907 = vmatpush1.msra.mxu0 0.0
    %1908 = vmatprep.subr.mxu0 0.0
    %1909 = vmatpush1.msra.mxu0 0.0
    %1910 = vmatprep.subr.mxu0 0.0
    %1911 = vmatpush1.msra.mxu0 0.0
    %1912 = vmatprep.subr.mxu0 0.0
    %1913 = vmatpush1.msra.mxu0 0.0
    %1914 = vmatprep.subr.mxu0 0.0
    %1915 = vmatpush1.msra.mxu0 0.0
    %1916 = vmatprep.subr.mxu0 0.0
    %1917 = vmatpush1.msra.mxu0 0.0
    %1918 = vmatprep.subr.mxu0 0.0
    %1919 = vmatpush1.msra.mxu0 0.0
    %1920 = vmatprep.subr.mxu0 0.0
    %1921 = vmatpush1.msra.mxu0 0.0
    %1922 = vmatprep.mubr.f32.mxu0 0.0
    %1923 = vmatmul.mubr.f32.gmra.mrb[0].mxu0 %v1850
    %v1924 = vpop.f32.mrb[0].mxu0
    %v1925 = vadd.f32 0.0, %v1924
    %v1926 = vpop.f32.mrb[0].mxu0
    %1927 = vmatprep.mubr.f32.mxu0 0.0
    %1928 = vmatmul.mubr.f32.gmra.mrb[0].mxu0 %v1853
    %v1929 = vpop.f32.mrb[0].mxu0
    %v1930 = vadd.f32 0.0, %v1929
    %v1931 = vpop.f32.mrb[0].mxu0
    %1932 = vmatprep.mubr.f32.mxu0 0.0
    %1933 = vmatmul.mubr.f32.gmra.mrb[0].mxu0 %v1856
    %v1934 = vpop.f32.mrb[0].mxu0
    %v1935 = vadd.f32 0.0, %v1934
    %v1936 = vpop.f32.mrb[0].mxu0
    %1937 = vdwg.mxu0
    %v1938 = vxor.u32 %v1925, 2147483648
    %v1939 = vxor.u32 %v1930, 2147483648
    %v1940 = vxor.u32 %v1935, 2147483648
    %v1941 = vmul.f32 %v1938, 1.442695
    %v1942 = vpow.pop %v1941
    %v1943 = vmul.f32 %v1939, 1.442695
    %v1944 = vpow.pop %v1943
    %v1945 = vmul.f32 %v1940, 1.442695
    %v1946 = vpow.pop %v1945
    %v1947 = vadd.f32 %v1942, 1.0
    %v1948 = vadd.f32 %v1944, 1.0
    %v1949 = vadd.f32 %v1946, 1.0
    %v1950 = vrcp.pop %v1947
    %v1951 = vmul.f32 1.0, %v1950
    %v1952 = vrcp.pop %v1948
    %v1953 = vmul.f32 1.0, %v1952
    %v1954 = vrcp.pop %v1949
    %v1955 = vmul.f32 1.0, %v1954
    %v1956 = vmul.f32 %v1925, %v1951
    %v1957 = vmul.f32 %v1930, %v1953
    %v1958 = vmul.f32 %v1935, %v1955
    %v1959 = vadd.f32 %v1294, %v1956
    %v1960 = vadd.f32 %v1295, %v1957
    %v1961 = vadd.f32 %v1296, %v1958
    %v1962 = vld [vmem:[%s51] sm:$0xff]
    %v1963 = vld [vmem:[%s51 + $0x8] sm:$0xff]
    %v1964 = vld [vmem:[%s51 + $0x10] sm:$0xff]
    %v1965 = vld [vmem:[%s51 + $0x18] sm:$0xff]
    %v1966 = vld [vmem:[%s51 + $0x20] sm:$0xff]
    %v1967 = vld [vmem:[%s51 + $0x28] sm:$0xff]
    %v1968 = vld [vmem:[%s51 + $0x30] sm:$0xff]
    %v1969 = vld [vmem:[%s51 + $0x38] sm:$0xff]
    %v1970 = vld [vmem:[%s53] sm:$0x1]
    %v1971 = vld [vmem:[%s53 + $0x1] sm:$0x1]
    %v1973 = vlaneseq
    %v1974 = vshrl.u32 %v1973, 7
    %v1975 = vsub.s32 0, %v1974
    %v1976 = vrot.slane %v1970, %v1975
    %v1979 = vsel %vm355, %v1959, 0
    %v1982 = vsel %vm355, %v1960, 0
    %v1985 = vsel %vm355, %v1961, 0
    %1987 = vmatprep.subr.mxu0 0.0
    %1988 = vmatpush1.msra.mxu0 %v1962
    %1989 = vmatprep.subr.mxu0 0.0
    %1990 = vmatpush1.msra.mxu0 %v1963
    %1991 = vmatprep.subr.mxu0 0.0
    %1992 = vmatpush1.msra.mxu0 %v1964
    %1993 = vmatprep.subr.mxu0 0.0
    %1994 = vmatpush1.msra.mxu0 %v1965
    %1995 = vmatprep.subr.mxu0 0.0
    %1996 = vmatpush1.msra.mxu0 0.0
    %1997 = vmatprep.subr.mxu0 0.0
    %1998 = vmatpush1.msra.mxu0 0.0
    %1999 = vmatprep.subr.mxu0 0.0
    %2000 = vmatpush1.msra.mxu0 0.0
    %2001 = vmatprep.subr.mxu0 0.0
    %2002 = vmatpush1.msra.mxu0 0.0
    %2003 = vmatprep.subr.mxu0 0.0
    %2004 = vmatpush1.msra.mxu0 0.0
    %2005 = vmatprep.subr.mxu0 0.0
    %2006 = vmatpush1.msra.mxu0 0.0
    %2007 = vmatprep.subr.mxu0 0.0
    %2008 = vmatpush1.msra.mxu0 0.0
    %2009 = vmatprep.subr.mxu0 0.0
    %2010 = vmatpush1.msra.mxu0 0.0
    %2011 = vmatprep.subr.mxu0 0.0
    %2012 = vmatpush1.msra.mxu0 0.0
    %2013 = vmatprep.subr.mxu0 0.0
    %2014 = vmatpush1.msra.mxu0 0.0
    %2015 = vmatprep.subr.mxu0 0.0
    %2016 = vmatpush1.msra.mxu0 0.0
    %2017 = vmatprep.subr.mxu0 0.0
    %2018 = vmatpush1.msra.mxu0 0.0
    %2019 = vmatprep.subr.mxu0 0.0
    %2020 = vmatpush1.msra.mxu0 0.0
    %2021 = vmatprep.subr.mxu0 0.0
    %2022 = vmatpush1.msra.mxu0 0.0
    %2023 = vmatprep.subr.mxu0 0.0
    %2024 = vmatpush1.msra.mxu0 0.0
    %2025 = vmatprep.subr.mxu0 0.0
    %2026 = vmatpush1.msra.mxu0 0.0
    %2027 = vmatprep.subr.mxu0 0.0
    %2028 = vmatpush1.msra.mxu0 0.0
    %2029 = vmatprep.subr.mxu0 0.0
    %2030 = vmatpush1.msra.mxu0 0.0
    %2031 = vmatprep.subr.mxu0 0.0
    %2032 = vmatpush1.msra.mxu0 0.0
    %2033 = vmatprep.subr.mxu0 0.0
    %2034 = vmatpush1.msra.mxu0 0.0
    %2035 = vmatprep.subr.mxu0 0.0
    %2036 = vmatpush1.msra.mxu0 0.0
    %2037 = vmatprep.subr.mxu0 0.0
    %2038 = vmatpush1.msra.mxu0 0.0
    %2039 = vmatprep.subr.mxu0 0.0
    %2040 = vmatpush1.msra.mxu0 0.0
    %2041 = vmatprep.subr.mxu0 0.0
    %2042 = vmatpush1.msra.mxu0 0.0
    %2043 = vmatprep.subr.mxu0 0.0
    %2044 = vmatpush1.msra.mxu0 0.0
    %2045 = vmatprep.subr.mxu0 0.0
    %2046 = vmatpush1.msra.mxu0 0.0
    %2047 = vmatprep.subr.mxu0 0.0
    %2048 = vmatpush1.msra.mxu0 0.0
    %2049 = vmatprep.subr.mxu0 0.0
    %2050 = vmatpush1.msra.mxu0 0.0
    %2051 = vmatprep.mubr.f32.mxu0 0.0
    %2052 = vmatmul.mubr.f32.gmra.mrb[0].mxu0 %v1979
    %v2053 = vpop.f32.mrb[0].mxu0
    %v2054 = vadd.f32 %v1976, %v2053
    %v2055 = vpop.f32.mrb[0].mxu0
    %2056 = vmatprep.mubr.f32.mxu0 0.0
    %2057 = vmatmul.mubr.f32.gmra.mrb[0].mxu0 %v1982
    %v2058 = vpop.f32.mrb[0].mxu0
    %v2059 = vadd.f32 %v1976, %v2058
    %v2060 = vpop.f32.mrb[0].mxu0
    %2061 = vmatprep.mubr.f32.mxu0 0.0
    %2062 = vmatmul.mubr.f32.gmra.mrb[0].mxu0 %v1985
    %v2063 = vpop.f32.mrb[0].mxu0
    %v2064 = vadd.f32 %v1976, %v2063
    %v2065 = vpop.f32.mrb[0].mxu0
    %2066 = vdwg.mxu0
    %v2067 = vxor.u32 %v2054, 2147483648
    %v2068 = vxor.u32 %v2059, 2147483648
    %v2069 = vxor.u32 %v2064, 2147483648
    %v2070 = vmul.f32 %v2067, 1.442695
    %v2071 = vpow.pop %v2070
    %v2072 = vmul.f32 %v2068, 1.442695
    %v2073 = vpow.pop %v2072
    %v2074 = vmul.f32 %v2069, 1.442695
    %v2075 = vpow.pop %v2074
    %v2076 = vadd.f32 %v2071, 1.0
    %v2077 = vadd.f32 %v2073, 1.0
    %v2078 = vadd.f32 %v2075, 1.0
    %v2079 = vrcp.pop %v2076
    %v2080 = vmul.f32 1.0, %v2079
    %v2081 = vrcp.pop %v2077
    %v2082 = vmul.f32 1.0, %v2081
    %v2083 = vrcp.pop %v2078
    %v2084 = vmul.f32 1.0, %v2083
    %v2085 = vmul.f32 %v2054, %v2080
    %v2086 = vmul.f32 %v2059, %v2082
    %v2087 = vmul.f32 %v2064, %v2084
    %v2089 = vlaneseq
    %v2090 = vshrl.u32 %v2089, 7
    %v2091 = vsub.s32 0, %v2090
    %v2092 = vrot.slane %v1971, %v2091
    %v2095 = vsel %vm355, %v2085, 0
    %v2098 = vsel %vm355, %v2086, 0
    %v2101 = vsel %vm355, %v2087, 0
    %2103 = vmatprep.subr.mxu0 0.0
    %2104 = vmatpush1.msra.mxu0 %v1966
    %2105 = vmatprep.subr.mxu0 0.0
    %2106 = vmatpush1.msra.mxu0 %v1967
    %2107 = vmatprep.subr.mxu0 0.0
    %2108 = vmatpush1.msra.mxu0 %v1968
    %2109 = vmatprep.subr.mxu0 0.0
    %2110 = vmatpush1.msra.mxu0 %v1969
    %2111 = vmatprep.subr.mxu0 0.0
    %2112 = vmatpush1.msra.mxu0 0.0
    %2113 = vmatprep.subr.mxu0 0.0
    %2114 = vmatpush1.msra.mxu0 0.0
    %2115 = vmatprep.subr.mxu0 0.0
    %2116 = vmatpush1.msra.mxu0 0.0
    %2117 = vmatprep.subr.mxu0 0.0
    %2118 = vmatpush1.msra.mxu0 0.0
    %2119 = vmatprep.subr.mxu0 0.0
    %2120 = vmatpush1.msra.mxu0 0.0
    %2121 = vmatprep.subr.mxu0 0.0
    %2122 = vmatpush1.msra.mxu0 0.0
    %2123 = vmatprep.subr.mxu0 0.0
    %2124 = vmatpush1.msra.mxu0 0.0
    %2125 = vmatprep.subr.mxu0 0.0
    %2126 = vmatpush1.msra.mxu0 0.0
    %2127 = vmatprep.subr.mxu0 0.0
    %2128 = vmatpush1.msra.mxu0 0.0
    %2129 = vmatprep.subr.mxu0 0.0
    %2130 = vmatpush1.msra.mxu0 0.0
    %2131 = vmatprep.subr.mxu0 0.0
    %2132 = vmatpush1.msra.mxu0 0.0
    %2133 = vmatprep.subr.mxu0 0.0
    %2134 = vmatpush1.msra.mxu0 0.0
    %2135 = vmatprep.subr.mxu0 0.0
    %2136 = vmatpush1.msra.mxu0 0.0
    %2137 = vmatprep.subr.mxu0 0.0
    %2138 = vmatpush1.msra.mxu0 0.0
    %2139 = vmatprep.subr.mxu0 0.0
    %2140 = vmatpush1.msra.mxu0 0.0
    %2141 = vmatprep.subr.mxu0 0.0
    %2142 = vmatpush1.msra.mxu0 0.0
    %2143 = vmatprep.subr.mxu0 0.0
    %2144 = vmatpush1.msra.mxu0 0.0
    %2145 = vmatprep.subr.mxu0 0.0
    %2146 = vmatpush1.msra.mxu0 0.0
    %2147 = vmatprep.subr.mxu0 0.0
    %2148 = vmatpush1.msra.mxu0 0.0
    %2149 = vmatprep.subr.mxu0 0.0
    %2150 = vmatpush1.msra.mxu0 0.0
    %2151 = vmatprep.subr.mxu0 0.0
    %2152 = vmatpush1.msra.mxu0 0.0
    %2153 = vmatprep.subr.mxu0 0.0
    %2154 = vmatpush1.msra.mxu0 0.0
    %2155 = vmatprep.subr.mxu0 0.0
    %2156 = vmatpush1.msra.mxu0 0.0
    %2157 = vmatprep.subr.mxu0 0.0
    %2158 = vmatpush1.msra.mxu0 0.0
    %2159 = vmatprep.subr.mxu0 0.0
    %2160 = vmatpush1.msra.mxu0 0.0
    %2161 = vmatprep.subr.mxu0 0.0
    %2162 = vmatpush1.msra.mxu0 0.0
    %2163 = vmatprep.subr.mxu0 0.0
    %2164 = vmatpush1.msra.mxu0 0.0
    %2165 = vmatprep.subr.mxu0 0.0
    %2166 = vmatpush1.msra.mxu0 0.0
    %2167 = vmatprep.mubr.f32.mxu0 0.0
    %2168 = vmatmul.mubr.f32.gmra.mrb[0].mxu0 %v2095
    %v2169 = vpop.f32.mrb[0].mxu0
    %v2170 = vadd.f32 %v2092, %v2169
    %v2171 = vpop.f32.mrb[0].mxu0
    %2172 = vmatprep.mubr.f32.mxu0 0.0
    %2173 = vmatmul.mubr.f32.gmra.mrb[0].mxu0 %v2098
    %v2174 = vpop.f32.mrb[0].mxu0
    %v2175 = vadd.f32 %v2092, %v2174
    %v2176 = vpop.f32.mrb[0].mxu0
    %2177 = vmatprep.mubr.f32.mxu0 0.0
    %2178 = vmatmul.mubr.f32.gmra.mrb[0].mxu0 %v2101
    %v2179 = vpop.f32.mrb[0].mxu0
    %v2180 = vadd.f32 %v2092, %v2179
    %v2181 = vpop.f32.mrb[0].mxu0
    %2182 = vdwg.mxu0
    %v2183 = vxor.u32 %v2170, 2147483648
    %v2184 = vxor.u32 %v2175, 2147483648
    %v2185 = vxor.u32 %v2180, 2147483648
    %v2186 = vmul.f32 %v2183, 1.442695
    %v2187 = vpow.pop %v2186
    %v2188 = vmul.f32 %v2184, 1.442695
    %v2189 = vpow.pop %v2188
    %v2190 = vmul.f32 %v2185, 1.442695
    %v2191 = vpow.pop %v2190
    %v2192 = vadd.f32 %v2187, 1.0
    %v2193 = vadd.f32 %v2189, 1.0
    %v2194 = vadd.f32 %v2191, 1.0
    %v2195 = vrcp.pop %v2192
    %v2196 = vmul.f32 1.0, %v2195
    %v2197 = vrcp.pop %v2193
    %v2198 = vmul.f32 1.0, %v2197
    %v2199 = vrcp.pop %v2194
    %v2200 = vmul.f32 1.0, %v2199
    %v2201 = vmul.f32 %v2170, %v2196
    %v2202 = vmul.f32 %v2175, %v2198
    %v2203 = vmul.f32 %v2180, %v2200
    %v2204 = vadd.f32 %v1959, %v2201
    %v2205 = vadd.f32 %v1960, %v2202
    %v2206 = vadd.f32 %v1961, %v2203
    %v2207 = vld [vmem:[%s55] sm:$0xff]
    %v2208 = vld [vmem:[%s55 + $0x8] sm:$0xff]
    %v2209 = vld [vmem:[%s55 + $0x10] sm:$0xff]
    %v2210 = vld [vmem:[%s55 + $0x18] sm:$0xff]
    %v2211 = vld [vmem:[%s57] sm:$0x1]
    %v2213 = vlaneseq
    %v2214 = vshrl.u32 %v2213, 7
    %v2215 = vsub.s32 0, %v2214
    %v2216 = vrot.slane %v2211, %v2215
    %v2219 = vsel %vm355, %v2204, 0
    %v2222 = vsel %vm355, %v2205, 0
    %v2225 = vsel %vm355, %v2206, 0
    %2227 = vmatprep.subr.mxu0 0.0
    %2228 = vmatpush1.msra.mxu0 %v2207
    %2229 = vmatprep.subr.mxu0 0.0
    %2230 = vmatpush1.msra.mxu0 %v2208
    %2231 = vmatprep.subr.mxu0 0.0
    %2232 = vmatpush1.msra.mxu0 %v2209
    %2233 = vmatprep.subr.mxu0 0.0
    %2234 = vmatpush1.msra.mxu0 %v2210
    %2235 = vmatprep.subr.mxu0 0.0
    %2236 = vmatpush1.msra.mxu0 0.0
    %2237 = vmatprep.subr.mxu0 0.0
    %2238 = vmatpush1.msra.mxu0 0.0
    %2239 = vmatprep.subr.mxu0 0.0
    %2240 = vmatpush1.msra.mxu0 0.0
    %2241 = vmatprep.subr.mxu0 0.0
    %2242 = vmatpush1.msra.mxu0 0.0
    %2243 = vmatprep.subr.mxu0 0.0
    %2244 = vmatpush1.msra.mxu0 0.0
    %2245 = vmatprep.subr.mxu0 0.0
    %2246 = vmatpush1.msra.mxu0 0.0
    %2247 = vmatprep.subr.mxu0 0.0
    %2248 = vmatpush1.msra.mxu0 0.0
    %2249 = vmatprep.subr.mxu0 0.0
    %2250 = vmatpush1.msra.mxu0 0.0
    %2251 = vmatprep.subr.mxu0 0.0
    %2252 = vmatpush1.msra.mxu0 0.0
    %2253 = vmatprep.subr.mxu0 0.0
    %2254 = vmatpush1.msra.mxu0 0.0
    %2255 = vmatprep.subr.mxu0 0.0
    %2256 = vmatpush1.msra.mxu0 0.0
    %2257 = vmatprep.subr.mxu0 0.0
    %2258 = vmatpush1.msra.mxu0 0.0
    %2259 = vmatprep.subr.mxu0 0.0
    %2260 = vmatpush1.msra.mxu0 0.0
    %2261 = vmatprep.subr.mxu0 0.0
    %2262 = vmatpush1.msra.mxu0 0.0
    %2263 = vmatprep.subr.mxu0 0.0
    %2264 = vmatpush1.msra.mxu0 0.0
    %2265 = vmatprep.subr.mxu0 0.0
    %2266 = vmatpush1.msra.mxu0 0.0
    %2267 = vmatprep.subr.mxu0 0.0
    %2268 = vmatpush1.msra.mxu0 0.0
    %2269 = vmatprep.subr.mxu0 0.0
    %2270 = vmatpush1.msra.mxu0 0.0
    %2271 = vmatprep.subr.mxu0 0.0
    %2272 = vmatpush1.msra.mxu0 0.0
    %2273 = vmatprep.subr.mxu0 0.0
    %2274 = vmatpush1.msra.mxu0 0.0
    %2275 = vmatprep.subr.mxu0 0.0
    %2276 = vmatpush1.msra.mxu0 0.0
    %2277 = vmatprep.subr.mxu0 0.0
    %2278 = vmatpush1.msra.mxu0 0.0
    %2279 = vmatprep.subr.mxu0 0.0
    %2280 = vmatpush1.msra.mxu0 0.0
    %2281 = vmatprep.subr.mxu0 0.0
    %2282 = vmatpush1.msra.mxu0 0.0
    %2283 = vmatprep.subr.mxu0 0.0
    %2284 = vmatpush1.msra.mxu0 0.0
    %2285 = vmatprep.subr.mxu0 0.0
    %2286 = vmatpush1.msra.mxu0 0.0
    %2287 = vmatprep.subr.mxu0 0.0
    %2288 = vmatpush1.msra.mxu0 0.0
    %2289 = vmatprep.subr.mxu0 0.0
    %2290 = vmatpush1.msra.mxu0 0.0
    %2291 = vmatprep.mubr.f32.mxu0 0.0
    %2292 = vmatmul.mubr.f32.gmra.mrb[0].mxu0 %v2219
    %v2293 = vpop.f32.mrb[0].mxu0
    %v2294 = vadd.f32 %v2216, %v2293
    %v2295 = vpop.f32.mrb[0].mxu0
    %2296 = vmatprep.mubr.f32.mxu0 0.0
    %2297 = vmatmul.mubr.f32.gmra.mrb[0].mxu0 %v2222
    %v2298 = vpop.f32.mrb[0].mxu0
    %v2299 = vadd.f32 %v2216, %v2298
    %v2300 = vpop.f32.mrb[0].mxu0
    %2301 = vmatprep.mubr.f32.mxu0 0.0
    %2302 = vmatmul.mubr.f32.gmra.mrb[0].mxu0 %v2225
    %v2303 = vpop.f32.mrb[0].mxu0
    %v2304 = vadd.f32 %v2216, %v2303
    %v2305 = vpop.f32.mrb[0].mxu0
    %2306 = vdwg.mxu0
    %v2307 = vxor.u32 %v2294, 2147483648
    %v2308 = vxor.u32 %v2299, 2147483648
    %v2309 = vxor.u32 %v2304, 2147483648
    %v2310 = vmul.f32 %v2307, 1.442695
    %v2311 = vpow.pop %v2310
    %v2312 = vmul.f32 %v2308, 1.442695
    %v2313 = vpow.pop %v2312
    %v2314 = vmul.f32 %v2309, 1.442695
    %v2315 = vpow.pop %v2314
    %v2316 = vadd.f32 %v2311, 1.0
    %v2317 = vadd.f32 %v2313, 1.0
    %v2318 = vadd.f32 %v2315, 1.0
    %v2319 = vrcp.pop %v2316
    %v2320 = vmul.f32 1.0, %v2319
    %v2321 = vrcp.pop %v2317
    %v2322 = vmul.f32 1.0, %v2321
    %v2323 = vrcp.pop %v2318
    %v2324 = vmul.f32 1.0, %v2323
    %v2325 = vmul.f32 %v2294, %v2320
    %v2326 = vmul.f32 %v2299, %v2322
    %v2327 = vmul.f32 %v2304, %v2324
    %v2328 = vadd.f32 %v2325, %v658
    %v2329 = vadd.f32 %v2326, %v659
    %v2330 = vadd.f32 %v2327, %v660
    %v2331 = vld [vmem:[%s59] sm:$0xff]
    %v2332 = vld [vmem:[%s59 + $0x8] sm:$0xff]
    %v2333 = vld [vmem:[%s59 + $0x10] sm:$0xff]
    %v2334 = vld [vmem:[%s59 + $0x18] sm:$0xff]
    %v2335 = vld [vmem:[%s59 + $0x20] sm:$0xff]
    %v2336 = vld [vmem:[%s59 + $0x28] sm:$0xff]
    %v2337 = vld [vmem:[%s59 + $0x30] sm:$0xff]
    %v2338 = vld [vmem:[%s59 + $0x38] sm:$0xff]
    %v2339 = vld [vmem:[%s59 + $0x40] sm:$0xff]
    %v2340 = vld [vmem:[%s59 + $0x48] sm:$0xff]
    %v2341 = vld [vmem:[%s59 + $0x50] sm:$0xff]
    %v2342 = vld [vmem:[%s59 + $0x58] sm:$0xff]
    %v2343 = vld [vmem:[%s59 + $0x60] sm:$0xff]
    %v2344 = vld [vmem:[%s59 + $0x68] sm:$0xff]
    %v2345 = vld [vmem:[%s59 + $0x70] sm:$0xff]
    %v2346 = vld [vmem:[%s59 + $0x78] sm:$0xff]
    %v2347 = vld [vmem:[%s61] sm:$0x1]
    %v2348 = vld [vmem:[%s61 + $0x1] sm:$0x1]
    %v2349 = vld [vmem:[%s61 + $0x2] sm:$0x1]
    %v2350 = vld [vmem:[%s61 + $0x3] sm:$0x1]
    %v2352 = vlaneseq
    %v2353 = vshrl.u32 %v2352, 7
    %v2354 = vsub.s32 0, %v2353
    %v2355 = vrot.slane %v2347, %v2354
    %v2358 = vsel %vm355, %v2328, 0
    %v2361 = vsel %vm355, %v2329, 0
    %v2364 = vsel %vm355, %v2330, 0
    %2366 = vmatprep.subr.mxu0 0.0
    %2367 = vmatpush1.msra.mxu0 %v2331
    %2368 = vmatprep.subr.mxu0 0.0
    %2369 = vmatpush1.msra.mxu0 %v2332
    %2370 = vmatprep.subr.mxu0 0.0
    %2371 = vmatpush1.msra.mxu0 %v2333
    %2372 = vmatprep.subr.mxu0 0.0
    %2373 = vmatpush1.msra.mxu0 %v2334
    %2374 = vmatprep.subr.mxu0 0.0
    %2375 = vmatpush1.msra.mxu0 0.0
    %2376 = vmatprep.subr.mxu0 0.0
    %2377 = vmatpush1.msra.mxu0 0.0
    %2378 = vmatprep.subr.mxu0 0.0
    %2379 = vmatpush1.msra.mxu0 0.0
    %2380 = vmatprep.subr.mxu0 0.0
    %2381 = vmatpush1.msra.mxu0 0.0
    %2382 = vmatprep.subr.mxu0 0.0
    %2383 = vmatpush1.msra.mxu0 0.0
    %2384 = vmatprep.subr.mxu0 0.0
    %2385 = vmatpush1.msra.mxu0 0.0
    %2386 = vmatprep.subr.mxu0 0.0
    %2387 = vmatpush1.msra.mxu0 0.0
    %2388 = vmatprep.subr.mxu0 0.0
    %2389 = vmatpush1.msra.mxu0 0.0
    %2390 = vmatprep.subr.mxu0 0.0
    %2391 = vmatpush1.msra.mxu0 0.0
    %2392 = vmatprep.subr.mxu0 0.0
    %2393 = vmatpush1.msra.mxu0 0.0
    %2394 = vmatprep.subr.mxu0 0.0
    %2395 = vmatpush1.msra.mxu0 0.0
    %2396 = vmatprep.subr.mxu0 0.0
    %2397 = vmatpush1.msra.mxu0 0.0
    %2398 = vmatprep.subr.mxu0 0.0
    %2399 = vmatpush1.msra.mxu0 0.0
    %2400 = vmatprep.subr.mxu0 0.0
    %2401 = vmatpush1.msra.mxu0 0.0
    %2402 = vmatprep.subr.mxu0 0.0
    %2403 = vmatpush1.msra.mxu0 0.0
    %2404 = vmatprep.subr.mxu0 0.0
    %2405 = vmatpush1.msra.mxu0 0.0
    %2406 = vmatprep.subr.mxu0 0.0
    %2407 = vmatpush1.msra.mxu0 0.0
    %2408 = vmatprep.subr.mxu0 0.0
    %2409 = vmatpush1.msra.mxu0 0.0
    %2410 = vmatprep.subr.mxu0 0.0
    %2411 = vmatpush1.msra.mxu0 0.0
    %2412 = vmatprep.subr.mxu0 0.0
    %2413 = vmatpush1.msra.mxu0 0.0
    %2414 = vmatprep.subr.mxu0 0.0
    %2415 = vmatpush1.msra.mxu0 0.0
    %2416 = vmatprep.subr.mxu0 0.0
    %2417 = vmatpush1.msra.mxu0 0.0
    %2418 = vmatprep.subr.mxu0 0.0
    %2419 = vmatpush1.msra.mxu0 0.0
    %2420 = vmatprep.subr.mxu0 0.0
    %2421 = vmatpush1.msra.mxu0 0.0
    %2422 = vmatprep.subr.mxu0 0.0
    %2423 = vmatpush1.msra.mxu0 0.0
    %2424 = vmatprep.subr.mxu0 0.0
    %2425 = vmatpush1.msra.mxu0 0.0
    %2426 = vmatprep.subr.mxu0 0.0
    %2427 = vmatpush1.msra.mxu0 0.0
    %2428 = vmatprep.subr.mxu0 0.0
    %2429 = vmatpush1.msra.mxu0 0.0
    %2430 = vmatprep.mubr.f32.mxu0 0.0
    %2431 = vmatmul.mubr.f32.gmra.mrb[0].mxu0 %v2358
    %v2432 = vpop.f32.mrb[0].mxu0
    %v2433 = vadd.f32 %v2355, %v2432
    %v2434 = vpop.f32.mrb[0].mxu0
    %2435 = vmatprep.mubr.f32.mxu0 0.0
    %2436 = vmatmul.mubr.f32.gmra.mrb[0].mxu0 %v2361
    %v2437 = vpop.f32.mrb[0].mxu0
    %v2438 = vadd.f32 %v2355, %v2437
    %v2439 = vpop.f32.mrb[0].mxu0
    %2440 = vmatprep.mubr.f32.mxu0 0.0
    %2441 = vmatmul.mubr.f32.gmra.mrb[0].mxu0 %v2364
    %v2442 = vpop.f32.mrb[0].mxu0
    %v2443 = vadd.f32 %v2355, %v2442
    %v2444 = vpop.f32.mrb[0].mxu0
    %2445 = vdwg.mxu0
    %v2446 = vxor.u32 %v2433, 2147483648
    %v2447 = vxor.u32 %v2438, 2147483648
    %v2448 = vxor.u32 %v2443, 2147483648
    %v2449 = vmul.f32 %v2446, 1.442695
    %v2450 = vpow.pop %v2449
    %v2451 = vmul.f32 %v2447, 1.442695
    %v2452 = vpow.pop %v2451
    %v2453 = vmul.f32 %v2448, 1.442695
    %v2454 = vpow.pop %v2453
    %v2455 = vadd.f32 %v2450, 1.0
    %v2456 = vadd.f32 %v2452, 1.0
    %v2457 = vadd.f32 %v2454, 1.0
    %v2458 = vrcp.pop %v2455
    %v2459 = vmul.f32 1.0, %v2458
    %v2460 = vrcp.pop %v2456
    %v2461 = vmul.f32 1.0, %v2460
    %v2462 = vrcp.pop %v2457
    %v2463 = vmul.f32 1.0, %v2462
    %v2464 = vmul.f32 %v2433, %v2459
    %v2465 = vmul.f32 %v2438, %v2461
    %v2466 = vmul.f32 %v2443, %v2463
    %v2468 = vlaneseq
    %v2469 = vshrl.u32 %v2468, 7
    %v2470 = vsub.s32 0, %v2469
    %v2471 = vrot.slane %v2348, %v2470
    %v2474 = vsel %vm355, %v2464, 0
    %v2477 = vsel %vm355, %v2465, 0
    %v2480 = vsel %vm355, %v2466, 0
    %2482 = vmatprep.subr.mxu0 0.0
    %2483 = vmatpush1.msra.mxu0 %v2335
    %2484 = vmatprep.subr.mxu0 0.0
    %2485 = vmatpush1.msra.mxu0 %v2336
    %2486 = vmatprep.subr.mxu0 0.0
    %2487 = vmatpush1.msra.mxu0 %v2337
    %2488 = vmatprep.subr.mxu0 0.0
    %2489 = vmatpush1.msra.mxu0 %v2338
    %2490 = vmatprep.subr.mxu0 0.0
    %2491 = vmatpush1.msra.mxu0 0.0
    %2492 = vmatprep.subr.mxu0 0.0
    %2493 = vmatpush1.msra.mxu0 0.0
    %2494 = vmatprep.subr.mxu0 0.0
    %2495 = vmatpush1.msra.mxu0 0.0
    %2496 = vmatprep.subr.mxu0 0.0
    %2497 = vmatpush1.msra.mxu0 0.0
    %2498 = vmatprep.subr.mxu0 0.0
    %2499 = vmatpush1.msra.mxu0 0.0
    %2500 = vmatprep.subr.mxu0 0.0
    %2501 = vmatpush1.msra.mxu0 0.0
    %2502 = vmatprep.subr.mxu0 0.0
    %2503 = vmatpush1.msra.mxu0 0.0
    %2504 = vmatprep.subr.mxu0 0.0
    %2505 = vmatpush1.msra.mxu0 0.0
    %2506 = vmatprep.subr.mxu0 0.0
    %2507 = vmatpush1.msra.mxu0 0.0
    %2508 = vmatprep.subr.mxu0 0.0
    %2509 = vmatpush1.msra.mxu0 0.0
    %2510 = vmatprep.subr.mxu0 0.0
    %2511 = vmatpush1.msra.mxu0 0.0
    %2512 = vmatprep.subr.mxu0 0.0
    %2513 = vmatpush1.msra.mxu0 0.0
    %2514 = vmatprep.subr.mxu0 0.0
    %2515 = vmatpush1.msra.mxu0 0.0
    %2516 = vmatprep.subr.mxu0 0.0
    %2517 = vmatpush1.msra.mxu0 0.0
    %2518 = vmatprep.subr.mxu0 0.0
    %2519 = vmatpush1.msra.mxu0 0.0
    %2520 = vmatprep.subr.mxu0 0.0
    %2521 = vmatpush1.msra.mxu0 0.0
    %2522 = vmatprep.subr.mxu0 0.0
    %2523 = vmatpush1.msra.mxu0 0.0
    %2524 = vmatprep.subr.mxu0 0.0
    %2525 = vmatpush1.msra.mxu0 0.0
    %2526 = vmatprep.subr.mxu0 0.0
    %2527 = vmatpush1.msra.mxu0 0.0
    %2528 = vmatprep.subr.mxu0 0.0
    %2529 = vmatpush1.msra.mxu0 0.0
    %2530 = vmatprep.subr.mxu0 0.0
    %2531 = vmatpush1.msra.mxu0 0.0
    %2532 = vmatprep.subr.mxu0 0.0
    %2533 = vmatpush1.msra.mxu0 0.0
    %2534 = vmatprep.subr.mxu0 0.0
    %2535 = vmatpush1.msra.mxu0 0.0
    %2536 = vmatprep.subr.mxu0 0.0
    %2537 = vmatpush1.msra.mxu0 0.0
    %2538 = vmatprep.subr.mxu0 0.0
    %2539 = vmatpush1.msra.mxu0 0.0
    %2540 = vmatprep.subr.mxu0 0.0
    %2541 = vmatpush1.msra.mxu0 0.0
    %2542 = vmatprep.subr.mxu0 0.0
    %2543 = vmatpush1.msra.mxu0 0.0
    %2544 = vmatprep.subr.mxu0 0.0
    %2545 = vmatpush1.msra.mxu0 0.0
    %2546 = vmatprep.mubr.f32.mxu0 0.0
    %2547 = vmatmul.mubr.f32.gmra.mrb[0].mxu0 %v2474
    %v2548 = vpop.f32.mrb[0].mxu0
    %v2549 = vadd.f32 %v2471, %v2548
    %v2550 = vpop.f32.mrb[0].mxu0
    %2551 = vmatprep.mubr.f32.mxu0 0.0
    %2552 = vmatmul.mubr.f32.gmra.mrb[0].mxu0 %v2477
    %v2553 = vpop.f32.mrb[0].mxu0
    %v2554 = vadd.f32 %v2471, %v2553
    %v2555 = vpop.f32.mrb[0].mxu0
    %2556 = vmatprep.mubr.f32.mxu0 0.0
    %2557 = vmatmul.mubr.f32.gmra.mrb[0].mxu0 %v2480
    %v2558 = vpop.f32.mrb[0].mxu0
    %v2559 = vadd.f32 %v2471, %v2558
    %v2560 = vpop.f32.mrb[0].mxu0
    %2561 = vdwg.mxu0
    %v2562 = vxor.u32 %v2549, 2147483648
    %v2563 = vxor.u32 %v2554, 2147483648
    %v2564 = vxor.u32 %v2559, 2147483648
    %v2565 = vmul.f32 %v2562, 1.442695
    %v2566 = vpow.pop %v2565
    %v2567 = vmul.f32 %v2563, 1.442695
    %v2568 = vpow.pop %v2567
    %v2569 = vmul.f32 %v2564, 1.442695
    %v2570 = vpow.pop %v2569
    %v2571 = vadd.f32 %v2566, 1.0
    %v2572 = vadd.f32 %v2568, 1.0
    %v2573 = vadd.f32 %v2570, 1.0
    %v2574 = vrcp.pop %v2571
    %v2575 = vmul.f32 1.0, %v2574
    %v2576 = vrcp.pop %v2572
    %v2577 = vmul.f32 1.0, %v2576
    %v2578 = vrcp.pop %v2573
    %v2579 = vmul.f32 1.0, %v2578
    %v2580 = vmul.f32 %v2549, %v2575
    %v2581 = vmul.f32 %v2554, %v2577
    %v2582 = vmul.f32 %v2559, %v2579
    %v2583 = vadd.f32 %v2328, %v2580
    %v2584 = vadd.f32 %v2329, %v2581
    %v2585 = vadd.f32 %v2330, %v2582
    %v2587 = vlaneseq
    %v2588 = vshrl.u32 %v2587, 7
    %v2589 = vsub.s32 0, %v2588
    %v2590 = vrot.slane %v2349, %v2589
    %v2593 = vsel %vm355, %v2583, 0
    %v2596 = vsel %vm355, %v2584, 0
    %v2599 = vsel %vm355, %v2585, 0
    %2601 = vmatprep.subr.mxu0 0.0
    %2602 = vmatpush1.msra.mxu0 %v2339
    %2603 = vmatprep.subr.mxu0 0.0
    %2604 = vmatpush1.msra.mxu0 %v2340
    %2605 = vmatprep.subr.mxu0 0.0
    %2606 = vmatpush1.msra.mxu0 %v2341
    %2607 = vmatprep.subr.mxu0 0.0
    %2608 = vmatpush1.msra.mxu0 %v2342
    %2609 = vmatprep.subr.mxu0 0.0
    %2610 = vmatpush1.msra.mxu0 0.0
    %2611 = vmatprep.subr.mxu0 0.0
    %2612 = vmatpush1.msra.mxu0 0.0
    %2613 = vmatprep.subr.mxu0 0.0
    %2614 = vmatpush1.msra.mxu0 0.0
    %2615 = vmatprep.subr.mxu0 0.0
    %2616 = vmatpush1.msra.mxu0 0.0
    %2617 = vmatprep.subr.mxu0 0.0
    %2618 = vmatpush1.msra.mxu0 0.0
    %2619 = vmatprep.subr.mxu0 0.0
    %2620 = vmatpush1.msra.mxu0 0.0
    %2621 = vmatprep.subr.mxu0 0.0
    %2622 = vmatpush1.msra.mxu0 0.0
    %2623 = vmatprep.subr.mxu0 0.0
    %2624 = vmatpush1.msra.mxu0 0.0
    %2625 = vmatprep.subr.mxu0 0.0
    %2626 = vmatpush1.msra.mxu0 0.0
    %2627 = vmatprep.subr.mxu0 0.0
    %2628 = vmatpush1.msra.mxu0 0.0
    %2629 = vmatprep.subr.mxu0 0.0
    %2630 = vmatpush1.msra.mxu0 0.0
    %2631 = vmatprep.subr.mxu0 0.0
    %2632 = vmatpush1.msra.mxu0 0.0
    %2633 = vmatprep.subr.mxu0 0.0
    %2634 = vmatpush1.msra.mxu0 0.0
    %2635 = vmatprep.subr.mxu0 0.0
    %2636 = vmatpush1.msra.mxu0 0.0
    %2637 = vmatprep.subr.mxu0 0.0
    %2638 = vmatpush1.msra.mxu0 0.0
    %2639 = vmatprep.subr.mxu0 0.0
    %2640 = vmatpush1.msra.mxu0 0.0
    %2641 = vmatprep.subr.mxu0 0.0
    %2642 = vmatpush1.msra.mxu0 0.0
    %2643 = vmatprep.subr.mxu0 0.0
    %2644 = vmatpush1.msra.mxu0 0.0
    %2645 = vmatprep.subr.mxu0 0.0
    %2646 = vmatpush1.msra.mxu0 0.0
    %2647 = vmatprep.subr.mxu0 0.0
    %2648 = vmatpush1.msra.mxu0 0.0
    %2649 = vmatprep.subr.mxu0 0.0
    %2650 = vmatpush1.msra.mxu0 0.0
    %2651 = vmatprep.subr.mxu0 0.0
    %2652 = vmatpush1.msra.mxu0 0.0
    %2653 = vmatprep.subr.mxu0 0.0
    %2654 = vmatpush1.msra.mxu0 0.0
    %2655 = vmatprep.subr.mxu0 0.0
    %2656 = vmatpush1.msra.mxu0 0.0
    %2657 = vmatprep.subr.mxu0 0.0
    %2658 = vmatpush1.msra.mxu0 0.0
    %2659 = vmatprep.subr.mxu0 0.0
    %2660 = vmatpush1.msra.mxu0 0.0
    %2661 = vmatprep.subr.mxu0 0.0
    %2662 = vmatpush1.msra.mxu0 0.0
    %2663 = vmatprep.subr.mxu0 0.0
    %2664 = vmatpush1.msra.mxu0 0.0
    %2665 = vmatprep.mubr.f32.mxu0 0.0
    %2666 = vmatmul.mubr.f32.gmra.mrb[0].mxu0 %v2593
    %v2667 = vpop.f32.mrb[0].mxu0
    %v2668 = vadd.f32 %v2590, %v2667
    %v2669 = vpop.f32.mrb[0].mxu0
    %2670 = vmatprep.mubr.f32.mxu0 0.0
    %2671 = vmatmul.mubr.f32.gmra.mrb[0].mxu0 %v2596
    %v2672 = vpop.f32.mrb[0].mxu0
    %v2673 = vadd.f32 %v2590, %v2672
    %v2674 = vpop.f32.mrb[0].mxu0
    %2675 = vmatprep.mubr.f32.mxu0 0.0
    %2676 = vmatmul.mubr.f32.gmra.mrb[0].mxu0 %v2599
    %v2677 = vpop.f32.mrb[0].mxu0
    %v2678 = vadd.f32 %v2590, %v2677
    %v2679 = vpop.f32.mrb[0].mxu0
    %2680 = vdwg.mxu0
    %v2681 = vxor.u32 %v2668, 2147483648
    %v2682 = vxor.u32 %v2673, 2147483648
    %v2683 = vxor.u32 %v2678, 2147483648
    %v2684 = vmul.f32 %v2681, 1.442695
    %v2685 = vpow.pop %v2684
    %v2686 = vmul.f32 %v2682, 1.442695
    %v2687 = vpow.pop %v2686
    %v2688 = vmul.f32 %v2683, 1.442695
    %v2689 = vpow.pop %v2688
    %v2690 = vadd.f32 %v2685, 1.0
    %v2691 = vadd.f32 %v2687, 1.0
    %v2692 = vadd.f32 %v2689, 1.0
    %v2693 = vrcp.pop %v2690
    %v2694 = vmul.f32 1.0, %v2693
    %v2695 = vrcp.pop %v2691
    %v2696 = vmul.f32 1.0, %v2695
    %v2697 = vrcp.pop %v2692
    %v2698 = vmul.f32 1.0, %v2697
    %v2699 = vmul.f32 %v2668, %v2694
    %v2700 = vmul.f32 %v2673, %v2696
    %v2701 = vmul.f32 %v2678, %v2698
    %v2703 = vlaneseq
    %v2704 = vshrl.u32 %v2703, 7
    %v2705 = vsub.s32 0, %v2704
    %v2706 = vrot.slane %v2350, %v2705
    %v2709 = vsel %vm355, %v2699, 0
    %v2712 = vsel %vm355, %v2700, 0
    %v2715 = vsel %vm355, %v2701, 0
    %2717 = vmatprep.subr.mxu0 0.0
    %2718 = vmatpush1.msra.mxu0 %v2343
    %2719 = vmatprep.subr.mxu0 0.0
    %2720 = vmatpush1.msra.mxu0 %v2344
    %2721 = vmatprep.subr.mxu0 0.0
    %2722 = vmatpush1.msra.mxu0 %v2345
    %2723 = vmatprep.subr.mxu0 0.0
    %2724 = vmatpush1.msra.mxu0 %v2346
    %2725 = vmatprep.subr.mxu0 0.0
    %2726 = vmatpush1.msra.mxu0 0.0
    %2727 = vmatprep.subr.mxu0 0.0
    %2728 = vmatpush1.msra.mxu0 0.0
    %2729 = vmatprep.subr.mxu0 0.0
    %2730 = vmatpush1.msra.mxu0 0.0
    %2731 = vmatprep.subr.mxu0 0.0
    %2732 = vmatpush1.msra.mxu0 0.0
    %2733 = vmatprep.subr.mxu0 0.0
    %2734 = vmatpush1.msra.mxu0 0.0
    %2735 = vmatprep.subr.mxu0 0.0
    %2736 = vmatpush1.msra.mxu0 0.0
    %2737 = vmatprep.subr.mxu0 0.0
    %2738 = vmatpush1.msra.mxu0 0.0
    %2739 = vmatprep.subr.mxu0 0.0
    %2740 = vmatpush1.msra.mxu0 0.0
    %2741 = vmatprep.subr.mxu0 0.0
    %2742 = vmatpush1.msra.mxu0 0.0
    %2743 = vmatprep.subr.mxu0 0.0
    %2744 = vmatpush1.msra.mxu0 0.0
    %2745 = vmatprep.subr.mxu0 0.0
    %2746 = vmatpush1.msra.mxu0 0.0
    %2747 = vmatprep.subr.mxu0 0.0
    %2748 = vmatpush1.msra.mxu0 0.0
    %2749 = vmatprep.subr.mxu0 0.0
    %2750 = vmatpush1.msra.mxu0 0.0
    %2751 = vmatprep.subr.mxu0 0.0
    %2752 = vmatpush1.msra.mxu0 0.0
    %2753 = vmatprep.subr.mxu0 0.0
    %2754 = vmatpush1.msra.mxu0 0.0
    %2755 = vmatprep.subr.mxu0 0.0
    %2756 = vmatpush1.msra.mxu0 0.0
    %2757 = vmatprep.subr.mxu0 0.0
    %2758 = vmatpush1.msra.mxu0 0.0
    %2759 = vmatprep.subr.mxu0 0.0
    %2760 = vmatpush1.msra.mxu0 0.0
    %2761 = vmatprep.subr.mxu0 0.0
    %2762 = vmatpush1.msra.mxu0 0.0
    %2763 = vmatprep.subr.mxu0 0.0
    %2764 = vmatpush1.msra.mxu0 0.0
    %2765 = vmatprep.subr.mxu0 0.0
    %2766 = vmatpush1.msra.mxu0 0.0
    %2767 = vmatprep.subr.mxu0 0.0
    %2768 = vmatpush1.msra.mxu0 0.0
    %2769 = vmatprep.subr.mxu0 0.0
    %2770 = vmatpush1.msra.mxu0 0.0
    %2771 = vmatprep.subr.mxu0 0.0
    %2772 = vmatpush1.msra.mxu0 0.0
    %2773 = vmatprep.subr.mxu0 0.0
    %2774 = vmatpush1.msra.mxu0 0.0
    %2775 = vmatprep.subr.mxu0 0.0
    %2776 = vmatpush1.msra.mxu0 0.0
    %2777 = vmatprep.subr.mxu0 0.0
    %2778 = vmatpush1.msra.mxu0 0.0
    %2779 = vmatprep.subr.mxu0 0.0
    %2780 = vmatpush1.msra.mxu0 0.0
    %2781 = vmatprep.mubr.f32.mxu0 0.0
    %2782 = vmatmul.mubr.f32.gmra.mrb[0].mxu0 %v2709
    %v2783 = vpop.f32.mrb[0].mxu0
    %v2784 = vadd.f32 %v2706, %v2783
    %v2785 = vpop.f32.mrb[0].mxu0
    %2786 = vmatprep.mubr.f32.mxu0 0.0
    %2787 = vmatmul.mubr.f32.gmra.mrb[0].mxu0 %v2712
    %v2788 = vpop.f32.mrb[0].mxu0
    %v2789 = vadd.f32 %v2706, %v2788
    %v2790 = vpop.f32.mrb[0].mxu0
    %2791 = vmatprep.mubr.f32.mxu0 0.0
    %2792 = vmatmul.mubr.f32.gmra.mrb[0].mxu0 %v2715
    %v2793 = vpop.f32.mrb[0].mxu0
    %v2794 = vadd.f32 %v2706, %v2793
    %v2795 = vpop.f32.mrb[0].mxu0
    %2796 = vdwg.mxu0
    %v2797 = vxor.u32 %v2784, 2147483648
    %v2798 = vxor.u32 %v2789, 2147483648
    %v2799 = vxor.u32 %v2794, 2147483648
    %v2800 = vmul.f32 %v2797, 1.442695
    %v2801 = vpow.pop %v2800
    %v2802 = vmul.f32 %v2798, 1.442695
    %v2803 = vpow.pop %v2802
    %v2804 = vmul.f32 %v2799, 1.442695
    %v2805 = vpow.pop %v2804
    %v2806 = vadd.f32 %v2801, 1.0
    %v2807 = vadd.f32 %v2803, 1.0
    %v2808 = vadd.f32 %v2805, 1.0
    %v2809 = vrcp.pop %v2806
    %v2810 = vmul.f32 1.0, %v2809
    %v2811 = vrcp.pop %v2807
    %v2812 = vmul.f32 1.0, %v2811
    %v2813 = vrcp.pop %v2808
    %v2814 = vmul.f32 1.0, %v2813
    %v2815 = vmul.f32 %v2784, %v2810
    %v2816 = vmul.f32 %v2789, %v2812
    %v2817 = vmul.f32 %v2794, %v2814
    %v2818 = vadd.f32 %v2583, %v2815
    %v2819 = vadd.f32 %v2584, %v2816
    %v2820 = vadd.f32 %v2585, %v2817
    %s2821 = scalar_lea.vmem %s29, 8
    %v2822 = vld [vmem:[%s2821] sm:$0x3f]
    %v2824 = vsel %vm236, %v2822, 0
    %2826 = vmatprep.subr.mxu0 0.0
    %2827 = vmatpush1.msra.mxu0 %v2824
    %2828 = vmatprep.subr.mxu0 0.0
    %2829 = vmatpush1.msra.mxu0 0.0
    %2830 = vmatprep.subr.mxu0 0.0
    %2831 = vmatpush1.msra.mxu0 0.0
    %2832 = vmatprep.subr.mxu0 0.0
    %2833 = vmatpush1.msra.mxu0 0.0
    %2834 = vmatprep.subr.mxu0 0.0
    %2835 = vmatpush1.msra.mxu0 0.0
    %2836 = vmatprep.subr.mxu0 0.0
    %2837 = vmatpush1.msra.mxu0 0.0
    %2838 = vmatprep.subr.mxu0 0.0
    %2839 = vmatpush1.msra.mxu0 0.0
    %2840 = vmatprep.subr.mxu0 0.0
    %2841 = vmatpush1.msra.mxu0 0.0
    %2842 = vmatprep.subr.mxu0 0.0
    %2843 = vmatpush1.msra.mxu0 0.0
    %2844 = vmatprep.subr.mxu0 0.0
    %2845 = vmatpush1.msra.mxu0 0.0
    %2846 = vmatprep.subr.mxu0 0.0
    %2847 = vmatpush1.msra.mxu0 0.0
    %2848 = vmatprep.subr.mxu0 0.0
    %2849 = vmatpush1.msra.mxu0 0.0
    %2850 = vmatprep.subr.mxu0 0.0
    %2851 = vmatpush1.msra.mxu0 0.0
    %2852 = vmatprep.subr.mxu0 0.0
    %2853 = vmatpush1.msra.mxu0 0.0
    %2854 = vmatprep.subr.mxu0 0.0
    %2855 = vmatpush1.msra.mxu0 0.0
    %2856 = vmatprep.subr.mxu0 0.0
    %2857 = vmatpush1.msra.mxu0 0.0
    %2858 = vmatprep.subr.mxu0 0.0
    %2859 = vmatpush1.msra.mxu0 0.0
    %2860 = vmatprep.subr.mxu0 0.0
    %2861 = vmatpush1.msra.mxu0 0.0
    %2862 = vmatprep.subr.mxu0 0.0
    %2863 = vmatpush1.msra.mxu0 0.0
    %2864 = vmatprep.subr.mxu0 0.0
    %2865 = vmatpush1.msra.mxu0 0.0
    %2866 = vmatprep.subr.mxu0 0.0
    %2867 = vmatpush1.msra.mxu0 0.0
    %2868 = vmatprep.subr.mxu0 0.0
    %2869 = vmatpush1.msra.mxu0 0.0
    %2870 = vmatprep.subr.mxu0 0.0
    %2871 = vmatpush1.msra.mxu0 0.0
    %2872 = vmatprep.subr.mxu0 0.0
    %2873 = vmatpush1.msra.mxu0 0.0
    %2874 = vmatprep.subr.mxu0 0.0
    %2875 = vmatpush1.msra.mxu0 0.0
    %2876 = vmatprep.subr.mxu0 0.0
    %2877 = vmatpush1.msra.mxu0 0.0
    %2878 = vmatprep.subr.mxu0 0.0
    %2879 = vmatpush1.msra.mxu0 0.0
    %2880 = vmatprep.subr.mxu0 0.0
    %2881 = vmatpush1.msra.mxu0 0.0
    %2882 = vmatprep.subr.mxu0 0.0
    %2883 = vmatpush1.msra.mxu0 0.0
    %2884 = vmatprep.subr.mxu0 0.0
    %2885 = vmatpush1.msra.mxu0 0.0
    %2886 = vmatprep.subr.mxu0 0.0
    %2887 = vmatpush1.msra.mxu0 0.0
    %2888 = vmatprep.subr.mxu0 0.0
    %2889 = vmatpush1.msra.mxu0 0.0
    %2890 = vmatprep.mubr.f32.mxu0 0.0
    %2891 = vmatmul.mubr.f32.gmra.mrb[0].mxu0 %v228
    %v2892 = vpop.f32.mrb[0].mxu0
    %v2893 = vadd.f32 0.0, %v2892
    %v2894 = vpop.f32.mrb[0].mxu0
    %2895 = vmatprep.mubr.f32.mxu0 0.0
    %2896 = vmatmul.mubr.f32.gmra.mrb[0].mxu0 %v231
    %v2897 = vpop.f32.mrb[0].mxu0
    %v2898 = vadd.f32 0.0, %v2897
    %v2899 = vpop.f32.mrb[0].mxu0
    %2900 = vmatprep.mubr.f32.mxu0 0.0
    %2901 = vmatmul.mubr.f32.gmra.mrb[0].mxu0 %v234
    %v2902 = vpop.f32.mrb[0].mxu0
    %v2903 = vadd.f32 0.0, %v2902
    %v2904 = vpop.f32.mrb[0].mxu0
    %2905 = vdwg.mxu0
    %v2906 = vmul.f32 %v2893, %v2818
    %v2907 = vmul.f32 %v2898, %v2819
    %v2908 = vmul.f32 %v2903, %v2820
    %2909 = vmatprep.subr.mxu0 0.0
    %2910 = vmatpush1.msra.mxu0 %v2906
    %2911 = vmatprep.subr.mxu0 0.0
    %2912 = vmatpush1.msra.mxu0 %v2907
    %2913 = vmatprep.subr.mxu0 0.0
    %2914 = vmatpush1.msra.mxu0 %v2908
    %2915 = vmatprep.subr.mxu0 0.0
    %2916 = vmatpush1.msra.mxu0 0.0
    %2917 = vmatprep.subr.mxu0 0.0
    %2918 = vmatpush1.msra.mxu0 0.0
    %2919 = vmatprep.subr.mxu0 0.0
    %2920 = vmatpush1.msra.mxu0 0.0
    %2921 = vmatprep.subr.mxu0 0.0
    %2922 = vmatpush1.msra.mxu0 0.0
    %2923 = vmatprep.subr.mxu0 0.0
    %2924 = vmatpush1.msra.mxu0 0.0
    %2925 = vmatprep.subr.mxu0 0.0
    %2926 = vmatpush1.msra.mxu0 0.0
    %2927 = vmatprep.subr.mxu0 0.0
    %2928 = vmatpush1.msra.mxu0 0.0
    %2929 = vmatprep.subr.mxu0 0.0
    %2930 = vmatpush1.msra.mxu0 0.0
    %2931 = vmatprep.subr.mxu0 0.0
    %2932 = vmatpush1.msra.mxu0 0.0
    %2933 = vmatprep.subr.mxu0 0.0
    %2934 = vmatpush1.msra.mxu0 0.0
    %2935 = vmatprep.subr.mxu0 0.0
    %2936 = vmatpush1.msra.mxu0 0.0
    %2937 = vmatprep.subr.mxu0 0.0
    %2938 = vmatpush1.msra.mxu0 0.0
    %2939 = vmatprep.subr.mxu0 0.0
    %2940 = vmatpush1.msra.mxu0 0.0
    %2941 = vmatprep.subr.mxu0 0.0
    %2942 = vmatpush1.msra.mxu0 0.0
    %2943 = vmatprep.subr.mxu0 0.0
    %2944 = vmatpush1.msra.mxu0 0.0
    %2945 = vmatprep.subr.mxu0 0.0
    %2946 = vmatpush1.msra.mxu0 0.0
    %2947 = vmatprep.subr.mxu0 0.0
    %2948 = vmatpush1.msra.mxu0 0.0
    %2949 = vmatprep.subr.mxu0 0.0
    %2950 = vmatpush1.msra.mxu0 0.0
    %2951 = vmatprep.subr.mxu0 0.0
    %2952 = vmatpush1.msra.mxu0 0.0
    %2953 = vmatprep.subr.mxu0 0.0
    %2954 = vmatpush1.msra.mxu0 0.0
    %2955 = vmatprep.subr.mxu0 0.0
    %2956 = vmatpush1.msra.mxu0 0.0
    %2957 = vmatprep.subr.mxu0 0.0
    %2958 = vmatpush1.msra.mxu0 0.0
    %2959 = vmatprep.subr.mxu0 0.0
    %2960 = vmatpush1.msra.mxu0 0.0
    %2961 = vmatprep.subr.mxu0 0.0
    %2962 = vmatpush1.msra.mxu0 0.0
    %2963 = vmatprep.subr.mxu0 0.0
    %2964 = vmatpush1.msra.mxu0 0.0
    %2965 = vmatprep.subr.mxu0 0.0
    %2966 = vmatpush1.msra.mxu0 0.0
    %2967 = vmatprep.subr.mxu0 0.0
    %2968 = vmatpush1.msra.mxu0 0.0
    %2969 = vmatprep.subr.mxu0 0.0
    %2970 = vmatpush1.msra.mxu0 0.0
    %2971 = vmatprep.subr.mxu0 0.0
    %2972 = vmatpush1.msra.mxu0 0.0
    %2973 = vmatprep.mubr.f32.mxu0 0.0
    %2974 = vmatmul.mubr.f32.gmra.mrb[0].mxu0 %v750
    %v2975 = vpop.f32.mrb[0].mxu0
    %v2976 = vadd.f32 0.0, %v2975
    %v2977 = vpop.f32.mrb[0].mxu0
    %2978 = vdwg.mxu0
    %s2979 = scalar_lea.vmem %s31, 32
    %v2980 = vld [vmem:[%s2979] sm:$0xff]
    %v2981 = vld [vmem:[%s2979 + $0x8] sm:$0xff]
    %v2982 = vld [vmem:[%s2979 + $0x10] sm:$0xff]
    %v2983 = vld [vmem:[%s2979 + $0x18] sm:$0xff]
    %v2985 = vsel %vm355, %v2976, 0
    %2987 = vmatprep.subr.mxu0 0.0
    %2988 = vmatpush1.msra.mxu0 %v2980
    %2989 = vmatprep.subr.mxu0 0.0
    %2990 = vmatpush1.msra.mxu0 %v2981
    %2991 = vmatprep.subr.mxu0 0.0
    %2992 = vmatpush1.msra.mxu0 %v2982
    %2993 = vmatprep.subr.mxu0 0.0
    %2994 = vmatpush1.msra.mxu0 %v2983
    %2995 = vmatprep.subr.mxu0 0.0
    %2996 = vmatpush1.msra.mxu0 0.0
    %2997 = vmatprep.subr.mxu0 0.0
    %2998 = vmatpush1.msra.mxu0 0.0
    %2999 = vmatprep.subr.mxu0 0.0
    %3000 = vmatpush1.msra.mxu0 0.0
    %3001 = vmatprep.subr.mxu0 0.0
    %3002 = vmatpush1.msra.mxu0 0.0
    %3003 = vmatprep.subr.mxu0 0.0
    %3004 = vmatpush1.msra.mxu0 0.0
    %3005 = vmatprep.subr.mxu0 0.0
    %3006 = vmatpush1.msra.mxu0 0.0
    %3007 = vmatprep.subr.mxu0 0.0
    %3008 = vmatpush1.msra.mxu0 0.0
    %3009 = vmatprep.subr.mxu0 0.0
    %3010 = vmatpush1.msra.mxu0 0.0
    %3011 = vmatprep.subr.mxu0 0.0
    %3012 = vmatpush1.msra.mxu0 0.0
    %3013 = vmatprep.subr.mxu0 0.0
    %3014 = vmatpush1.msra.mxu0 0.0
    %3015 = vmatprep.subr.mxu0 0.0
    %3016 = vmatpush1.msra.mxu0 0.0
    %3017 = vmatprep.subr.mxu0 0.0
    %3018 = vmatpush1.msra.mxu0 0.0
    %3019 = vmatprep.subr.mxu0 0.0
    %3020 = vmatpush1.msra.mxu0 0.0
    %3021 = vmatprep.subr.mxu0 0.0
    %3022 = vmatpush1.msra.mxu0 0.0
    %3023 = vmatprep.subr.mxu0 0.0
    %3024 = vmatpush1.msra.mxu0 0.0
    %3025 = vmatprep.subr.mxu0 0.0
    %3026 = vmatpush1.msra.mxu0 0.0
    %3027 = vmatprep.subr.mxu0 0.0
    %3028 = vmatpush1.msra.mxu0 0.0
    %3029 = vmatprep.subr.mxu0 0.0
    %3030 = vmatpush1.msra.mxu0 0.0
    %3031 = vmatprep.subr.mxu0 0.0
    %3032 = vmatpush1.msra.mxu0 0.0
    %3033 = vmatprep.subr.mxu0 0.0
    %3034 = vmatpush1.msra.mxu0 0.0
    %3035 = vmatprep.subr.mxu0 0.0
    %3036 = vmatpush1.msra.mxu0 0.0
    %3037 = vmatprep.subr.mxu0 0.0
    %3038 = vmatpush1.msra.mxu0 0.0
    %3039 = vmatprep.subr.mxu0 0.0
    %3040 = vmatpush1.msra.mxu0 0.0
    %3041 = vmatprep.subr.mxu0 0.0
    %3042 = vmatpush1.msra.mxu0 0.0
    %3043 = vmatprep.subr.mxu0 0.0
    %3044 = vmatpush1.msra.mxu0 0.0
    %3045 = vmatprep.subr.mxu0 0.0
    %3046 = vmatpush1.msra.mxu0 0.0
    %3047 = vmatprep.subr.mxu0 0.0
    %3048 = vmatpush1.msra.mxu0 0.0
    %3049 = vmatprep.subr.mxu0 0.0
    %3050 = vmatpush1.msra.mxu0 0.0
    %3051 = vmatprep.mubr.f32.mxu0 0.0
    %3052 = vmatmul.mubr.f32.gmra.mrb[0].mxu0 %v2985
    %v3053 = vpop.f32.mrb[0].mxu0
    %v3054 = vadd.f32 0.0, %v3053
    %v3055 = vpop.f32.mrb[0].mxu0
    %3056 = vdwg.mxu0
    %s3057 = scalar_lea.vmem %s33, 96
    %v3058 = vld [vmem:[%s3057] sm:$0xff]
    %v3059 = vld [vmem:[%s3057 + $0x8] sm:$0xff]
    %v3060 = vld [vmem:[%s3057 + $0x10] sm:$0xff]
    %v3061 = vld [vmem:[%s3057 + $0x18] sm:$0xff]
    %v3062 = vld [vmem:[%s3057 + $0x20] sm:$0xff]
    %v3063 = vld [vmem:[%s3057 + $0x28] sm:$0xff]
    %v3064 = vld [vmem:[%s3057 + $0x30] sm:$0xff]
    %v3065 = vld [vmem:[%s3057 + $0x38] sm:$0xff]
    %v3066 = vld [vmem:[%s3057 + $0x40] sm:$0xff]
    %v3067 = vld [vmem:[%s3057 + $0x48] sm:$0xff]
    %v3068 = vld [vmem:[%s3057 + $0x50] sm:$0xff]
    %v3069 = vld [vmem:[%s3057 + $0x58] sm:$0xff]
    %s3070 = scalar_lea.vmem %s35, 3
    %v3071 = vld [vmem:[%s3070] sm:$0x1]
    %v3072 = vld [vmem:[%s3070 + $0x1] sm:$0x1]
    %v3073 = vld [vmem:[%s3070 + $0x2] sm:$0x1]
    %v3075 = vlaneseq
    %v3076 = vshrl.u32 %v3075, 7
    %v3077 = vsub.s32 0, %v3076
    %v3078 = vrot.slane %v3071, %v3077
    %v3081 = vsel %vm355, %v3054, 0
    %3083 = vmatprep.subr.mxu0 0.0
    %3084 = vmatpush1.msra.mxu0 %v3058
    %3085 = vmatprep.subr.mxu0 0.0
    %3086 = vmatpush1.msra.mxu0 %v3059
    %3087 = vmatprep.subr.mxu0 0.0
    %3088 = vmatpush1.msra.mxu0 %v3060
    %3089 = vmatprep.subr.mxu0 0.0
    %3090 = vmatpush1.msra.mxu0 %v3061
    %3091 = vmatprep.subr.mxu0 0.0
    %3092 = vmatpush1.msra.mxu0 0.0
    %3093 = vmatprep.subr.mxu0 0.0
    %3094 = vmatpush1.msra.mxu0 0.0
    %3095 = vmatprep.subr.mxu0 0.0
    %3096 = vmatpush1.msra.mxu0 0.0
    %3097 = vmatprep.subr.mxu0 0.0
    %3098 = vmatpush1.msra.mxu0 0.0
    %3099 = vmatprep.subr.mxu0 0.0
    %3100 = vmatpush1.msra.mxu0 0.0
    %3101 = vmatprep.subr.mxu0 0.0
    %3102 = vmatpush1.msra.mxu0 0.0
    %3103 = vmatprep.subr.mxu0 0.0
    %3104 = vmatpush1.msra.mxu0 0.0
    %3105 = vmatprep.subr.mxu0 0.0
    %3106 = vmatpush1.msra.mxu0 0.0
    %3107 = vmatprep.subr.mxu0 0.0
    %3108 = vmatpush1.msra.mxu0 0.0
    %3109 = vmatprep.subr.mxu0 0.0
    %3110 = vmatpush1.msra.mxu0 0.0
    %3111 = vmatprep.subr.mxu0 0.0
    %3112 = vmatpush1.msra.mxu0 0.0
    %3113 = vmatprep.subr.mxu0 0.0
    %3114 = vmatpush1.msra.mxu0 0.0
    %3115 = vmatprep.subr.mxu0 0.0
    %3116 = vmatpush1.msra.mxu0 0.0
    %3117 = vmatprep.subr.mxu0 0.0
    %3118 = vmatpush1.msra.mxu0 0.0
    %3119 = vmatprep.subr.mxu0 0.0
    %3120 = vmatpush1.msra.mxu0 0.0
    %3121 = vmatprep.subr.mxu0 0.0
    %3122 = vmatpush1.msra.mxu0 0.0
    %3123 = vmatprep.subr.mxu0 0.0
    %3124 = vmatpush1.msra.mxu0 0.0
    %3125 = vmatprep.subr.mxu0 0.0
    %3126 = vmatpush1.msra.mxu0 0.0
    %3127 = vmatprep.subr.mxu0 0.0
    %3128 = vmatpush1.msra.mxu0 0.0
    %3129 = vmatprep.subr.mxu0 0.0
    %3130 = vmatpush1.msra.mxu0 0.0
    %3131 = vmatprep.subr.mxu0 0.0
    %3132 = vmatpush1.msra.mxu0 0.0
    %3133 = vmatprep.subr.mxu0 0.0
    %3134 = vmatpush1.msra.mxu0 0.0
    %3135 = vmatprep.subr.mxu0 0.0
    %3136 = vmatpush1.msra.mxu0 0.0
    %3137 = vmatprep.subr.mxu0 0.0
    %3138 = vmatpush1.msra.mxu0 0.0
    %3139 = vmatprep.subr.mxu0 0.0
    %3140 = vmatpush1.msra.mxu0 0.0
    %3141 = vmatprep.subr.mxu0 0.0
    %3142 = vmatpush1.msra.mxu0 0.0
    %3143 = vmatprep.subr.mxu0 0.0
    %3144 = vmatpush1.msra.mxu0 0.0
    %3145 = vmatprep.subr.mxu0 0.0
    %3146 = vmatpush1.msra.mxu0 0.0
    %3147 = vmatprep.mubr.f32.mxu0 0.0
    %3148 = vmatmul.mubr.f32.gmra.mrb[0].mxu0 %v3081
    %v3149 = vpop.f32.mrb[0].mxu0
    %v3150 = vadd.f32 %v3078, %v3149
    %v3151 = vpop.f32.mrb[0].mxu0
    %3152 = vdwg.mxu0
    %v3153 = vxor.u32 %v3150, 2147483648
    %v3154 = vmul.f32 %v3153, 1.442695
    %v3155 = vpow.pop %v3154
    %v3156 = vadd.f32 %v3155, 1.0
    %v3157 = vrcp.pop %v3156
    %v3158 = vmul.f32 1.0, %v3157
    %v3159 = vmul.f32 %v3150, %v3158
    %v3161 = vlaneseq
    %v3162 = vshrl.u32 %v3161, 7
    %v3163 = vsub.s32 0, %v3162
    %v3164 = vrot.slane %v3072, %v3163
    %v3167 = vsel %vm355, %v3159, 0
    %3169 = vmatprep.subr.mxu0 0.0
    %3170 = vmatpush1.msra.mxu0 %v3062
    %3171 = vmatprep.subr.mxu0 0.0
    %3172 = vmatpush1.msra.mxu0 %v3063
    %3173 = vmatprep.subr.mxu0 0.0
    %3174 = vmatpush1.msra.mxu0 %v3064
    %3175 = vmatprep.subr.mxu0 0.0
    %3176 = vmatpush1.msra.mxu0 %v3065
    %3177 = vmatprep.subr.mxu0 0.0
    %3178 = vmatpush1.msra.mxu0 0.0
    %3179 = vmatprep.subr.mxu0 0.0
    %3180 = vmatpush1.msra.mxu0 0.0
    %3181 = vmatprep.subr.mxu0 0.0
    %3182 = vmatpush1.msra.mxu0 0.0
    %3183 = vmatprep.subr.mxu0 0.0
    %3184 = vmatpush1.msra.mxu0 0.0
    %3185 = vmatprep.subr.mxu0 0.0
    %3186 = vmatpush1.msra.mxu0 0.0
    %3187 = vmatprep.subr.mxu0 0.0
    %3188 = vmatpush1.msra.mxu0 0.0
    %3189 = vmatprep.subr.mxu0 0.0
    %3190 = vmatpush1.msra.mxu0 0.0
    %3191 = vmatprep.subr.mxu0 0.0
    %3192 = vmatpush1.msra.mxu0 0.0
    %3193 = vmatprep.subr.mxu0 0.0
    %3194 = vmatpush1.msra.mxu0 0.0
    %3195 = vmatprep.subr.mxu0 0.0
    %3196 = vmatpush1.msra.mxu0 0.0
    %3197 = vmatprep.subr.mxu0 0.0
    %3198 = vmatpush1.msra.mxu0 0.0
    %3199 = vmatprep.subr.mxu0 0.0
    %3200 = vmatpush1.msra.mxu0 0.0
    %3201 = vmatprep.subr.mxu0 0.0
    %3202 = vmatpush1.msra.mxu0 0.0
    %3203 = vmatprep.subr.mxu0 0.0
    %3204 = vmatpush1.msra.mxu0 0.0
    %3205 = vmatprep.subr.mxu0 0.0
    %3206 = vmatpush1.msra.mxu0 0.0
    %3207 = vmatprep.subr.mxu0 0.0
    %3208 = vmatpush1.msra.mxu0 0.0
    %3209 = vmatprep.subr.mxu0 0.0
    %3210 = vmatpush1.msra.mxu0 0.0
    %3211 = vmatprep.subr.mxu0 0.0
    %3212 = vmatpush1.msra.mxu0 0.0
    %3213 = vmatprep.subr.mxu0 0.0
    %3214 = vmatpush1.msra.mxu0 0.0
    %3215 = vmatprep.subr.mxu0 0.0
    %3216 = vmatpush1.msra.mxu0 0.0
    %3217 = vmatprep.subr.mxu0 0.0
    %3218 = vmatpush1.msra.mxu0 0.0
    %3219 = vmatprep.subr.mxu0 0.0
    %3220 = vmatpush1.msra.mxu0 0.0
    %3221 = vmatprep.subr.mxu0 0.0
    %3222 = vmatpush1.msra.mxu0 0.0
    %3223 = vmatprep.subr.mxu0 0.0
    %3224 = vmatpush1.msra.mxu0 0.0
    %3225 = vmatprep.subr.mxu0 0.0
    %3226 = vmatpush1.msra.mxu0 0.0
    %3227 = vmatprep.subr.mxu0 0.0
    %3228 = vmatpush1.msra.mxu0 0.0
    %3229 = vmatprep.subr.mxu0 0.0
    %3230 = vmatpush1.msra.mxu0 0.0
    %3231 = vmatprep.subr.mxu0 0.0
    %3232 = vmatpush1.msra.mxu0 0.0
    %3233 = vmatprep.mubr.f32.mxu0 0.0
    %3234 = vmatmul.mubr.f32.gmra.mrb[0].mxu0 %v3167
    %v3235 = vpop.f32.mrb[0].mxu0
    %v3236 = vadd.f32 %v3164, %v3235
    %v3237 = vpop.f32.mrb[0].mxu0
    %3238 = vdwg.mxu0
    %v3239 = vxor.u32 %v3236, 2147483648
    %v3240 = vmul.f32 %v3239, 1.442695
    %v3241 = vpow.pop %v3240
    %v3242 = vadd.f32 %v3241, 1.0
    %v3243 = vrcp.pop %v3242
    %v3244 = vmul.f32 1.0, %v3243
    %v3245 = vmul.f32 %v3236, %v3244
    %v3247 = vlaneseq
    %v3248 = vshrl.u32 %v3247, 7
    %v3249 = vsub.s32 0, %v3248
    %v3250 = vrot.slane %v3073, %v3249
    %v3253 = vsel %vm355, %v3245, 0
    %3255 = vmatprep.subr.mxu0 0.0
    %3256 = vmatpush1.msra.mxu0 %v3066
    %3257 = vmatprep.subr.mxu0 0.0
    %3258 = vmatpush1.msra.mxu0 %v3067
    %3259 = vmatprep.subr.mxu0 0.0
    %3260 = vmatpush1.msra.mxu0 %v3068
    %3261 = vmatprep.subr.mxu0 0.0
    %3262 = vmatpush1.msra.mxu0 %v3069
    %3263 = vmatprep.subr.mxu0 0.0
    %3264 = vmatpush1.msra.mxu0 0.0
    %3265 = vmatprep.subr.mxu0 0.0
    %3266 = vmatpush1.msra.mxu0 0.0
    %3267 = vmatprep.subr.mxu0 0.0
    %3268 = vmatpush1.msra.mxu0 0.0
    %3269 = vmatprep.subr.mxu0 0.0
    %3270 = vmatpush1.msra.mxu0 0.0
    %3271 = vmatprep.subr.mxu0 0.0
    %3272 = vmatpush1.msra.mxu0 0.0
    %3273 = vmatprep.subr.mxu0 0.0
    %3274 = vmatpush1.msra.mxu0 0.0
    %3275 = vmatprep.subr.mxu0 0.0
    %3276 = vmatpush1.msra.mxu0 0.0
    %3277 = vmatprep.subr.mxu0 0.0
    %3278 = vmatpush1.msra.mxu0 0.0
    %3279 = vmatprep.subr.mxu0 0.0
    %3280 = vmatpush1.msra.mxu0 0.0
    %3281 = vmatprep.subr.mxu0 0.0
    %3282 = vmatpush1.msra.mxu0 0.0
    %3283 = vmatprep.subr.mxu0 0.0
    %3284 = vmatpush1.msra.mxu0 0.0
    %3285 = vmatprep.subr.mxu0 0.0
    %3286 = vmatpush1.msra.mxu0 0.0
    %3287 = vmatprep.subr.mxu0 0.0
    %3288 = vmatpush1.msra.mxu0 0.0
    %3289 = vmatprep.subr.mxu0 0.0
    %3290 = vmatpush1.msra.mxu0 0.0
    %3291 = vmatprep.subr.mxu0 0.0
    %3292 = vmatpush1.msra.mxu0 0.0
    %3293 = vmatprep.subr.mxu0 0.0
    %3294 = vmatpush1.msra.mxu0 0.0
    %3295 = vmatprep.subr.mxu0 0.0
    %3296 = vmatpush1.msra.mxu0 0.0
    %3297 = vmatprep.subr.mxu0 0.0
    %3298 = vmatpush1.msra.mxu0 0.0
    %3299 = vmatprep.subr.mxu0 0.0
    %3300 = vmatpush1.msra.mxu0 0.0
    %3301 = vmatprep.subr.mxu0 0.0
    %3302 = vmatpush1.msra.mxu0 0.0
    %3303 = vmatprep.subr.mxu0 0.0
    %3304 = vmatpush1.msra.mxu0 0.0
    %3305 = vmatprep.subr.mxu0 0.0
    %3306 = vmatpush1.msra.mxu0 0.0
    %3307 = vmatprep.subr.mxu0 0.0
    %3308 = vmatpush1.msra.mxu0 0.0
    %3309 = vmatprep.subr.mxu0 0.0
    %3310 = vmatpush1.msra.mxu0 0.0
    %3311 = vmatprep.subr.mxu0 0.0
    %3312 = vmatpush1.msra.mxu0 0.0
    %3313 = vmatprep.subr.mxu0 0.0
    %3314 = vmatpush1.msra.mxu0 0.0
    %3315 = vmatprep.subr.mxu0 0.0
    %3316 = vmatpush1.msra.mxu0 0.0
    %3317 = vmatprep.subr.mxu0 0.0
    %3318 = vmatpush1.msra.mxu0 0.0
    %3319 = vmatprep.mubr.f32.mxu0 0.0
    %3320 = vmatmul.mubr.f32.gmra.mrb[0].mxu0 %v3253
    %v3321 = vpop.f32.mrb[0].mxu0
    %v3322 = vadd.f32 %v3250, %v3321
    %v3323 = vpop.f32.mrb[0].mxu0
    %3324 = vdwg.mxu0
    %v3325 = vxor.u32 %v3322, 2147483648
    %v3326 = vmul.f32 %v3325, 1.442695
    %v3327 = vpow.pop %v3326
    %v3328 = vadd.f32 %v3327, 1.0
    %v3329 = vrcp.pop %v3328
    %v3330 = vmul.f32 1.0, %v3329
    %v3331 = vmul.f32 %v3322, %v3330
    %s3332 = scalar_lea.vmem %s37, 32
    %v3333 = vld [vmem:[%s3332] sm:$0xff]
    %v3334 = vld [vmem:[%s3332 + $0x8] sm:$0xff]
    %v3335 = vld [vmem:[%s3332 + $0x10] sm:$0xff]
    %v3336 = vld [vmem:[%s3332 + $0x18] sm:$0xff]
    %v3338 = vsel %vm355, %v3331, 0
    %3340 = vmatprep.subr.mxu0 0.0
    %3341 = vmatpush1.msra.mxu0 %v3333
    %3342 = vmatprep.subr.mxu0 0.0
    %3343 = vmatpush1.msra.mxu0 %v3334
    %3344 = vmatprep.subr.mxu0 0.0
    %3345 = vmatpush1.msra.mxu0 %v3335
    %3346 = vmatprep.subr.mxu0 0.0
    %3347 = vmatpush1.msra.mxu0 %v3336
    %3348 = vmatprep.subr.mxu0 0.0
    %3349 = vmatpush1.msra.mxu0 0.0
    %3350 = vmatprep.subr.mxu0 0.0
    %3351 = vmatpush1.msra.mxu0 0.0
    %3352 = vmatprep.subr.mxu0 0.0
    %3353 = vmatpush1.msra.mxu0 0.0
    %3354 = vmatprep.subr.mxu0 0.0
    %3355 = vmatpush1.msra.mxu0 0.0
    %3356 = vmatprep.subr.mxu0 0.0
    %3357 = vmatpush1.msra.mxu0 0.0
    %3358 = vmatprep.subr.mxu0 0.0
    %3359 = vmatpush1.msra.mxu0 0.0
    %3360 = vmatprep.subr.mxu0 0.0
    %3361 = vmatpush1.msra.mxu0 0.0
    %3362 = vmatprep.subr.mxu0 0.0
    %3363 = vmatpush1.msra.mxu0 0.0
    %3364 = vmatprep.subr.mxu0 0.0
    %3365 = vmatpush1.msra.mxu0 0.0
    %3366 = vmatprep.subr.mxu0 0.0
    %3367 = vmatpush1.msra.mxu0 0.0
    %3368 = vmatprep.subr.mxu0 0.0
    %3369 = vmatpush1.msra.mxu0 0.0
    %3370 = vmatprep.subr.mxu0 0.0
    %3371 = vmatpush1.msra.mxu0 0.0
    %3372 = vmatprep.subr.mxu0 0.0
    %3373 = vmatpush1.msra.mxu0 0.0
    %3374 = vmatprep.subr.mxu0 0.0
    %3375 = vmatpush1.msra.mxu0 0.0
    %3376 = vmatprep.subr.mxu0 0.0
    %3377 = vmatpush1.msra.mxu0 0.0
    %3378 = vmatprep.subr.mxu0 0.0
    %3379 = vmatpush1.msra.mxu0 0.0
    %3380 = vmatprep.subr.mxu0 0.0
    %3381 = vmatpush1.msra.mxu0 0.0
    %3382 = vmatprep.subr.mxu0 0.0
    %3383 = vmatpush1.msra.mxu0 0.0
    %3384 = vmatprep.subr.mxu0 0.0
    %3385 = vmatpush1.msra.mxu0 0.0
    %3386 = vmatprep.subr.mxu0 0.0
    %3387 = vmatpush1.msra.mxu0 0.0
    %3388 = vmatprep.subr.mxu0 0.0
    %3389 = vmatpush1.msra.mxu0 0.0
    %3390 = vmatprep.subr.mxu0 0.0
    %3391 = vmatpush1.msra.mxu0 0.0
    %3392 = vmatprep.subr.mxu0 0.0
    %3393 = vmatpush1.msra.mxu0 0.0
    %3394 = vmatprep.subr.mxu0 0.0
    %3395 = vmatpush1.msra.mxu0 0.0
    %3396 = vmatprep.subr.mxu0 0.0
    %3397 = vmatpush1.msra.mxu0 0.0
    %3398 = vmatprep.subr.mxu0 0.0
    %3399 = vmatpush1.msra.mxu0 0.0
    %3400 = vmatprep.subr.mxu0 0.0
    %3401 = vmatpush1.msra.mxu0 0.0
    %3402 = vmatprep.subr.mxu0 0.0
    %3403 = vmatpush1.msra.mxu0 0.0
    %3404 = vmatprep.mubr.f32.mxu0 0.0
    %3405 = vmatmul.mubr.f32.gmra.mrb[0].mxu0 %v3338
    %v3406 = vpop.f32.mrb[0].mxu0
    %v3407 = vadd.f32 0.0, %v3406
    %v3408 = vpop.f32.mrb[0].mxu0
    %3409 = vdwg.mxu0
    %v3411 = vsel %vm355, %v1171, 0
    %3413 = vmatprep.subr.mxu0 0.0
    %3414 = vmatpush1.msra.mxu0 %v1172
    %3415 = vmatprep.subr.mxu0 0.0
    %3416 = vmatpush1.msra.mxu0 %v1173
    %3417 = vmatprep.subr.mxu0 0.0
    %3418 = vmatpush1.msra.mxu0 %v1174
    %3419 = vmatprep.subr.mxu0 0.0
    %3420 = vmatpush1.msra.mxu0 %v1175
    %3421 = vmatprep.subr.mxu0 0.0
    %3422 = vmatpush1.msra.mxu0 0.0
    %3423 = vmatprep.subr.mxu0 0.0
    %3424 = vmatpush1.msra.mxu0 0.0
    %3425 = vmatprep.subr.mxu0 0.0
    %3426 = vmatpush1.msra.mxu0 0.0
    %3427 = vmatprep.subr.mxu0 0.0
    %3428 = vmatpush1.msra.mxu0 0.0
    %3429 = vmatprep.subr.mxu0 0.0
    %3430 = vmatpush1.msra.mxu0 0.0
    %3431 = vmatprep.subr.mxu0 0.0
    %3432 = vmatpush1.msra.mxu0 0.0
    %3433 = vmatprep.subr.mxu0 0.0
    %3434 = vmatpush1.msra.mxu0 0.0
    %3435 = vmatprep.subr.mxu0 0.0
    %3436 = vmatpush1.msra.mxu0 0.0
    %3437 = vmatprep.subr.mxu0 0.0
    %3438 = vmatpush1.msra.mxu0 0.0
    %3439 = vmatprep.subr.mxu0 0.0
    %3440 = vmatpush1.msra.mxu0 0.0
    %3441 = vmatprep.subr.mxu0 0.0
    %3442 = vmatpush1.msra.mxu0 0.0
    %3443 = vmatprep.subr.mxu0 0.0
    %3444 = vmatpush1.msra.mxu0 0.0
    %3445 = vmatprep.subr.mxu0 0.0
    %3446 = vmatpush1.msra.mxu0 0.0
    %3447 = vmatprep.subr.mxu0 0.0
    %3448 = vmatpush1.msra.mxu0 0.0
    %3449 = vmatprep.subr.mxu0 0.0
    %3450 = vmatpush1.msra.mxu0 0.0
    %3451 = vmatprep.subr.mxu0 0.0
    %3452 = vmatpush1.msra.mxu0 0.0
    %3453 = vmatprep.subr.mxu0 0.0
    %3454 = vmatpush1.msra.mxu0 0.0
    %3455 = vmatprep.subr.mxu0 0.0
    %3456 = vmatpush1.msra.mxu0 0.0
    %3457 = vmatprep.subr.mxu0 0.0
    %3458 = vmatpush1.msra.mxu0 0.0
    %3459 = vmatprep.subr.mxu0 0.0
    %3460 = vmatpush1.msra.mxu0 0.0
    %3461 = vmatprep.subr.mxu0 0.0
    %3462 = vmatpush1.msra.mxu0 0.0
    %3463 = vmatprep.subr.mxu0 0.0
    %3464 = vmatpush1.msra.mxu0 0.0
    %3465 = vmatprep.subr.mxu0 0.0
    %3466 = vmatpush1.msra.mxu0 0.0
    %3467 = vmatprep.subr.mxu0 0.0
    %3468 = vmatpush1.msra.mxu0 0.0
    %3469 = vmatprep.subr.mxu0 0.0
    %3470 = vmatpush1.msra.mxu0 0.0
    %3471 = vmatprep.subr.mxu0 0.0
    %3472 = vmatpush1.msra.mxu0 0.0
    %3473 = vmatprep.subr.mxu0 0.0
    %3474 = vmatpush1.msra.mxu0 0.0
    %3475 = vmatprep.subr.mxu0 0.0
    %3476 = vmatpush1.msra.mxu0 0.0
    %3477 = vmatprep.mubr.f32.mxu0 0.0
    %3478 = vmatmul.mubr.f32.gmra.mrb[0].mxu0 %v3411
    %v3479 = vpop.f32.mrb[0].mxu0
    %v3480 = vadd.f32 %v3407, %v3479
    %v3481 = vpop.f32.mrb[0].mxu0
    %3482 = vdwg.mxu0
    %vm3483 = vcmask 64512
    %v3485 = vsel %vm3483, %v217, 0
    %3487 = vmatprep.subr.mxu0 0.0
    %3488 = vmatpush1.msra.mxu0 %v3480
    %3489 = vmatprep.subr.mxu0 0.0
    %3490 = vmatpush1.msra.mxu0 0.0
    %3491 = vmatprep.subr.mxu0 0.0
    %3492 = vmatpush1.msra.mxu0 0.0
    %3493 = vmatprep.subr.mxu0 0.0
    %3494 = vmatpush1.msra.mxu0 0.0
    %3495 = vmatprep.subr.mxu0 0.0
    %3496 = vmatpush1.msra.mxu0 0.0
    %3497 = vmatprep.subr.mxu0 0.0
    %3498 = vmatpush1.msra.mxu0 0.0
    %3499 = vmatprep.subr.mxu0 0.0
    %3500 = vmatpush1.msra.mxu0 0.0
    %3501 = vmatprep.subr.mxu0 0.0
    %3502 = vmatpush1.msra.mxu0 0.0
    %3503 = vmatprep.subr.mxu0 0.0
    %3504 = vmatpush1.msra.mxu0 0.0
    %3505 = vmatprep.subr.mxu0 0.0
    %3506 = vmatpush1.msra.mxu0 0.0
    %3507 = vmatprep.subr.mxu0 0.0
    %3508 = vmatpush1.msra.mxu0 0.0
    %3509 = vmatprep.subr.mxu0 0.0
    %3510 = vmatpush1.msra.mxu0 0.0
    %3511 = vmatprep.subr.mxu0 0.0
    %3512 = vmatpush1.msra.mxu0 0.0
    %3513 = vmatprep.subr.mxu0 0.0
    %3514 = vmatpush1.msra.mxu0 0.0
    %3515 = vmatprep.subr.mxu0 0.0
    %3516 = vmatpush1.msra.mxu0 0.0
    %3517 = vmatprep.subr.mxu0 0.0
    %3518 = vmatpush1.msra.mxu0 0.0
    %3519 = vmatprep.subr.mxu0 0.0
    %3520 = vmatpush1.msra.mxu0 0.0
    %3521 = vmatprep.subr.mxu0 0.0
    %3522 = vmatpush1.msra.mxu0 0.0
    %3523 = vmatprep.subr.mxu0 0.0
    %3524 = vmatpush1.msra.mxu0 0.0
    %3525 = vmatprep.subr.mxu0 0.0
    %3526 = vmatpush1.msra.mxu0 0.0
    %3527 = vmatprep.subr.mxu0 0.0
    %3528 = vmatpush1.msra.mxu0 0.0
    %3529 = vmatprep.subr.mxu0 0.0
    %3530 = vmatpush1.msra.mxu0 0.0
    %3531 = vmatprep.subr.mxu0 0.0
    %3532 = vmatpush1.msra.mxu0 0.0
    %3533 = vmatprep.subr.mxu0 0.0
    %3534 = vmatpush1.msra.mxu0 0.0
    %3535 = vmatprep.subr.mxu0 0.0
    %3536 = vmatpush1.msra.mxu0 0.0
    %3537 = vmatprep.subr.mxu0 0.0
    %3538 = vmatpush1.msra.mxu0 0.0
    %3539 = vmatprep.subr.mxu0 0.0
    %3540 = vmatpush1.msra.mxu0 0.0
    %3541 = vmatprep.subr.mxu0 0.0
    %3542 = vmatpush1.msra.mxu0 0.0
    %3543 = vmatprep.subr.mxu0 0.0
    %3544 = vmatpush1.msra.mxu0 0.0
    %3545 = vmatprep.subr.mxu0 0.0
    %3546 = vmatpush1.msra.mxu0 0.0
    %3547 = vmatprep.subr.mxu0 0.0
    %3548 = vmatpush1.msra.mxu0 0.0
    %3549 = vmatprep.subr.mxu0 0.0
    %3550 = vmatpush1.msra.mxu0 0.0
    %3551 = vmatprep.mubr.f32.mxu0 0.0
    %3552 = vmatmul.mubr.f32.gmra.mrb[0].mxu0 %v3485
    %v3553 = vpop.f32.mrb[0].mxu0
    %v3554 = vadd.f32 0.0, %v3553
    %v3555 = vpop.f32.mrb[0].mxu0
    %3556 = vdwg.mxu0
    %vm3557 = vcmask 25600
    %3558 = vst.msk [vmem:[#allocation2] sm:$0x3] %vm3557, %v3554
    // Predicated region
    $region126: #{dimenet_forward_pallas.1} parent=1 // pred_check
      _
    $region127: #{dimenet_forward_pallas.1} parent=1 // pred_check_branch
      %3560 = sbr.rel (0) target = $region129
    $region128: #{dimenet_forward_pallas.1} parent=1 // pred_region
      %s3562 = ssub.s32 32, 32
      %3563 = vsyncadd [#allocation3], %s3562
      %s3565 = sshll.u32 [#allocation2], 4
      %s3566 = int_to_ptr.vmem [resolvable:$true] %s3565
      %3568 = dma.vmem_to_hbm [thread:$0]  %s3566, 32, %s63, [#allocation3]
    $region129: #{dimenet_forward_pallas.1} parent=1 // pred_fallthru
      _
    // Predicated region
    $region130: #{dimenet_forward_pallas.1} parent=1 // pred_check
      _
    $region131: #{dimenet_forward_pallas.1} parent=1 // pred_check_branch
      %3570 = sbr.rel (0) target = $region133
    $region132: #{dimenet_forward_pallas.1} parent=1 // pred_region
      %3571 = dma.done [#allocation3], 32
    $region133: #{dimenet_forward_pallas.1} parent=1 // pred_fallthru
      _
    %3572 = vsyncpa [#allocation3], 1

</llo_original>
